<compile_context>
chip_gen: v7x
topology: tpu7x:2x2x1
jax: 0.10.0
libtpu: 0.0.40
codegen_flags: <defaults>
</compile_context>

<pallas_src>
import functools

import jax
import jax.numpy as jnp
from jax.experimental import pallas as pl
from jax.experimental.pallas import tpu as pltpu

# ---- config mirroring the PyTorch script -----------------------------------
CONFIG = {
    "num_images": 1,
    "hidden_dimension": 10,
    "noise_dimension": 8,
}
# `num_image_squares` is referenced but not defined in the source snippet;
# pick a small deterministic value consistent with an image-grid output.
NUM_IMAGE_SQUARES = 16

LANE = 128      # TPU vreg lane width
SUBLANE = 8     # TPU vreg sublane height
MAX_TILE_M = 1024


def _round_up(x, m):
    return (x + m - 1) // m * m


def _choose_tile_m(batch):
    """Split the padded batch into exactly 2 tiles (capped at MAX_TILE_M rows)."""
    b2 = _round_up(max(batch, 1), 2 * SUBLANE)
    half = b2 // 2
    return min(max(half, SUBLANE), MAX_TILE_M)


# ---- Pallas kernel: fused 2-layer MLP + sigmoid + affine + clamp ------------
def generator_kernel(noise_ref, w1_ref, b1_ref, w2_ref, b2_ref, out_ref):
    hp = jax.lax.Precision.HIGHEST

    # First linear + ReLU (MXU matmul, f32 accumulate). K = noise_dim = 8.
    x = noise_ref[...]                                        # [tile_m, nd]
    h = jnp.dot(x, w1_ref[...], preferred_element_type=jnp.float32, precision=hp)
    h = jnp.maximum(h + b1_ref[...], 0.0)                     # [tile_m, hd_p=16]

    # Second linear: K = 16 (sublane-aligned hidden), lane-dense 128-wide out.
    o = jnp.dot(h, w2_ref[...], preferred_element_type=jnp.float32, precision=hp)
    o = o + b2_ref[...]

    # Sigmoid (EUP slot) -> affine rescale + clamp as two VALU passes.
    o = jax.nn.sigmoid(o)
    o = jnp.minimum(jnp.maximum(o * 1.1 - 0.05, 0.0), 1.0)

    out_ref[...] = o.astype(out_ref.dtype)                    # unmasked full-lane store


# ---- one-time weight padding (hoisted out of the per-call path) -------------
def pad_params(w1, b1, w2, b2):
    """Pad weights once at init time to TPU-friendly shapes.

    hidden dim -> multiple of 8 sublanes (10 -> 16); output dim -> multiple of
    128 lanes (16 -> 128).  Zero padding is mathematically exact: padded hidden
    units are ReLU(0 + 0) = 0 feeding zero rows of W2; padded output lanes are
    sliced off outside the kernel.
    """
    nd, hd = w1.shape
    od = w2.shape[1]
    hd_p = _round_up(hd, SUBLANE)     # 16
    od_p = _round_up(od, LANE)        # 128

    w1_p = jnp.zeros((nd, hd_p), jnp.float32).at[:, :hd].set(w1)
    b1_p = jnp.zeros((1, hd_p), jnp.float32).at[:, :hd].set(b1)
    w2_p = jnp.zeros((hd_p, od_p), jnp.float32).at[:hd, :od].set(w2)
    b2_p = jnp.zeros((1, od_p), jnp.float32).at[:, :od].set(b2)
    return w1_p, b1_p, w2_p, b2_p


# ---- jitted forward: pad noise rows, run the fused kernel -------------------
@functools.partial(jax.jit, static_argnames=("tile_m", "out_dim"))
def _generator_pallas(noise, w1_p, b1_p, w2_p, b2_p, *, tile_m, out_dim):
    B, nd = noise.shape
    hd_p = w1_p.shape[1]
    od_p = w2_p.shape[1]
    b_p = _round_up(B, tile_m)

    # Only the (data-dependent) noise rows are padded per call.
    noise_p = jnp.zeros((b_p, nd), jnp.float32).at[:B, :].set(noise)

    grid = (b_p // tile_m,)

    out_padded = pl.pallas_call(
        generator_kernel,
        out_shape=jax.ShapeDtypeStruct((b_p, od_p), jnp.float32),
        grid=grid,
        in_specs=[
            pl.BlockSpec((tile_m, nd), lambda i: (i, 0)),     # noise tile
            pl.BlockSpec((nd, hd_p), lambda i: (0, 0)),       # W1 (full array, resident)
            pl.BlockSpec((1, hd_p), lambda i: (0, 0)),        # b1
            pl.BlockSpec((hd_p, od_p), lambda i: (0, 0)),     # W2 (resident)
            pl.BlockSpec((1, od_p), lambda i: (0, 0)),        # b2
        ],
        out_specs=pl.BlockSpec((tile_m, od_p), lambda i: (i, 0)),
        compiler_params=pltpu.CompilerParams(
            dimension_semantics=("parallel",),                # v7x: split over 2 TCs
        ),
    )(noise_p, w1_p, b1_p, w2_p, b2_p)

    return out_padded[:B, :out_dim]


def generator_forward(noise, padded_params, out_dim=NUM_IMAGE_SQUARES):
    """Fused Generator forward pass. noise: [B, noise_dim] -> [B, out_dim]."""
    tile_m = _choose_tile_m(noise.shape[0])
    w1_p, b1_p, w2_p, b2_p = padded_params
    return _generator_pallas(noise, w1_p, b1_p, w2_p, b2_p,
                             tile_m=tile_m, out_dim=out_dim)


# ---- deterministic parameter / input construction ---------------------------
def init_params(key, batch):
    nd = CONFIG["noise_dimension"]
    hd = CONFIG["hidden_dimension"]
    od = NUM_IMAGE_SQUARES

    k_noise, k_w1, k_b1, k_w2, k_b2 = jax.random.split(key, 5)

    # torch.rand -> uniform [0, 1)
    noise = jax.random.uniform(k_noise, (batch, nd), dtype=jnp.float32)

    # nn.Linear default init: U(-1/sqrt(fan_in), 1/sqrt(fan_in))
    lim1 = 1.0 / jnp.sqrt(nd)
    w1 = jax.random.uniform(k_w1, (nd, hd), minval=-lim1, maxval=lim1,
                            dtype=jnp.float32)
    b1 = jax.random.uniform(k_b1, (1, hd), minval=-lim1, maxval=lim1,
                            dtype=jnp.float32)

    lim2 = 1.0 / jnp.sqrt(hd)
    w2 = jax.random.uniform(k_w2, (hd, od), minval=-lim2, maxval=lim2,
                            dtype=jnp.float32)
    b2 = jax.random.uniform(k_b2, (1, od), minval=-lim2, maxval=lim2,
                            dtype=jnp.float32)

    return noise, w1, b1, w2, b2


def reference_forward(noise, w1, b1, w2, b2):
    # Gold reference computed with true f32 matmuls.
    hp = jax.lax.Precision.HIGHEST
    h = jnp.maximum(jnp.dot(noise, w1, precision=hp) + b1, 0.0)
    o = jax.nn.sigmoid(jnp.dot(h, w2, precision=hp) + b2)
    return jnp.clip(o * 1.1 - 0.05, 0.0, 1.0)


if __name__ == "__main__":
    key = jax.random.PRNGKey(0)

    # The original module uses num_images=1, which is pure launch overhead on
    # TPU; the demo batches many noise rows per call (num_images=1 is also
    # checked below). 500 is deliberately not a multiple of 8 or 128 so the
    # row-padding / slicing path is exercised; it maps to grid=(2,) with
    # tile_m=256.
    BATCH = 500
    noise, w1, b1, w2, b2 = init_params(key, BATCH)
    padded_params = pad_params(w1, b1, w2, b2)   # one-time, outside the call path

    out = jax.block_until_ready(generator_forward(noise, padded_params))
    ref = reference_forward(noise, w1, b1, w2, b2)
    assert out.shape == (BATCH, NUM_IMAGE_SQUARES)
    assert jnp.allclose(out, ref, atol=1e-5, rtol=1e-5), "mismatch vs JAX reference"

    # Original module configuration: num_images = 1.
    n1 = CONFIG["num_images"]
    out1 = jax.block_until_ready(generator_forward(noise[:n1], padded_params))
    ref1 = reference_forward(noise[:n1], w1, b1, w2, b2)
    assert out1.shape == (n1, NUM_IMAGE_SQUARES)
    assert jnp.allclose(out1, ref1, atol=1e-5, rtol=1e-5), "mismatch at num_images=1"

    print("KERNEL_OK")
</pallas_src>

<mosaic_0001>
module attributes {stable_mosaic.version = 11 : i64} {
  func.func @generator_kernel(%arg0: i32, %arg1: memref<256x8xf32, #tpu.memory_space<vmem>>, %arg2: memref<8x16xf32, #tpu.memory_space<vmem>>, %arg3: memref<1x16xf32, #tpu.memory_space<vmem>>, %arg4: memref<16x128xf32, #tpu.memory_space<vmem>>, %arg5: memref<1x128xf32, #tpu.memory_space<vmem>>, %arg6: memref<256x128xf32, #tpu.memory_space<vmem>>) attributes {dimension_semantics = [#tpu.dimension_semantics<parallel>], iteration_bounds = array<i64: 2>, scalar_prefetch = 0 : i64, scratch_operands = 0 : i64, tpu.core_type = #tpu.core_type<tc>, window_params = [{transform_indices = @transform_0, window_bounds = array<i64: 256, 8>}, {pipeline_mode = #tpu.pipeline_mode<synchronous>, transform_indices = @transform_1, window_bounds = array<i64: 8, 16>}, {pipeline_mode = #tpu.pipeline_mode<synchronous>, transform_indices = @transform_2, window_bounds = array<i64: 1, 16>}, {pipeline_mode = #tpu.pipeline_mode<synchronous>, transform_indices = @transform_3, window_bounds = array<i64: 16, 128>}, {pipeline_mode = #tpu.pipeline_mode<synchronous>, transform_indices = @transform_4, window_bounds = array<i64: 1, 128>}, {transform_indices = @transform_5, window_bounds = array<i64: 256, 128>}]} {
    %c0 = arith.constant 0 : index
    %c0_0 = arith.constant 0 : index
    %0 = vector.load %arg1[%c0, %c0_0] : memref<256x8xf32, #tpu.memory_space<vmem>>, vector<256x8xf32>
    %c0_1 = arith.constant 0 : index
    %c0_2 = arith.constant 0 : index
    %1 = vector.load %arg2[%c0_1, %c0_2] : memref<8x16xf32, #tpu.memory_space<vmem>>, vector<8x16xf32>
    %cst = arith.constant dense<0.000000e+00> : vector<256x16xf32>
    %2 = tpu.matmul %0, %1, %cst {dimension_numbers = #tpu.dot_dimension_numbers<[1], [0], [0], [1], [0, 0, 1, 1], [], []>, precision = #tpu.contract_precision<fp32>} : vector<256x8xf32>, vector<8x16xf32>, vector<256x16xf32> -> vector<256x16xf32>
    %c0_3 = arith.constant 0 : index
    %c0_4 = arith.constant 0 : index
    %3 = vector.load %arg3[%c0_3, %c0_4] : memref<1x16xf32, #tpu.memory_space<vmem>>, vector<1x16xf32>
    %4 = vector.broadcast %3 : vector<1x16xf32> to vector<256x16xf32>
    %5 = arith.addf %2, %4 : vector<256x16xf32>
    %cst_5 = arith.constant 0.000000e+00 : f32
    %6 = vector.broadcast %cst_5 : f32 to vector<256x16xf32>
    %7 = arith.maximumf %5, %6 : vector<256x16xf32>
    %c0_6 = arith.constant 0 : index
    %c0_7 = arith.constant 0 : index
    %8 = vector.load %arg4[%c0_6, %c0_7] : memref<16x128xf32, #tpu.memory_space<vmem>>, vector<16x128xf32>
    %cst_8 = arith.constant dense<0.000000e+00> : vector<256x128xf32>
    %9 = tpu.matmul %7, %8, %cst_8 {dimension_numbers = #tpu.dot_dimension_numbers<[1], [0], [0], [1], [0, 0, 1, 1], [], []>, precision = #tpu.contract_precision<fp32>} : vector<256x16xf32>, vector<16x128xf32>, vector<256x128xf32> -> vector<256x128xf32>
    %c0_9 = arith.constant 0 : index
    %c0_10 = arith.constant 0 : index
    %10 = vector.load %arg5[%c0_9, %c0_10] : memref<1x128xf32, #tpu.memory_space<vmem>>, vector<1x128xf32>
    %11 = vector.broadcast %10 : vector<1x128xf32> to vector<256x128xf32>
    %12 = arith.addf %9, %11 : vector<256x128xf32>
    %13 = arith.negf %12 : vector<256x128xf32>
    %14 = math.exp %13 : vector<256x128xf32>
    %cst_11 = arith.constant 1.000000e+00 : f32
    %15 = vector.broadcast %cst_11 : f32 to vector<256x128xf32>
    %16 = arith.addf %15, %14 : vector<256x128xf32>
    %17 = arith.divf %15, %16 : vector<256x128xf32>
    %cst_12 = arith.constant 1.100000e+00 : f32
    %18 = vector.broadcast %cst_12 : f32 to vector<256x128xf32>
    %19 = arith.mulf %17, %18 : vector<256x128xf32>
    %cst_13 = arith.constant 5.000000e-02 : f32
    %20 = vector.broadcast %cst_13 : f32 to vector<256x128xf32>
    %21 = arith.subf %19, %20 : vector<256x128xf32>
    %cst_14 = arith.constant 0.000000e+00 : f32
    %22 = vector.broadcast %cst_14 : f32 to vector<256x128xf32>
    %23 = arith.maximumf %21, %22 : vector<256x128xf32>
    %cst_15 = arith.constant 1.000000e+00 : f32
    %24 = vector.broadcast %cst_15 : f32 to vector<256x128xf32>
    %25 = arith.minimumf %23, %24 : vector<256x128xf32>
    %c0_16 = arith.constant 0 : index
    %c0_17 = arith.constant 0 : index
    %26 = vector.load %arg6[%c0_16, %c0_17] : memref<256x128xf32, #tpu.memory_space<vmem>>, vector<256x128xf32>
    tpu.vector_store %arg6[%c0_16, %c0_17], %25 {strides = array<i32>} : memref<256x128xf32, #tpu.memory_space<vmem>>, vector<256x128xf32>,
    return
  }
  func.func @transform_0(%arg0: i32) -> (i32, i32) {
    %c0_i32 = arith.constant 0 : i32
    %c0_i32_0 = arith.constant 0 : i32
    return %arg0, %c0_i32 : i32, i32
  }
  func.func @transform_1(%arg0: i32) -> (i32, i32) {
    %c0_i32 = arith.constant 0 : i32
    %c0_i32_0 = arith.constant 0 : i32
    %c0_i32_1 = arith.constant 0 : i32
    return %c0_i32, %c0_i32_0 : i32, i32
  }
  func.func @transform_2(%arg0: i32) -> (i32, i32) {
    %c0_i32 = arith.constant 0 : i32
    %c0_i32_0 = arith.constant 0 : i32
    %c0_i32_1 = arith.constant 0 : i32
    return %c0_i32, %c0_i32_0 : i32, i32
  }
  func.func @transform_3(%arg0: i32) -> (i32, i32) {
    %c0_i32 = arith.constant 0 : i32
    %c0_i32_0 = arith.constant 0 : i32
    %c0_i32_1 = arith.constant 0 : i32
    return %c0_i32, %c0_i32_0 : i32, i32
  }
  func.func @transform_4(%arg0: i32) -> (i32, i32) {
    %c0_i32 = arith.constant 0 : i32
    %c0_i32_0 = arith.constant 0 : i32
    %c0_i32_1 = arith.constant 0 : i32
    return %c0_i32, %c0_i32_0 : i32, i32
  }
  func.func @transform_5(%arg0: i32) -> (i32, i32) {
    %c0_i32 = arith.constant 0 : i32
    %c0_i32_0 = arith.constant 0 : i32
    return %arg0, %c0_i32 : i32, i32
  }
}

</mosaic_0001>

<llo_original>
// kernel: _generator_pallas.1
$region0: #{_generator_pallas.1}
  #allocation0 [shape = 'u32[]', space=smem, size = 0x4, offset = 0x4, fixed_abs, tag = 'smem constant byte address 0x4 - core index']
  #allocation1 [shape = 'u32[144,128]{1,0:T(1,128)}', space=vmem, size = 0x12000, scoped, tag = 'internal scratch']
  %s0 = inlined_call_operand.vmem [shape: f32[512,8], index: 0, kind: input, shape index: {}]
  %s1 = inlined_call_operand.vmem [shape: f32[8,16], index: 1, kind: input, shape index: {}]
  %s2 = inlined_call_operand.vmem [shape: f32[1,16], index: 2, kind: input, shape index: {}]
  %s3 = inlined_call_operand.vmem [shape: f32[16,128], index: 3, kind: input, shape index: {}]
  %s4 = inlined_call_operand.vmem [shape: f32[1,128], index: 4, kind: input, shape index: {}]
  %s5 = inlined_call_operand.vmem [shape: f32[512,128], index: 5, kind: output, shape index: {}]
  %s6 = sld [smem:[#allocation0]]
  $region53: #{_generator_pallas.1} parent=0
    _
  %s8 = ssub.s32 1, %s6
  %s9 = scalar_select 0, %s8, %s6
  loop: start=0, step=1, limit=4
  $region2: #{_generator_pallas.1} parent=0 // loop_pre_header
    _
  $region3: #{_generator_pallas.1} parent=0 // loop_header
    %s11 = sphi 0, %s15
    %p12 = scmp.ge.s32.totalorder %s11, 4
    %s21 = sphi 0, %s23
    %s24 = sphi 0, %s21
    %s25 = sphi 0, %s24
    %s41 = sphi 0, %s25
    %s45 = sphi 0, %s45
    %s47 = sphi 0, %s45
    %s48 = sphi 0, %s47
    %s62 = sphi 0, %s48
    %s66 = sphi 0, %s66
    %s68 = sphi 0, %s66
    %s69 = sphi 0, %s68
    %s83 = sphi 0, %s69
    %s87 = sphi 0, %s87
    %s89 = sphi 0, %s87
    %s90 = sphi 0, %s89
    %s104 = sphi 0, %s90
    %s108 = sphi 0, %s108
    %s110 = sphi 0, %s108
    %s111 = sphi 0, %s110
    %s125 = sphi 0, %s111
    %s131 = sphi 0, %s133
    %s134 = sphi 0, %s131
    %s135 = sphi 0, %s134
    %s151 = sphi 0, %s135
  $region4: #{_generator_pallas.1} parent=0 // loop_header_branch
    %14 = sbr.rel (%p12) target = $region8
  $region5: #{_generator_pallas.1} parent=0 // loop_body
    %s16 = ssub.s32 %s11, 1
    %s17 = ssub.s32 %s11, 2
    %s18 = sadd.s32 %s11, 1
    %s19 = ssub.s32 %s11, %s18
    %p20 = scmp.eq.s32.totalorder %s19, 0
    %s22 = sadd.s32 %s21, 1
    %s23 = scalar_select %p20, %s21, %s22
    %p26 = pneg %p20
    %p27 = scmp.eq.s32.totalorder %s11, 1
    %p28 = por %p26, %p27
    %p29 = scmp.ne.s32.totalorder %s21, %s24
    %p30 = scmp.eq.s32.totalorder %s11, 0
    %p31 = por %p29, %p30
    %p32 = scmp.ne.s32.totalorder %s21, %s24
    %p33 = scmp.eq.s32.totalorder %s16, 1
    %p34 = por %p32, %p33
    %p35 = scmp.ne.s32.totalorder %s24, %s25
    %p36 = scmp.eq.s32.totalorder %s16, 0
    %p37 = por %p35, %p36
    %p38 = scmp.ne.s32.totalorder %s24, %s25
    %p39 = scmp.eq.s32.totalorder %s17, 1
    %p40 = por %p38, %p39
    %p42 = scmp.ne.s32.totalorder %s25, %s41
    %p43 = scmp.eq.s32.totalorder %s17, 0
    %p44 = por %p42, %p43
    %s46 = sadd.s32 %s45, 1
    %p49 = scmp.eq.s32.totalorder %s11, 1
    %p50 = scmp.ne.s32.totalorder %s45, %s47
    %p51 = scmp.eq.s32.totalorder %s11, 0
    %p52 = por %p50, %p51
    %p53 = scmp.ne.s32.totalorder %s45, %s47
    %p54 = scmp.eq.s32.totalorder %s16, 1
    %p55 = por %p53, %p54
    %p56 = scmp.ne.s32.totalorder %s47, %s48
    %p57 = scmp.eq.s32.totalorder %s16, 0
    %p58 = por %p56, %p57
    %p59 = scmp.ne.s32.totalorder %s47, %s48
    %p60 = scmp.eq.s32.totalorder %s17, 1
    %p61 = por %p59, %p60
    %p63 = scmp.ne.s32.totalorder %s48, %s62
    %p64 = scmp.eq.s32.totalorder %s17, 0
    %p65 = por %p63, %p64
    %s67 = sadd.s32 %s66, 1
    %p70 = scmp.eq.s32.totalorder %s11, 1
    %p71 = scmp.ne.s32.totalorder %s66, %s68
    %p72 = scmp.eq.s32.totalorder %s11, 0
    %p73 = por %p71, %p72
    %p74 = scmp.ne.s32.totalorder %s66, %s68
    %p75 = scmp.eq.s32.totalorder %s16, 1
    %p76 = por %p74, %p75
    %p77 = scmp.ne.s32.totalorder %s68, %s69
    %p78 = scmp.eq.s32.totalorder %s16, 0
    %p79 = por %p77, %p78
    %p80 = scmp.ne.s32.totalorder %s68, %s69
    %p81 = scmp.eq.s32.totalorder %s17, 1
    %p82 = por %p80, %p81
    %p84 = scmp.ne.s32.totalorder %s69, %s83
    %p85 = scmp.eq.s32.totalorder %s17, 0
    %p86 = por %p84, %p85
    %s88 = sadd.s32 %s87, 1
    %p91 = scmp.eq.s32.totalorder %s11, 1
    %p92 = scmp.ne.s32.totalorder %s87, %s89
    %p93 = scmp.eq.s32.totalorder %s11, 0
    %p94 = por %p92, %p93
    %p95 = scmp.ne.s32.totalorder %s87, %s89
    %p96 = scmp.eq.s32.totalorder %s16, 1
    %p97 = por %p95, %p96
    %p98 = scmp.ne.s32.totalorder %s89, %s90
    %p99 = scmp.eq.s32.totalorder %s16, 0
    %p100 = por %p98, %p99
    %p101 = scmp.ne.s32.totalorder %s89, %s90
    %p102 = scmp.eq.s32.totalorder %s17, 1
    %p103 = por %p101, %p102
    %p105 = scmp.ne.s32.totalorder %s90, %s104
    %p106 = scmp.eq.s32.totalorder %s17, 0
    %p107 = por %p105, %p106
    %s109 = sadd.s32 %s108, 1
    %p112 = scmp.eq.s32.totalorder %s11, 1
    %p113 = scmp.ne.s32.totalorder %s108, %s110
    %p114 = scmp.eq.s32.totalorder %s11, 0
    %p115 = por %p113, %p114
    %p116 = scmp.ne.s32.totalorder %s108, %s110
    %p117 = scmp.eq.s32.totalorder %s16, 1
    %p118 = por %p116, %p117
    %p119 = scmp.ne.s32.totalorder %s110, %s111
    %p120 = scmp.eq.s32.totalorder %s16, 0
    %p121 = por %p119, %p120
    %p122 = scmp.ne.s32.totalorder %s110, %s111
    %p123 = scmp.eq.s32.totalorder %s17, 1
    %p124 = por %p122, %p123
    %p126 = scmp.ne.s32.totalorder %s111, %s125
    %p127 = scmp.eq.s32.totalorder %s17, 0
    %p128 = por %p126, %p127
    %s129 = ssub.s32 %s11, %s18
    %p130 = scmp.eq.s32.totalorder %s129, 0
    %s132 = sadd.s32 %s131, 1
    %s133 = scalar_select %p130, %s131, %s132
    %p136 = pneg %p130
    %p137 = scmp.eq.s32.totalorder %s11, 1
    %p138 = por %p136, %p137
    %p139 = scmp.ne.s32.totalorder %s131, %s134
    %p140 = scmp.eq.s32.totalorder %s11, 0
    %p141 = por %p139, %p140
    %p142 = scmp.ne.s32.totalorder %s131, %s134
    %p143 = scmp.eq.s32.totalorder %s16, 1
    %p144 = por %p142, %p143
    %p145 = scmp.ne.s32.totalorder %s134, %s135
    %p146 = scmp.eq.s32.totalorder %s16, 0
    %p147 = por %p145, %p146
    %p148 = scmp.ne.s32.totalorder %s134, %s135
    %p149 = scmp.eq.s32.totalorder %s17, 1
    %p150 = por %p148, %p149
    %p152 = scmp.ne.s32.totalorder %s135, %s151
    %p153 = scmp.eq.s32.totalorder %s17, 0
    %p154 = por %p152, %p153
    %p155 = scmp.le.s32.totalorder 1, %s11
    %p156 = scmp.lt.s32.totalorder %s11, 3
    %p157 = pnand %p155, %p156
    %p158 = pneg %p157
    // Predicated region
    $region9: #{_generator_pallas.1} parent=5 // pred_check
      _
    $region10: #{_generator_pallas.1} parent=5 // pred_check_branch
      %160 = sbr.rel (%p157) target = $region12
    $region11: #{_generator_pallas.1} parent=5 // pred_region
      %s161 = ssub.s32 %s11, 1
      // Predicated region
      $region13: #{_generator_pallas.1} parent=11 // pred_check
        %p162 = pneg %p58
      $region14: #{_generator_pallas.1} parent=11 // pred_check_branch
        %164 = sbr.rel (%p162) target = $region16
      $region15: #{_generator_pallas.1} parent=11 // pred_region
        _
      $region16: #{_generator_pallas.1} parent=11 // pred_fallthru
        _
      // Predicated region
      $region17: #{_generator_pallas.1} parent=11 // pred_check
        %p165 = pneg %p79
      $region18: #{_generator_pallas.1} parent=11 // pred_check_branch
        %167 = sbr.rel (%p165) target = $region20
      $region19: #{_generator_pallas.1} parent=11 // pred_region
        _
      $region20: #{_generator_pallas.1} parent=11 // pred_fallthru
        _
      // Predicated region
      $region21: #{_generator_pallas.1} parent=11 // pred_check
        %p168 = pneg %p100
      $region22: #{_generator_pallas.1} parent=11 // pred_check_branch
        %170 = sbr.rel (%p168) target = $region24
      $region23: #{_generator_pallas.1} parent=11 // pred_region
        _
      $region24: #{_generator_pallas.1} parent=11 // pred_fallthru
        _
      // Predicated region
      $region25: #{_generator_pallas.1} parent=11 // pred_check
        %p171 = pneg %p121
      $region26: #{_generator_pallas.1} parent=11 // pred_check_branch
        %173 = sbr.rel (%p171) target = $region28
      $region27: #{_generator_pallas.1} parent=11 // pred_region
        _
      $region28: #{_generator_pallas.1} parent=11 // pred_fallthru
        _
    $region12: #{_generator_pallas.1} parent=5 // pred_fallthru
      _
    %p174 = scmp.lt.s32.totalorder %s11, 2
    // Predicated region
    $region29: #{_generator_pallas.1} parent=5 // pred_check
      %p175 = pneg %p174
    $region30: #{_generator_pallas.1} parent=5 // pred_check_branch
      %177 = sbr.rel (%p175) target = $region32
    $region31: #{_generator_pallas.1} parent=5 // pred_region
      // Predicated region
      $region33: #{_generator_pallas.1} parent=31 // pred_check
        %p178 = pneg %p31
      $region34: #{_generator_pallas.1} parent=31 // pred_check_branch
        %180 = sbr.rel (%p178) target = $region36
      $region35: #{_generator_pallas.1} parent=31 // pred_region
        %s181 = smul.u32 32, %s11
        %p182 = scmp.lt.s32.totalorder %s181, 63
        %s183 = scalar_select %p182, %s181, 63
        %s184 = smul.addr %s183, 8
        %s185 = scalar_lea.vmem %s0, %s184
        %s186 = smul.u32 32, %s11
      $region36: #{_generator_pallas.1} parent=31 // pred_fallthru
        _
    $region32: #{_generator_pallas.1} parent=5 // pred_fallthru
      _
    %p187 = scmp.le.s32.totalorder 1, %s11
    %p188 = scmp.lt.s32.totalorder %s11, 3
    %p189 = pnand %p187, %p188
    %p190 = pneg %p189
    // Predicated region
    $region37: #{_generator_pallas.1} parent=5 // pred_check
      _
    $region38: #{_generator_pallas.1} parent=5 // pred_check_branch
      %192 = sbr.rel (%p189) target = $region40
    $region39: #{_generator_pallas.1} parent=5 // pred_region
      %s193 = ssub.s32 %s11, 1
      %s194 = smul.u32 32, %s16
      %p195 = scmp.lt.s32.totalorder %s194, 63
      %s196 = scalar_select %p195, %s194, 63
      %s197 = smul.addr %s196, 8
      %s198 = scalar_lea.vmem %s0, %s197
      %p199 = pneg %p37
      %p200 = pneg %p34
      %p201 = pneg %p58
      %p202 = pneg %p55
      %p203 = pneg %p79
      %p204 = pneg %p76
      %p205 = pneg %p100
      %p206 = pneg %p97
      %p207 = pneg %p121
      %p208 = pneg %p118
      %p209 = pneg %p147
      %p210 = pneg %p144
      %s211 = smul.u32 32, %s16
      %p212 = scmp.lt.s32.totalorder %s211, 63
      %s213 = scalar_select %p212, %s211, 63
      %s214 = smul.addr %s213, 8
      %s215 = scalar_lea.vmem %s5, %s214
      %s216 = smul.u32 32, %s16
      %p217 = scmp.lt.s32.totalorder %s216, 63
      %s218 = scalar_select %p217, %s216, 63
      %s219 = smul.addr %s218, 8
      %s220 = scalar_lea.vmem %s0, %s219
      %s221 = smul.u32 32, %s16
      %s222 = smul.u32 32, %s16
      %p223 = scmp.lt.s32.totalorder %s222, 63
      %s224 = scalar_select %p223, %s222, 63
      %s225 = smul.addr %s224, 8
      %s226 = scalar_lea.vmem %s5, %s225
      %s227 = smul.u32 32, %s16
      %v228 = vld [vmem:[%s220] sm:$0xff]
      %v229 = vld [vmem:[%s220 + $0x8] sm:$0xff]
      %v230 = vld [vmem:[%s220 + $0x10] sm:$0xff]
      %v231 = vld [vmem:[%s220 + $0x18] sm:$0xff]
      %v232 = vld [vmem:[%s220 + $0x20] sm:$0xff]
      %v233 = vld [vmem:[%s220 + $0x28] sm:$0xff]
      %v234 = vld [vmem:[%s220 + $0x30] sm:$0xff]
      %v235 = vld [vmem:[%s220 + $0x38] sm:$0xff]
      %v236 = vld [vmem:[%s220 + $0x40] sm:$0xff]
      %v237 = vld [vmem:[%s220 + $0x48] sm:$0xff]
      %v238 = vld [vmem:[%s220 + $0x50] sm:$0xff]
      %v239 = vld [vmem:[%s220 + $0x58] sm:$0xff]
      %v240 = vld [vmem:[%s220 + $0x60] sm:$0xff]
      %v241 = vld [vmem:[%s220 + $0x68] sm:$0xff]
      %v242 = vld [vmem:[%s220 + $0x70] sm:$0xff]
      %v243 = vld [vmem:[%s220 + $0x78] sm:$0xff]
      %v244 = vld [vmem:[%s220 + $0x80] sm:$0xff]
      %v245 = vld [vmem:[%s220 + $0x88] sm:$0xff]
      %v246 = vld [vmem:[%s220 + $0x90] sm:$0xff]
      %v247 = vld [vmem:[%s220 + $0x98] sm:$0xff]
      %v248 = vld [vmem:[%s220 + $0xa0] sm:$0xff]
      %v249 = vld [vmem:[%s220 + $0xa8] sm:$0xff]
      %v250 = vld [vmem:[%s220 + $0xb0] sm:$0xff]
      %v251 = vld [vmem:[%s220 + $0xb8] sm:$0xff]
      %v252 = vld [vmem:[%s220 + $0xc0] sm:$0xff]
      %v253 = vld [vmem:[%s220 + $0xc8] sm:$0xff]
      %v254 = vld [vmem:[%s220 + $0xd0] sm:$0xff]
      %v255 = vld [vmem:[%s220 + $0xd8] sm:$0xff]
      %v256 = vld [vmem:[%s220 + $0xe0] sm:$0xff]
      %v257 = vld [vmem:[%s220 + $0xe8] sm:$0xff]
      %v258 = vld [vmem:[%s220 + $0xf0] sm:$0xff]
      %v259 = vld [vmem:[%s220 + $0xf8] sm:$0xff]
      %v260 = vld [vmem:[%s1] sm:$0xff]
      %v261 = vld [vmem:[%s2] sm:$0x1]
      %v263 = vlaneseq
      %v264 = vshrl.u32 %v263, 7
      %v265 = vsub.s32 0, %v264
      %v266 = vrot.slane %v261, %v265
      %vm268 = vcmask 64512
      %v270 = vsel %vm268, %v228, 0
      %v273 = vsel %vm268, %v229, 0
      %v276 = vsel %vm268, %v230, 0
      %v279 = vsel %vm268, %v231, 0
      %v282 = vsel %vm268, %v232, 0
      %v285 = vsel %vm268, %v233, 0
      %v288 = vsel %vm268, %v234, 0
      %v291 = vsel %vm268, %v235, 0
      %v294 = vsel %vm268, %v236, 0
      %v297 = vsel %vm268, %v237, 0
      %v300 = vsel %vm268, %v238, 0
      %v303 = vsel %vm268, %v239, 0
      %v306 = vsel %vm268, %v240, 0
      %v309 = vsel %vm268, %v241, 0
      %v312 = vsel %vm268, %v242, 0
      %v315 = vsel %vm268, %v243, 0
      %v318 = vsel %vm268, %v244, 0
      %v321 = vsel %vm268, %v245, 0
      %v324 = vsel %vm268, %v246, 0
      %v327 = vsel %vm268, %v247, 0
      %v330 = vsel %vm268, %v248, 0
      %v333 = vsel %vm268, %v249, 0
      %v336 = vsel %vm268, %v250, 0
      %v339 = vsel %vm268, %v251, 0
      %v342 = vsel %vm268, %v252, 0
      %v345 = vsel %vm268, %v253, 0
      %v348 = vsel %vm268, %v254, 0
      %v351 = vsel %vm268, %v255, 0
      %v354 = vsel %vm268, %v256, 0
      %v357 = vsel %vm268, %v257, 0
      %v360 = vsel %vm268, %v258, 0
      %v363 = vsel %vm268, %v259, 0
      %365 = vmatprep.subr.mxu0 0.0
      %v366 = vand.u32 %v260, 4294901760
      %367 = vmatpush1.msra.mxu0 %v366
      %368 = vmatprep.subr.mxu0 0.0
      %369 = vmatpush1.msra.mxu0 0.0
      %370 = vmatprep.subr.mxu0 0.0
      %371 = vmatpush1.msra.mxu0 0.0
      %372 = vmatprep.subr.mxu0 0.0
      %373 = vmatpush1.msra.mxu0 0.0
      %374 = vmatprep.subr.mxu0 0.0
      %375 = vmatpush1.msra.mxu0 0.0
      %376 = vmatprep.subr.mxu0 0.0
      %377 = vmatpush1.msra.mxu0 0.0
      %378 = vmatprep.subr.mxu0 0.0
      %379 = vmatpush1.msra.mxu0 0.0
      %380 = vmatprep.subr.mxu0 0.0
      %381 = vmatpush1.msra.mxu0 0.0
      %382 = vmatprep.subr.mxu0 0.0
      %383 = vmatpush1.msra.mxu0 0.0
      %384 = vmatprep.subr.mxu0 0.0
      %385 = vmatpush1.msra.mxu0 0.0
      %386 = vmatprep.subr.mxu0 0.0
      %387 = vmatpush1.msra.mxu0 0.0
      %388 = vmatprep.subr.mxu0 0.0
      %389 = vmatpush1.msra.mxu0 0.0
      %390 = vmatprep.subr.mxu0 0.0
      %391 = vmatpush1.msra.mxu0 0.0
      %392 = vmatprep.subr.mxu0 0.0
      %393 = vmatpush1.msra.mxu0 0.0
      %394 = vmatprep.subr.mxu0 0.0
      %395 = vmatpush1.msra.mxu0 0.0
      %396 = vmatprep.subr.mxu0 0.0
      %397 = vmatpush1.msra.mxu0 0.0
      %398 = vmatprep.subr.mxu0 0.0
      %399 = vmatpush1.msra.mxu0 0.0
      %400 = vmatprep.subr.mxu0 0.0
      %401 = vmatpush1.msra.mxu0 0.0
      %402 = vmatprep.subr.mxu0 0.0
      %403 = vmatpush1.msra.mxu0 0.0
      %404 = vmatprep.subr.mxu0 0.0
      %405 = vmatpush1.msra.mxu0 0.0
      %406 = vmatprep.subr.mxu0 0.0
      %407 = vmatpush1.msra.mxu0 0.0
      %408 = vmatprep.subr.mxu0 0.0
      %409 = vmatpush1.msra.mxu0 0.0
      %410 = vmatprep.subr.mxu0 0.0
      %411 = vmatpush1.msra.mxu0 0.0
      %412 = vmatprep.subr.mxu0 0.0
      %413 = vmatpush1.msra.mxu0 0.0
      %414 = vmatprep.subr.mxu0 0.0
      %415 = vmatpush1.msra.mxu0 0.0
      %416 = vmatprep.subr.mxu0 0.0
      %417 = vmatpush1.msra.mxu0 0.0
      %418 = vmatprep.subr.mxu0 0.0
      %419 = vmatpush1.msra.mxu0 0.0
      %420 = vmatprep.subr.mxu0 0.0
      %421 = vmatpush1.msra.mxu0 0.0
      %422 = vmatprep.subr.mxu0 0.0
      %423 = vmatpush1.msra.mxu0 0.0
      %424 = vmatprep.subr.mxu0 0.0
      %425 = vmatpush1.msra.mxu0 0.0
      %426 = vmatprep.subr.mxu0 0.0
      %427 = vmatpush1.msra.mxu0 0.0
      %428 = vmatprep.subr.mxu0 0.0
      %429 = vmatpush1.msra.mxu0 0.0
      %430 = vmatprep.mubr.f32.mxu0 0.0
      %v431 = vand.u32 %v270, 4294901760
      %v432 = vsub.f32 %v270, %v431
      %v433 = vand.u32 %v432, 4294901760
      %v434 = vsub.f32 %v432, %v433
      %v435 = vand.u32 %v434, 4294901760
      %436 = vmatmul.mubr.f32.gmra.mrb[0].mxu0 %v435
      %v437 = vpop.f32.mrb[0].mxu0
      %v438 = vadd.f32 %v266, %v437
      %v439 = vpop.f32.mrb[0].mxu0
      %440 = vmatprep.mubr.f32.mxu0 0.0
      %v441 = vand.u32 %v273, 4294901760
      %v442 = vsub.f32 %v273, %v441
      %v443 = vand.u32 %v442, 4294901760
      %v444 = vsub.f32 %v442, %v443
      %v445 = vand.u32 %v444, 4294901760
      %446 = vmatmul.mubr.f32.gmra.mrb[0].mxu0 %v445
      %v447 = vpop.f32.mrb[0].mxu0
      %v448 = vadd.f32 %v266, %v447
      %v449 = vpop.f32.mrb[0].mxu0
      %450 = vmatprep.mubr.f32.mxu0 0.0
      %v451 = vand.u32 %v276, 4294901760
      %v452 = vsub.f32 %v276, %v451
      %v453 = vand.u32 %v452, 4294901760
      %v454 = vsub.f32 %v452, %v453
      %v455 = vand.u32 %v454, 4294901760
      %456 = vmatmul.mubr.f32.gmra.mrb[0].mxu0 %v455
      %v457 = vpop.f32.mrb[0].mxu0
      %v458 = vadd.f32 %v266, %v457
      %v459 = vpop.f32.mrb[0].mxu0
      %460 = vmatprep.mubr.f32.mxu0 0.0
      %v461 = vand.u32 %v279, 4294901760
      %v462 = vsub.f32 %v279, %v461
      %v463 = vand.u32 %v462, 4294901760
      %v464 = vsub.f32 %v462, %v463
      %v465 = vand.u32 %v464, 4294901760
      %466 = vmatmul.mubr.f32.gmra.mrb[0].mxu0 %v465
      %v467 = vpop.f32.mrb[0].mxu0
      %v468 = vadd.f32 %v266, %v467
      %v469 = vpop.f32.mrb[0].mxu0
      %470 = vmatprep.mubr.f32.mxu0 0.0
      %v471 = vand.u32 %v282, 4294901760
      %v472 = vsub.f32 %v282, %v471
      %v473 = vand.u32 %v472, 4294901760
      %v474 = vsub.f32 %v472, %v473
      %v475 = vand.u32 %v474, 4294901760
      %476 = vmatmul.mubr.f32.gmra.mrb[0].mxu0 %v475
      %v477 = vpop.f32.mrb[0].mxu0
      %v478 = vadd.f32 %v266, %v477
      %v479 = vpop.f32.mrb[0].mxu0
      %480 = vmatprep.mubr.f32.mxu0 0.0
      %v481 = vand.u32 %v285, 4294901760
      %v482 = vsub.f32 %v285, %v481
      %v483 = vand.u32 %v482, 4294901760
      %v484 = vsub.f32 %v482, %v483
      %v485 = vand.u32 %v484, 4294901760
      %486 = vmatmul.mubr.f32.gmra.mrb[0].mxu0 %v485
      %v487 = vpop.f32.mrb[0].mxu0
      %v488 = vadd.f32 %v266, %v487
      %v489 = vpop.f32.mrb[0].mxu0
      %490 = vmatprep.mubr.f32.mxu0 0.0
      %v491 = vand.u32 %v288, 4294901760
      %v492 = vsub.f32 %v288, %v491
      %v493 = vand.u32 %v492, 4294901760
      %v494 = vsub.f32 %v492, %v493
      %v495 = vand.u32 %v494, 4294901760
      %496 = vmatmul.mubr.f32.gmra.mrb[0].mxu0 %v495
      %v497 = vpop.f32.mrb[0].mxu0
      %v498 = vadd.f32 %v266, %v497
      %v499 = vpop.f32.mrb[0].mxu0
      %500 = vmatprep.mubr.f32.mxu0 0.0
      %v501 = vand.u32 %v291, 4294901760
      %v502 = vsub.f32 %v291, %v501
      %v503 = vand.u32 %v502, 4294901760
      %v504 = vsub.f32 %v502, %v503
      %v505 = vand.u32 %v504, 4294901760
      %506 = vmatmul.mubr.f32.gmra.mrb[0].mxu0 %v505
      %v507 = vpop.f32.mrb[0].mxu0
      %v508 = vadd.f32 %v266, %v507
      %v509 = vpop.f32.mrb[0].mxu0
      %510 = vmatprep.mubr.f32.mxu0 0.0
      %v511 = vand.u32 %v294, 4294901760
      %v512 = vsub.f32 %v294, %v511
      %v513 = vand.u32 %v512, 4294901760
      %v514 = vsub.f32 %v512, %v513
      %v515 = vand.u32 %v514, 4294901760
      %516 = vmatmul.mubr.f32.gmra.mrb[0].mxu0 %v515
      %v517 = vpop.f32.mrb[0].mxu0
      %v518 = vadd.f32 %v266, %v517
      %v519 = vpop.f32.mrb[0].mxu0
      %520 = vmatprep.mubr.f32.mxu0 0.0
      %v521 = vand.u32 %v297, 4294901760
      %v522 = vsub.f32 %v297, %v521
      %v523 = vand.u32 %v522, 4294901760
      %v524 = vsub.f32 %v522, %v523
      %v525 = vand.u32 %v524, 4294901760
      %526 = vmatmul.mubr.f32.gmra.mrb[0].mxu0 %v525
      %v527 = vpop.f32.mrb[0].mxu0
      %v528 = vadd.f32 %v266, %v527
      %v529 = vpop.f32.mrb[0].mxu0
      %530 = vmatprep.mubr.f32.mxu0 0.0
      %v531 = vand.u32 %v300, 4294901760
      %v532 = vsub.f32 %v300, %v531
      %v533 = vand.u32 %v532, 4294901760
      %v534 = vsub.f32 %v532, %v533
      %v535 = vand.u32 %v534, 4294901760
      %536 = vmatmul.mubr.f32.gmra.mrb[0].mxu0 %v535
      %v537 = vpop.f32.mrb[0].mxu0
      %v538 = vadd.f32 %v266, %v537
      %v539 = vpop.f32.mrb[0].mxu0
      %540 = vmatprep.mubr.f32.mxu0 0.0
      %v541 = vand.u32 %v303, 4294901760
      %v542 = vsub.f32 %v303, %v541
      %v543 = vand.u32 %v542, 4294901760
      %v544 = vsub.f32 %v542, %v543
      %v545 = vand.u32 %v544, 4294901760
      %546 = vmatmul.mubr.f32.gmra.mrb[0].mxu0 %v545
      %v547 = vpop.f32.mrb[0].mxu0
      %v548 = vadd.f32 %v266, %v547
      %v549 = vpop.f32.mrb[0].mxu0
      %550 = vmatprep.mubr.f32.mxu0 0.0
      %v551 = vand.u32 %v306, 4294901760
      %v552 = vsub.f32 %v306, %v551
      %v553 = vand.u32 %v552, 4294901760
      %v554 = vsub.f32 %v552, %v553
      %v555 = vand.u32 %v554, 4294901760
      %556 = vmatmul.mubr.f32.gmra.mrb[0].mxu0 %v555
      %v557 = vpop.f32.mrb[0].mxu0
      %v558 = vadd.f32 %v266, %v557
      %v559 = vpop.f32.mrb[0].mxu0
      %560 = vmatprep.mubr.f32.mxu0 0.0
      %v561 = vand.u32 %v309, 4294901760
      %v562 = vsub.f32 %v309, %v561
      %v563 = vand.u32 %v562, 4294901760
      %v564 = vsub.f32 %v562, %v563
      %v565 = vand.u32 %v564, 4294901760
      %566 = vmatmul.mubr.f32.gmra.mrb[0].mxu0 %v565
      %v567 = vpop.f32.mrb[0].mxu0
      %v568 = vadd.f32 %v266, %v567
      %v569 = vpop.f32.mrb[0].mxu0
      %570 = vmatprep.mubr.f32.mxu0 0.0
      %v571 = vand.u32 %v312, 4294901760
      %v572 = vsub.f32 %v312, %v571
      %v573 = vand.u32 %v572, 4294901760
      %v574 = vsub.f32 %v572, %v573
      %v575 = vand.u32 %v574, 4294901760
      %576 = vmatmul.mubr.f32.gmra.mrb[0].mxu0 %v575
      %v577 = vpop.f32.mrb[0].mxu0
      %v578 = vadd.f32 %v266, %v577
      %v579 = vpop.f32.mrb[0].mxu0
      %580 = vmatprep.mubr.f32.mxu0 0.0
      %v581 = vand.u32 %v315, 4294901760
      %v582 = vsub.f32 %v315, %v581
      %v583 = vand.u32 %v582, 4294901760
      %v584 = vsub.f32 %v582, %v583
      %v585 = vand.u32 %v584, 4294901760
      %586 = vmatmul.mubr.f32.gmra.mrb[0].mxu0 %v585
      %v587 = vpop.f32.mrb[0].mxu0
      %v588 = vadd.f32 %v266, %v587
      %v589 = vpop.f32.mrb[0].mxu0
      %590 = vmatprep.mubr.f32.mxu0 0.0
      %v591 = vand.u32 %v318, 4294901760
      %v592 = vsub.f32 %v318, %v591
      %v593 = vand.u32 %v592, 4294901760
      %v594 = vsub.f32 %v592, %v593
      %v595 = vand.u32 %v594, 4294901760
      %596 = vmatmul.mubr.f32.gmra.mrb[0].mxu0 %v595
      %v597 = vpop.f32.mrb[0].mxu0
      %v598 = vadd.f32 %v266, %v597
      %v599 = vpop.f32.mrb[0].mxu0
      %600 = vmatprep.mubr.f32.mxu0 0.0
      %v601 = vand.u32 %v321, 4294901760
      %v602 = vsub.f32 %v321, %v601
      %v603 = vand.u32 %v602, 4294901760
      %v604 = vsub.f32 %v602, %v603
      %v605 = vand.u32 %v604, 4294901760
      %606 = vmatmul.mubr.f32.gmra.mrb[0].mxu0 %v605
      %v607 = vpop.f32.mrb[0].mxu0
      %v608 = vadd.f32 %v266, %v607
      %v609 = vpop.f32.mrb[0].mxu0
      %610 = vmatprep.mubr.f32.mxu0 0.0
      %v611 = vand.u32 %v324, 4294901760
      %v612 = vsub.f32 %v324, %v611
      %v613 = vand.u32 %v612, 4294901760
      %v614 = vsub.f32 %v612, %v613
      %v615 = vand.u32 %v614, 4294901760
      %616 = vmatmul.mubr.f32.gmra.mrb[0].mxu0 %v615
      %v617 = vpop.f32.mrb[0].mxu0
      %v618 = vadd.f32 %v266, %v617
      %v619 = vpop.f32.mrb[0].mxu0
      %620 = vmatprep.mubr.f32.mxu0 0.0
      %v621 = vand.u32 %v327, 4294901760
      %v622 = vsub.f32 %v327, %v621
      %v623 = vand.u32 %v622, 4294901760
      %v624 = vsub.f32 %v622, %v623
      %v625 = vand.u32 %v624, 4294901760
      %626 = vmatmul.mubr.f32.gmra.mrb[0].mxu0 %v625
      %v627 = vpop.f32.mrb[0].mxu0
      %v628 = vadd.f32 %v266, %v627
      %v629 = vpop.f32.mrb[0].mxu0
      %630 = vmatprep.mubr.f32.mxu0 0.0
      %v631 = vand.u32 %v330, 4294901760
      %v632 = vsub.f32 %v330, %v631
      %v633 = vand.u32 %v632, 4294901760
      %v634 = vsub.f32 %v632, %v633
      %v635 = vand.u32 %v634, 4294901760
      %636 = vmatmul.mubr.f32.gmra.mrb[0].mxu0 %v635
      %v637 = vpop.f32.mrb[0].mxu0
      %v638 = vadd.f32 %v266, %v637
      %v639 = vpop.f32.mrb[0].mxu0
      %640 = vmatprep.mubr.f32.mxu0 0.0
      %v641 = vand.u32 %v333, 4294901760
      %v642 = vsub.f32 %v333, %v641
      %v643 = vand.u32 %v642, 4294901760
      %v644 = vsub.f32 %v642, %v643
      %v645 = vand.u32 %v644, 4294901760
      %646 = vmatmul.mubr.f32.gmra.mrb[0].mxu0 %v645
      %v647 = vpop.f32.mrb[0].mxu0
      %v648 = vadd.f32 %v266, %v647
      %v649 = vpop.f32.mrb[0].mxu0
      %650 = vmatprep.mubr.f32.mxu0 0.0
      %v651 = vand.u32 %v336, 4294901760
      %v652 = vsub.f32 %v336, %v651
      %v653 = vand.u32 %v652, 4294901760
      %v654 = vsub.f32 %v652, %v653
      %v655 = vand.u32 %v654, 4294901760
      %656 = vmatmul.mubr.f32.gmra.mrb[0].mxu0 %v655
      %v657 = vpop.f32.mrb[0].mxu0
      %v658 = vadd.f32 %v266, %v657
      %v659 = vpop.f32.mrb[0].mxu0
      %660 = vmatprep.mubr.f32.mxu0 0.0
      %v661 = vand.u32 %v339, 4294901760
      %v662 = vsub.f32 %v339, %v661
      %v663 = vand.u32 %v662, 4294901760
      %v664 = vsub.f32 %v662, %v663
      %v665 = vand.u32 %v664, 4294901760
      %666 = vmatmul.mubr.f32.gmra.mrb[0].mxu0 %v665
      %v667 = vpop.f32.mrb[0].mxu0
      %v668 = vadd.f32 %v266, %v667
      %v669 = vpop.f32.mrb[0].mxu0
      %670 = vmatprep.mubr.f32.mxu0 0.0
      %v671 = vand.u32 %v342, 4294901760
      %v672 = vsub.f32 %v342, %v671
      %v673 = vand.u32 %v672, 4294901760
      %v674 = vsub.f32 %v672, %v673
      %v675 = vand.u32 %v674, 4294901760
      %676 = vmatmul.mubr.f32.gmra.mrb[0].mxu0 %v675
      %v677 = vpop.f32.mrb[0].mxu0
      %v678 = vadd.f32 %v266, %v677
      %v679 = vpop.f32.mrb[0].mxu0
      %680 = vmatprep.mubr.f32.mxu0 0.0
      %v681 = vand.u32 %v345, 4294901760
      %v682 = vsub.f32 %v345, %v681
      %v683 = vand.u32 %v682, 4294901760
      %v684 = vsub.f32 %v682, %v683
      %v685 = vand.u32 %v684, 4294901760
      %686 = vmatmul.mubr.f32.gmra.mrb[0].mxu0 %v685
      %v687 = vpop.f32.mrb[0].mxu0
      %v688 = vadd.f32 %v266, %v687
      %v689 = vpop.f32.mrb[0].mxu0
      %690 = vmatprep.mubr.f32.mxu0 0.0
      %v691 = vand.u32 %v348, 4294901760
      %v692 = vsub.f32 %v348, %v691
      %v693 = vand.u32 %v692, 4294901760
      %v694 = vsub.f32 %v692, %v693
      %v695 = vand.u32 %v694, 4294901760
      %696 = vmatmul.mubr.f32.gmra.mrb[0].mxu0 %v695
      %v697 = vpop.f32.mrb[0].mxu0
      %v698 = vadd.f32 %v266, %v697
      %v699 = vpop.f32.mrb[0].mxu0
      %700 = vmatprep.mubr.f32.mxu0 0.0
      %v701 = vand.u32 %v351, 4294901760
      %v702 = vsub.f32 %v351, %v701
      %v703 = vand.u32 %v702, 4294901760
      %v704 = vsub.f32 %v702, %v703
      %v705 = vand.u32 %v704, 4294901760
      %706 = vmatmul.mubr.f32.gmra.mrb[0].mxu0 %v705
      %v707 = vpop.f32.mrb[0].mxu0
      %v708 = vadd.f32 %v266, %v707
      %v709 = vpop.f32.mrb[0].mxu0
      %710 = vmatprep.mubr.f32.mxu0 0.0
      %v711 = vand.u32 %v354, 4294901760
      %v712 = vsub.f32 %v354, %v711
      %v713 = vand.u32 %v712, 4294901760
      %v714 = vsub.f32 %v712, %v713
      %v715 = vand.u32 %v714, 4294901760
      %716 = vmatmul.mubr.f32.gmra.mrb[0].mxu0 %v715
      %v717 = vpop.f32.mrb[0].mxu0
      %v718 = vadd.f32 %v266, %v717
      %v719 = vpop.f32.mrb[0].mxu0
      %720 = vmatprep.mubr.f32.mxu0 0.0
      %v721 = vand.u32 %v357, 4294901760
      %v722 = vsub.f32 %v357, %v721
      %v723 = vand.u32 %v722, 4294901760
      %v724 = vsub.f32 %v722, %v723
      %v725 = vand.u32 %v724, 4294901760
      %726 = vmatmul.mubr.f32.gmra.mrb[0].mxu0 %v725
      %v727 = vpop.f32.mrb[0].mxu0
      %v728 = vadd.f32 %v266, %v727
      %v729 = vpop.f32.mrb[0].mxu0
      %730 = vmatprep.mubr.f32.mxu0 0.0
      %v731 = vand.u32 %v360, 4294901760
      %v732 = vsub.f32 %v360, %v731
      %v733 = vand.u32 %v732, 4294901760
      %v734 = vsub.f32 %v732, %v733
      %v735 = vand.u32 %v734, 4294901760
      %736 = vmatmul.mubr.f32.gmra.mrb[0].mxu0 %v735
      %v737 = vpop.f32.mrb[0].mxu0
      %v738 = vadd.f32 %v266, %v737
      %v739 = vpop.f32.mrb[0].mxu0
      %740 = vmatprep.mubr.f32.mxu0 0.0
      %v741 = vand.u32 %v363, 4294901760
      %v742 = vsub.f32 %v363, %v741
      %v743 = vand.u32 %v742, 4294901760
      %v744 = vsub.f32 %v742, %v743
      %v745 = vand.u32 %v744, 4294901760
      %746 = vmatmul.mubr.f32.gmra.mrb[0].mxu0 %v745
      %v747 = vpop.f32.mrb[0].mxu0
      %v748 = vadd.f32 %v266, %v747
      %v749 = vpop.f32.mrb[0].mxu0
      %750 = vdwg.mxu0
      %751 = vmatprep.subr.mxu0 0.0
      %v752 = vand.u32 %v260, 4294901760
      %v753 = vsub.f32 %v260, %v752
      %v754 = vand.u32 %v753, 4294901760
      %v755 = vsub.f32 %v753, %v754
      %v756 = vand.u32 %v755, 4294901760
      %757 = vmatpush1.msra.mxu0 %v756
      %758 = vmatprep.subr.mxu0 0.0
      %759 = vmatpush1.msra.mxu0 0.0
      %760 = vmatprep.subr.mxu0 0.0
      %761 = vmatpush1.msra.mxu0 0.0
      %762 = vmatprep.subr.mxu0 0.0
      %763 = vmatpush1.msra.mxu0 0.0
      %764 = vmatprep.subr.mxu0 0.0
      %765 = vmatpush1.msra.mxu0 0.0
      %766 = vmatprep.subr.mxu0 0.0
      %767 = vmatpush1.msra.mxu0 0.0
      %768 = vmatprep.subr.mxu0 0.0
      %769 = vmatpush1.msra.mxu0 0.0
      %770 = vmatprep.subr.mxu0 0.0
      %771 = vmatpush1.msra.mxu0 0.0
      %772 = vmatprep.subr.mxu0 0.0
      %773 = vmatpush1.msra.mxu0 0.0
      %774 = vmatprep.subr.mxu0 0.0
      %775 = vmatpush1.msra.mxu0 0.0
      %776 = vmatprep.subr.mxu0 0.0
      %777 = vmatpush1.msra.mxu0 0.0
      %778 = vmatprep.subr.mxu0 0.0
      %779 = vmatpush1.msra.mxu0 0.0
      %780 = vmatprep.subr.mxu0 0.0
      %781 = vmatpush1.msra.mxu0 0.0
      %782 = vmatprep.subr.mxu0 0.0
      %783 = vmatpush1.msra.mxu0 0.0
      %784 = vmatprep.subr.mxu0 0.0
      %785 = vmatpush1.msra.mxu0 0.0
      %786 = vmatprep.subr.mxu0 0.0
      %787 = vmatpush1.msra.mxu0 0.0
      %788 = vmatprep.subr.mxu0 0.0
      %789 = vmatpush1.msra.mxu0 0.0
      %790 = vmatprep.subr.mxu0 0.0
      %791 = vmatpush1.msra.mxu0 0.0
      %792 = vmatprep.subr.mxu0 0.0
      %793 = vmatpush1.msra.mxu0 0.0
      %794 = vmatprep.subr.mxu0 0.0
      %795 = vmatpush1.msra.mxu0 0.0
      %796 = vmatprep.subr.mxu0 0.0
      %797 = vmatpush1.msra.mxu0 0.0
      %798 = vmatprep.subr.mxu0 0.0
      %799 = vmatpush1.msra.mxu0 0.0
      %800 = vmatprep.subr.mxu0 0.0
      %801 = vmatpush1.msra.mxu0 0.0
      %802 = vmatprep.subr.mxu0 0.0
      %803 = vmatpush1.msra.mxu0 0.0
      %804 = vmatprep.subr.mxu0 0.0
      %805 = vmatpush1.msra.mxu0 0.0
      %806 = vmatprep.subr.mxu0 0.0
      %807 = vmatpush1.msra.mxu0 0.0
      %808 = vmatprep.subr.mxu0 0.0
      %809 = vmatpush1.msra.mxu0 0.0
      %810 = vmatprep.subr.mxu0 0.0
      %811 = vmatpush1.msra.mxu0 0.0
      %812 = vmatprep.subr.mxu0 0.0
      %813 = vmatpush1.msra.mxu0 0.0
      %814 = vmatprep.subr.mxu0 0.0
      %815 = vmatpush1.msra.mxu0 0.0
      %816 = vmatprep.subr.mxu0 0.0
      %817 = vmatpush1.msra.mxu0 0.0
      %818 = vmatprep.subr.mxu0 0.0
      %819 = vmatpush1.msra.mxu0 0.0
      %820 = vmatprep.mubr.f32.mxu0 0.0
      %v821 = vand.u32 %v270, 4294901760
      %822 = vmatmul.mubr.f32.gmra.mrb[0].mxu0 %v821
      %v823 = vpop.f32.mrb[0].mxu0
      %v824 = vadd.f32 %v438, %v823
      %v825 = vpop.f32.mrb[0].mxu0
      %826 = vmatprep.mubr.f32.mxu0 0.0
      %v827 = vand.u32 %v273, 4294901760
      %828 = vmatmul.mubr.f32.gmra.mrb[0].mxu0 %v827
      %v829 = vpop.f32.mrb[0].mxu0
      %v830 = vadd.f32 %v448, %v829
      %v831 = vpop.f32.mrb[0].mxu0
      %832 = vmatprep.mubr.f32.mxu0 0.0
      %v833 = vand.u32 %v276, 4294901760
      %834 = vmatmul.mubr.f32.gmra.mrb[0].mxu0 %v833
      %v835 = vpop.f32.mrb[0].mxu0
      %v836 = vadd.f32 %v458, %v835
      %v837 = vpop.f32.mrb[0].mxu0
      %838 = vmatprep.mubr.f32.mxu0 0.0
      %v839 = vand.u32 %v279, 4294901760
      %840 = vmatmul.mubr.f32.gmra.mrb[0].mxu0 %v839
      %v841 = vpop.f32.mrb[0].mxu0
      %v842 = vadd.f32 %v468, %v841
      %v843 = vpop.f32.mrb[0].mxu0
      %844 = vmatprep.mubr.f32.mxu0 0.0
      %v845 = vand.u32 %v282, 4294901760
      %846 = vmatmul.mubr.f32.gmra.mrb[0].mxu0 %v845
      %v847 = vpop.f32.mrb[0].mxu0
      %v848 = vadd.f32 %v478, %v847
      %v849 = vpop.f32.mrb[0].mxu0
      %850 = vmatprep.mubr.f32.mxu0 0.0
      %v851 = vand.u32 %v285, 4294901760
      %852 = vmatmul.mubr.f32.gmra.mrb[0].mxu0 %v851
      %v853 = vpop.f32.mrb[0].mxu0
      %v854 = vadd.f32 %v488, %v853
      %v855 = vpop.f32.mrb[0].mxu0
      %856 = vmatprep.mubr.f32.mxu0 0.0
      %v857 = vand.u32 %v288, 4294901760
      %858 = vmatmul.mubr.f32.gmra.mrb[0].mxu0 %v857
      %v859 = vpop.f32.mrb[0].mxu0
      %v860 = vadd.f32 %v498, %v859
      %v861 = vpop.f32.mrb[0].mxu0
      %862 = vmatprep.mubr.f32.mxu0 0.0
      %v863 = vand.u32 %v291, 4294901760
      %864 = vmatmul.mubr.f32.gmra.mrb[0].mxu0 %v863
      %v865 = vpop.f32.mrb[0].mxu0
      %v866 = vadd.f32 %v508, %v865
      %v867 = vpop.f32.mrb[0].mxu0
      %868 = vmatprep.mubr.f32.mxu0 0.0
      %v869 = vand.u32 %v294, 4294901760
      %870 = vmatmul.mubr.f32.gmra.mrb[0].mxu0 %v869
      %v871 = vpop.f32.mrb[0].mxu0
      %v872 = vadd.f32 %v518, %v871
      %v873 = vpop.f32.mrb[0].mxu0
      %874 = vmatprep.mubr.f32.mxu0 0.0
      %v875 = vand.u32 %v297, 4294901760
      %876 = vmatmul.mubr.f32.gmra.mrb[0].mxu0 %v875
      %v877 = vpop.f32.mrb[0].mxu0
      %v878 = vadd.f32 %v528, %v877
      %v879 = vpop.f32.mrb[0].mxu0
      %880 = vmatprep.mubr.f32.mxu0 0.0
      %v881 = vand.u32 %v300, 4294901760
      %882 = vmatmul.mubr.f32.gmra.mrb[0].mxu0 %v881
      %v883 = vpop.f32.mrb[0].mxu0
      %v884 = vadd.f32 %v538, %v883
      %v885 = vpop.f32.mrb[0].mxu0
      %886 = vmatprep.mubr.f32.mxu0 0.0
      %v887 = vand.u32 %v303, 4294901760
      %888 = vmatmul.mubr.f32.gmra.mrb[0].mxu0 %v887
      %v889 = vpop.f32.mrb[0].mxu0
      %v890 = vadd.f32 %v548, %v889
      %v891 = vpop.f32.mrb[0].mxu0
      %892 = vmatprep.mubr.f32.mxu0 0.0
      %v893 = vand.u32 %v306, 4294901760
      %894 = vmatmul.mubr.f32.gmra.mrb[0].mxu0 %v893
      %v895 = vpop.f32.mrb[0].mxu0
      %v896 = vadd.f32 %v558, %v895
      %v897 = vpop.f32.mrb[0].mxu0
      %898 = vmatprep.mubr.f32.mxu0 0.0
      %v899 = vand.u32 %v309, 4294901760
      %900 = vmatmul.mubr.f32.gmra.mrb[0].mxu0 %v899
      %v901 = vpop.f32.mrb[0].mxu0
      %v902 = vadd.f32 %v568, %v901
      %v903 = vpop.f32.mrb[0].mxu0
      %904 = vmatprep.mubr.f32.mxu0 0.0
      %v905 = vand.u32 %v312, 4294901760
      %906 = vmatmul.mubr.f32.gmra.mrb[0].mxu0 %v905
      %v907 = vpop.f32.mrb[0].mxu0
      %v908 = vadd.f32 %v578, %v907
      %v909 = vpop.f32.mrb[0].mxu0
      %910 = vmatprep.mubr.f32.mxu0 0.0
      %v911 = vand.u32 %v315, 4294901760
      %912 = vmatmul.mubr.f32.gmra.mrb[0].mxu0 %v911
      %v913 = vpop.f32.mrb[0].mxu0
      %v914 = vadd.f32 %v588, %v913
      %v915 = vpop.f32.mrb[0].mxu0
      %916 = vmatprep.mubr.f32.mxu0 0.0
      %v917 = vand.u32 %v318, 4294901760
      %918 = vmatmul.mubr.f32.gmra.mrb[0].mxu0 %v917
      %v919 = vpop.f32.mrb[0].mxu0
      %v920 = vadd.f32 %v598, %v919
      %v921 = vpop.f32.mrb[0].mxu0
      %922 = vmatprep.mubr.f32.mxu0 0.0
      %v923 = vand.u32 %v321, 4294901760
      %924 = vmatmul.mubr.f32.gmra.mrb[0].mxu0 %v923
      %v925 = vpop.f32.mrb[0].mxu0
      %v926 = vadd.f32 %v608, %v925
      %v927 = vpop.f32.mrb[0].mxu0
      %928 = vmatprep.mubr.f32.mxu0 0.0
      %v929 = vand.u32 %v324, 4294901760
      %930 = vmatmul.mubr.f32.gmra.mrb[0].mxu0 %v929
      %v931 = vpop.f32.mrb[0].mxu0
      %v932 = vadd.f32 %v618, %v931
      %v933 = vpop.f32.mrb[0].mxu0
      %934 = vmatprep.mubr.f32.mxu0 0.0
      %v935 = vand.u32 %v327, 4294901760
      %936 = vmatmul.mubr.f32.gmra.mrb[0].mxu0 %v935
      %v937 = vpop.f32.mrb[0].mxu0
      %v938 = vadd.f32 %v628, %v937
      %v939 = vpop.f32.mrb[0].mxu0
      %940 = vmatprep.mubr.f32.mxu0 0.0
      %v941 = vand.u32 %v330, 4294901760
      %942 = vmatmul.mubr.f32.gmra.mrb[0].mxu0 %v941
      %v943 = vpop.f32.mrb[0].mxu0
      %v944 = vadd.f32 %v638, %v943
      %v945 = vpop.f32.mrb[0].mxu0
      %946 = vmatprep.mubr.f32.mxu0 0.0
      %v947 = vand.u32 %v333, 4294901760
      %948 = vmatmul.mubr.f32.gmra.mrb[0].mxu0 %v947
      %v949 = vpop.f32.mrb[0].mxu0
      %v950 = vadd.f32 %v648, %v949
      %v951 = vpop.f32.mrb[0].mxu0
      %952 = vmatprep.mubr.f32.mxu0 0.0
      %v953 = vand.u32 %v336, 4294901760
      %954 = vmatmul.mubr.f32.gmra.mrb[0].mxu0 %v953
      %v955 = vpop.f32.mrb[0].mxu0
      %v956 = vadd.f32 %v658, %v955
      %v957 = vpop.f32.mrb[0].mxu0
      %958 = vmatprep.mubr.f32.mxu0 0.0
      %v959 = vand.u32 %v339, 4294901760
      %960 = vmatmul.mubr.f32.gmra.mrb[0].mxu0 %v959
      %v961 = vpop.f32.mrb[0].mxu0
      %v962 = vadd.f32 %v668, %v961
      %v963 = vpop.f32.mrb[0].mxu0
      %964 = vmatprep.mubr.f32.mxu0 0.0
      %v965 = vand.u32 %v342, 4294901760
      %966 = vmatmul.mubr.f32.gmra.mrb[0].mxu0 %v965
      %v967 = vpop.f32.mrb[0].mxu0
      %v968 = vadd.f32 %v678, %v967
      %v969 = vpop.f32.mrb[0].mxu0
      %970 = vmatprep.mubr.f32.mxu0 0.0
      %v971 = vand.u32 %v345, 4294901760
      %972 = vmatmul.mubr.f32.gmra.mrb[0].mxu0 %v971
      %v973 = vpop.f32.mrb[0].mxu0
      %v974 = vadd.f32 %v688, %v973
      %v975 = vpop.f32.mrb[0].mxu0
      %976 = vmatprep.mubr.f32.mxu0 0.0
      %v977 = vand.u32 %v348, 4294901760
      %978 = vmatmul.mubr.f32.gmra.mrb[0].mxu0 %v977
      %v979 = vpop.f32.mrb[0].mxu0
      %v980 = vadd.f32 %v698, %v979
      %v981 = vpop.f32.mrb[0].mxu0
      %982 = vmatprep.mubr.f32.mxu0 0.0
      %v983 = vand.u32 %v351, 4294901760
      %984 = vmatmul.mubr.f32.gmra.mrb[0].mxu0 %v983
      %v985 = vpop.f32.mrb[0].mxu0
      %v986 = vadd.f32 %v708, %v985
      %v987 = vpop.f32.mrb[0].mxu0
      %988 = vmatprep.mubr.f32.mxu0 0.0
      %v989 = vand.u32 %v354, 4294901760
      %990 = vmatmul.mubr.f32.gmra.mrb[0].mxu0 %v989
      %v991 = vpop.f32.mrb[0].mxu0
      %v992 = vadd.f32 %v718, %v991
      %v993 = vpop.f32.mrb[0].mxu0
      %994 = vmatprep.mubr.f32.mxu0 0.0
      %v995 = vand.u32 %v357, 4294901760
      %996 = vmatmul.mubr.f32.gmra.mrb[0].mxu0 %v995
      %v997 = vpop.f32.mrb[0].mxu0
      %v998 = vadd.f32 %v728, %v997
      %v999 = vpop.f32.mrb[0].mxu0
      %1000 = vmatprep.mubr.f32.mxu0 0.0
      %v1001 = vand.u32 %v360, 4294901760
      %1002 = vmatmul.mubr.f32.gmra.mrb[0].mxu0 %v1001
      %v1003 = vpop.f32.mrb[0].mxu0
      %v1004 = vadd.f32 %v738, %v1003
      %v1005 = vpop.f32.mrb[0].mxu0
      %1006 = vmatprep.mubr.f32.mxu0 0.0
      %v1007 = vand.u32 %v363, 4294901760
      %1008 = vmatmul.mubr.f32.gmra.mrb[0].mxu0 %v1007
      %v1009 = vpop.f32.mrb[0].mxu0
      %v1010 = vadd.f32 %v748, %v1009
      %v1011 = vpop.f32.mrb[0].mxu0
      %1012 = vdwg.mxu0
      %1013 = vmatprep.subr.mxu0 0.0
      %v1014 = vand.u32 %v260, 4294901760
      %v1015 = vsub.f32 %v260, %v1014
      %1016 = vmatpush1.msra.mxu0 %v1015
      %1017 = vmatprep.subr.mxu0 0.0
      %1018 = vmatpush1.msra.mxu0 0.0
      %1019 = vmatprep.subr.mxu0 0.0
      %1020 = vmatpush1.msra.mxu0 0.0
      %1021 = vmatprep.subr.mxu0 0.0
      %1022 = vmatpush1.msra.mxu0 0.0
      %1023 = vmatprep.subr.mxu0 0.0
      %1024 = vmatpush1.msra.mxu0 0.0
      %1025 = vmatprep.subr.mxu0 0.0
      %1026 = vmatpush1.msra.mxu0 0.0
      %1027 = vmatprep.subr.mxu0 0.0
      %1028 = vmatpush1.msra.mxu0 0.0
      %1029 = vmatprep.subr.mxu0 0.0
      %1030 = vmatpush1.msra.mxu0 0.0
      %1031 = vmatprep.subr.mxu0 0.0
      %1032 = vmatpush1.msra.mxu0 0.0
      %1033 = vmatprep.subr.mxu0 0.0
      %1034 = vmatpush1.msra.mxu0 0.0
      %1035 = vmatprep.subr.mxu0 0.0
      %1036 = vmatpush1.msra.mxu0 0.0
      %1037 = vmatprep.subr.mxu0 0.0
      %1038 = vmatpush1.msra.mxu0 0.0
      %1039 = vmatprep.subr.mxu0 0.0
      %1040 = vmatpush1.msra.mxu0 0.0
      %1041 = vmatprep.subr.mxu0 0.0
      %1042 = vmatpush1.msra.mxu0 0.0
      %1043 = vmatprep.subr.mxu0 0.0
      %1044 = vmatpush1.msra.mxu0 0.0
      %1045 = vmatprep.subr.mxu0 0.0
      %1046 = vmatpush1.msra.mxu0 0.0
      %1047 = vmatprep.subr.mxu0 0.0
      %1048 = vmatpush1.msra.mxu0 0.0
      %1049 = vmatprep.subr.mxu0 0.0
      %1050 = vmatpush1.msra.mxu0 0.0
      %1051 = vmatprep.subr.mxu0 0.0
      %1052 = vmatpush1.msra.mxu0 0.0
      %1053 = vmatprep.subr.mxu0 0.0
      %1054 = vmatpush1.msra.mxu0 0.0
      %1055 = vmatprep.subr.mxu0 0.0
      %1056 = vmatpush1.msra.mxu0 0.0
      %1057 = vmatprep.subr.mxu0 0.0
      %1058 = vmatpush1.msra.mxu0 0.0
      %1059 = vmatprep.subr.mxu0 0.0
      %1060 = vmatpush1.msra.mxu0 0.0
      %1061 = vmatprep.subr.mxu0 0.0
      %1062 = vmatpush1.msra.mxu0 0.0
      %1063 = vmatprep.subr.mxu0 0.0
      %1064 = vmatpush1.msra.mxu0 0.0
      %1065 = vmatprep.subr.mxu0 0.0
      %1066 = vmatpush1.msra.mxu0 0.0
      %1067 = vmatprep.subr.mxu0 0.0
      %1068 = vmatpush1.msra.mxu0 0.0
      %1069 = vmatprep.subr.mxu0 0.0
      %1070 = vmatpush1.msra.mxu0 0.0
      %1071 = vmatprep.subr.mxu0 0.0
      %1072 = vmatpush1.msra.mxu0 0.0
      %1073 = vmatprep.subr.mxu0 0.0
      %1074 = vmatpush1.msra.mxu0 0.0
      %1075 = vmatprep.subr.mxu0 0.0
      %1076 = vmatpush1.msra.mxu0 0.0
      %1077 = vmatprep.subr.mxu0 0.0
      %1078 = vmatpush1.msra.mxu0 0.0
      %1079 = vmatprep.mubr.f32.mxu0 0.0
      %v1080 = vand.u32 %v270, 4294901760
      %v1081 = vsub.f32 %v270, %v1080
      %1082 = vmatmul.mubr.f32.gmra.mrb[0].mxu0 %v1081
      %v1083 = vpop.f32.mrb[0].mxu0
      %v1084 = vadd.f32 %v824, %v1083
      %v1085 = vpop.f32.mrb[0].mxu0
      %1086 = vmatprep.mubr.f32.mxu0 0.0
      %v1087 = vand.u32 %v273, 4294901760
      %v1088 = vsub.f32 %v273, %v1087
      %1089 = vmatmul.mubr.f32.gmra.mrb[0].mxu0 %v1088
      %v1090 = vpop.f32.mrb[0].mxu0
      %v1091 = vadd.f32 %v830, %v1090
      %v1092 = vpop.f32.mrb[0].mxu0
      %1093 = vmatprep.mubr.f32.mxu0 0.0
      %v1094 = vand.u32 %v276, 4294901760
      %v1095 = vsub.f32 %v276, %v1094
      %1096 = vmatmul.mubr.f32.gmra.mrb[0].mxu0 %v1095
      %v1097 = vpop.f32.mrb[0].mxu0
      %v1098 = vadd.f32 %v836, %v1097
      %v1099 = vpop.f32.mrb[0].mxu0
      %1100 = vmatprep.mubr.f32.mxu0 0.0
      %v1101 = vand.u32 %v279, 4294901760
      %v1102 = vsub.f32 %v279, %v1101
      %1103 = vmatmul.mubr.f32.gmra.mrb[0].mxu0 %v1102
      %v1104 = vpop.f32.mrb[0].mxu0
      %v1105 = vadd.f32 %v842, %v1104
      %v1106 = vpop.f32.mrb[0].mxu0
      %1107 = vmatprep.mubr.f32.mxu0 0.0
      %v1108 = vand.u32 %v282, 4294901760
      %v1109 = vsub.f32 %v282, %v1108
      %1110 = vmatmul.mubr.f32.gmra.mrb[0].mxu0 %v1109
      %v1111 = vpop.f32.mrb[0].mxu0
      %v1112 = vadd.f32 %v848, %v1111
      %v1113 = vpop.f32.mrb[0].mxu0
      %1114 = vmatprep.mubr.f32.mxu0 0.0
      %v1115 = vand.u32 %v285, 4294901760
      %v1116 = vsub.f32 %v285, %v1115
      %1117 = vmatmul.mubr.f32.gmra.mrb[0].mxu0 %v1116
      %v1118 = vpop.f32.mrb[0].mxu0
      %v1119 = vadd.f32 %v854, %v1118
      %v1120 = vpop.f32.mrb[0].mxu0
      %1121 = vmatprep.mubr.f32.mxu0 0.0
      %v1122 = vand.u32 %v288, 4294901760
      %v1123 = vsub.f32 %v288, %v1122
      %1124 = vmatmul.mubr.f32.gmra.mrb[0].mxu0 %v1123
      %v1125 = vpop.f32.mrb[0].mxu0
      %v1126 = vadd.f32 %v860, %v1125
      %v1127 = vpop.f32.mrb[0].mxu0
      %1128 = vmatprep.mubr.f32.mxu0 0.0
      %v1129 = vand.u32 %v291, 4294901760
      %v1130 = vsub.f32 %v291, %v1129
      %1131 = vmatmul.mubr.f32.gmra.mrb[0].mxu0 %v1130
      %v1132 = vpop.f32.mrb[0].mxu0
      %v1133 = vadd.f32 %v866, %v1132
      %v1134 = vpop.f32.mrb[0].mxu0
      %1135 = vmatprep.mubr.f32.mxu0 0.0
      %v1136 = vand.u32 %v294, 4294901760
      %v1137 = vsub.f32 %v294, %v1136
      %1138 = vmatmul.mubr.f32.gmra.mrb[0].mxu0 %v1137
      %v1139 = vpop.f32.mrb[0].mxu0
      %v1140 = vadd.f32 %v872, %v1139
      %v1141 = vpop.f32.mrb[0].mxu0
      %1142 = vmatprep.mubr.f32.mxu0 0.0
      %v1143 = vand.u32 %v297, 4294901760
      %v1144 = vsub.f32 %v297, %v1143
      %1145 = vmatmul.mubr.f32.gmra.mrb[0].mxu0 %v1144
      %v1146 = vpop.f32.mrb[0].mxu0
      %v1147 = vadd.f32 %v878, %v1146
      %v1148 = vpop.f32.mrb[0].mxu0
      %1149 = vmatprep.mubr.f32.mxu0 0.0
      %v1150 = vand.u32 %v300, 4294901760
      %v1151 = vsub.f32 %v300, %v1150
      %1152 = vmatmul.mubr.f32.gmra.mrb[0].mxu0 %v1151
      %v1153 = vpop.f32.mrb[0].mxu0
      %v1154 = vadd.f32 %v884, %v1153
      %v1155 = vpop.f32.mrb[0].mxu0
      %1156 = vmatprep.mubr.f32.mxu0 0.0
      %v1157 = vand.u32 %v303, 4294901760
      %v1158 = vsub.f32 %v303, %v1157
      %1159 = vmatmul.mubr.f32.gmra.mrb[0].mxu0 %v1158
      %v1160 = vpop.f32.mrb[0].mxu0
      %v1161 = vadd.f32 %v890, %v1160
      %v1162 = vpop.f32.mrb[0].mxu0
      %1163 = vmatprep.mubr.f32.mxu0 0.0
      %v1164 = vand.u32 %v306, 4294901760
      %v1165 = vsub.f32 %v306, %v1164
      %1166 = vmatmul.mubr.f32.gmra.mrb[0].mxu0 %v1165
      %v1167 = vpop.f32.mrb[0].mxu0
      %v1168 = vadd.f32 %v896, %v1167
      %v1169 = vpop.f32.mrb[0].mxu0
      %1170 = vmatprep.mubr.f32.mxu0 0.0
      %v1171 = vand.u32 %v309, 4294901760
      %v1172 = vsub.f32 %v309, %v1171
      %1173 = vmatmul.mubr.f32.gmra.mrb[0].mxu0 %v1172
      %v1174 = vpop.f32.mrb[0].mxu0
      %v1175 = vadd.f32 %v902, %v1174
      %v1176 = vpop.f32.mrb[0].mxu0
      %1177 = vmatprep.mubr.f32.mxu0 0.0
      %v1178 = vand.u32 %v312, 4294901760
      %v1179 = vsub.f32 %v312, %v1178
      %1180 = vmatmul.mubr.f32.gmra.mrb[0].mxu0 %v1179
      %v1181 = vpop.f32.mrb[0].mxu0
      %v1182 = vadd.f32 %v908, %v1181
      %v1183 = vpop.f32.mrb[0].mxu0
      %1184 = vmatprep.mubr.f32.mxu0 0.0
      %v1185 = vand.u32 %v315, 4294901760
      %v1186 = vsub.f32 %v315, %v1185
      %1187 = vmatmul.mubr.f32.gmra.mrb[0].mxu0 %v1186
      %v1188 = vpop.f32.mrb[0].mxu0
      %v1189 = vadd.f32 %v914, %v1188
      %v1190 = vpop.f32.mrb[0].mxu0
      %1191 = vmatprep.mubr.f32.mxu0 0.0
      %v1192 = vand.u32 %v318, 4294901760
      %v1193 = vsub.f32 %v318, %v1192
      %1194 = vmatmul.mubr.f32.gmra.mrb[0].mxu0 %v1193
      %v1195 = vpop.f32.mrb[0].mxu0
      %v1196 = vadd.f32 %v920, %v1195
      %v1197 = vpop.f32.mrb[0].mxu0
      %1198 = vmatprep.mubr.f32.mxu0 0.0
      %v1199 = vand.u32 %v321, 4294901760
      %v1200 = vsub.f32 %v321, %v1199
      %1201 = vmatmul.mubr.f32.gmra.mrb[0].mxu0 %v1200
      %v1202 = vpop.f32.mrb[0].mxu0
      %v1203 = vadd.f32 %v926, %v1202
      %v1204 = vpop.f32.mrb[0].mxu0
      %1205 = vmatprep.mubr.f32.mxu0 0.0
      %v1206 = vand.u32 %v324, 4294901760
      %v1207 = vsub.f32 %v324, %v1206
      %1208 = vmatmul.mubr.f32.gmra.mrb[0].mxu0 %v1207
      %v1209 = vpop.f32.mrb[0].mxu0
      %v1210 = vadd.f32 %v932, %v1209
      %v1211 = vpop.f32.mrb[0].mxu0
      %1212 = vmatprep.mubr.f32.mxu0 0.0
      %v1213 = vand.u32 %v327, 4294901760
      %v1214 = vsub.f32 %v327, %v1213
      %1215 = vmatmul.mubr.f32.gmra.mrb[0].mxu0 %v1214
      %v1216 = vpop.f32.mrb[0].mxu0
      %v1217 = vadd.f32 %v938, %v1216
      %v1218 = vpop.f32.mrb[0].mxu0
      %1219 = vmatprep.mubr.f32.mxu0 0.0
      %v1220 = vand.u32 %v330, 4294901760
      %v1221 = vsub.f32 %v330, %v1220
      %1222 = vmatmul.mubr.f32.gmra.mrb[0].mxu0 %v1221
      %v1223 = vpop.f32.mrb[0].mxu0
      %v1224 = vadd.f32 %v944, %v1223
      %v1225 = vpop.f32.mrb[0].mxu0
      %1226 = vmatprep.mubr.f32.mxu0 0.0
      %v1227 = vand.u32 %v333, 4294901760
      %v1228 = vsub.f32 %v333, %v1227
      %1229 = vmatmul.mubr.f32.gmra.mrb[0].mxu0 %v1228
      %v1230 = vpop.f32.mrb[0].mxu0
      %v1231 = vadd.f32 %v950, %v1230
      %v1232 = vpop.f32.mrb[0].mxu0
      %1233 = vmatprep.mubr.f32.mxu0 0.0
      %v1234 = vand.u32 %v336, 4294901760
      %v1235 = vsub.f32 %v336, %v1234
      %1236 = vmatmul.mubr.f32.gmra.mrb[0].mxu0 %v1235
      %v1237 = vpop.f32.mrb[0].mxu0
      %v1238 = vadd.f32 %v956, %v1237
      %v1239 = vpop.f32.mrb[0].mxu0
      %1240 = vmatprep.mubr.f32.mxu0 0.0
      %v1241 = vand.u32 %v339, 4294901760
      %v1242 = vsub.f32 %v339, %v1241
      %1243 = vmatmul.mubr.f32.gmra.mrb[0].mxu0 %v1242
      %v1244 = vpop.f32.mrb[0].mxu0
      %v1245 = vadd.f32 %v962, %v1244
      %v1246 = vpop.f32.mrb[0].mxu0
      %1247 = vmatprep.mubr.f32.mxu0 0.0
      %v1248 = vand.u32 %v342, 4294901760
      %v1249 = vsub.f32 %v342, %v1248
      %1250 = vmatmul.mubr.f32.gmra.mrb[0].mxu0 %v1249
      %v1251 = vpop.f32.mrb[0].mxu0
      %v1252 = vadd.f32 %v968, %v1251
      %v1253 = vpop.f32.mrb[0].mxu0
      %1254 = vmatprep.mubr.f32.mxu0 0.0
      %v1255 = vand.u32 %v345, 4294901760
      %v1256 = vsub.f32 %v345, %v1255
      %1257 = vmatmul.mubr.f32.gmra.mrb[0].mxu0 %v1256
      %v1258 = vpop.f32.mrb[0].mxu0
      %v1259 = vadd.f32 %v974, %v1258
      %v1260 = vpop.f32.mrb[0].mxu0
      %1261 = vmatprep.mubr.f32.mxu0 0.0
      %v1262 = vand.u32 %v348, 4294901760
      %v1263 = vsub.f32 %v348, %v1262
      %1264 = vmatmul.mubr.f32.gmra.mrb[0].mxu0 %v1263
      %v1265 = vpop.f32.mrb[0].mxu0
      %v1266 = vadd.f32 %v980, %v1265
      %v1267 = vpop.f32.mrb[0].mxu0
      %1268 = vmatprep.mubr.f32.mxu0 0.0
      %v1269 = vand.u32 %v351, 4294901760
      %v1270 = vsub.f32 %v351, %v1269
      %1271 = vmatmul.mubr.f32.gmra.mrb[0].mxu0 %v1270
      %v1272 = vpop.f32.mrb[0].mxu0
      %v1273 = vadd.f32 %v986, %v1272
      %v1274 = vpop.f32.mrb[0].mxu0
      %1275 = vmatprep.mubr.f32.mxu0 0.0
      %v1276 = vand.u32 %v354, 4294901760
      %v1277 = vsub.f32 %v354, %v1276
      %1278 = vmatmul.mubr.f32.gmra.mrb[0].mxu0 %v1277
      %v1279 = vpop.f32.mrb[0].mxu0
      %v1280 = vadd.f32 %v992, %v1279
      %v1281 = vpop.f32.mrb[0].mxu0
      %1282 = vmatprep.mubr.f32.mxu0 0.0
      %v1283 = vand.u32 %v357, 4294901760
      %v1284 = vsub.f32 %v357, %v1283
      %1285 = vmatmul.mubr.f32.gmra.mrb[0].mxu0 %v1284
      %v1286 = vpop.f32.mrb[0].mxu0
      %v1287 = vadd.f32 %v998, %v1286
      %v1288 = vpop.f32.mrb[0].mxu0
      %1289 = vmatprep.mubr.f32.mxu0 0.0
      %v1290 = vand.u32 %v360, 4294901760
      %v1291 = vsub.f32 %v360, %v1290
      %1292 = vmatmul.mubr.f32.gmra.mrb[0].mxu0 %v1291
      %v1293 = vpop.f32.mrb[0].mxu0
      %v1294 = vadd.f32 %v1004, %v1293
      %v1295 = vpop.f32.mrb[0].mxu0
      %1296 = vmatprep.mubr.f32.mxu0 0.0
      %v1297 = vand.u32 %v363, 4294901760
      %v1298 = vsub.f32 %v363, %v1297
      %1299 = vmatmul.mubr.f32.gmra.mrb[0].mxu0 %v1298
      %v1300 = vpop.f32.mrb[0].mxu0
      %v1301 = vadd.f32 %v1010, %v1300
      %v1302 = vpop.f32.mrb[0].mxu0
      %1303 = vdwg.mxu0
      %1304 = vmatprep.subr.mxu0 0.0
      %v1305 = vand.u32 %v260, 4294901760
      %1306 = vmatpush1.msra.mxu0 %v1305
      %1307 = vmatprep.subr.mxu0 0.0
      %1308 = vmatpush1.msra.mxu0 0.0
      %1309 = vmatprep.subr.mxu0 0.0
      %1310 = vmatpush1.msra.mxu0 0.0
      %1311 = vmatprep.subr.mxu0 0.0
      %1312 = vmatpush1.msra.mxu0 0.0
      %1313 = vmatprep.subr.mxu0 0.0
      %1314 = vmatpush1.msra.mxu0 0.0
      %1315 = vmatprep.subr.mxu0 0.0
      %1316 = vmatpush1.msra.mxu0 0.0
      %1317 = vmatprep.subr.mxu0 0.0
      %1318 = vmatpush1.msra.mxu0 0.0
      %1319 = vmatprep.subr.mxu0 0.0
      %1320 = vmatpush1.msra.mxu0 0.0
      %1321 = vmatprep.subr.mxu0 0.0
      %1322 = vmatpush1.msra.mxu0 0.0
      %1323 = vmatprep.subr.mxu0 0.0
      %1324 = vmatpush1.msra.mxu0 0.0
      %1325 = vmatprep.subr.mxu0 0.0
      %1326 = vmatpush1.msra.mxu0 0.0
      %1327 = vmatprep.subr.mxu0 0.0
      %1328 = vmatpush1.msra.mxu0 0.0
      %1329 = vmatprep.subr.mxu0 0.0
      %1330 = vmatpush1.msra.mxu0 0.0
      %1331 = vmatprep.subr.mxu0 0.0
      %1332 = vmatpush1.msra.mxu0 0.0
      %1333 = vmatprep.subr.mxu0 0.0
      %1334 = vmatpush1.msra.mxu0 0.0
      %1335 = vmatprep.subr.mxu0 0.0
      %1336 = vmatpush1.msra.mxu0 0.0
      %1337 = vmatprep.subr.mxu0 0.0
      %1338 = vmatpush1.msra.mxu0 0.0
      %1339 = vmatprep.subr.mxu0 0.0
      %1340 = vmatpush1.msra.mxu0 0.0
      %1341 = vmatprep.subr.mxu0 0.0
      %1342 = vmatpush1.msra.mxu0 0.0
      %1343 = vmatprep.subr.mxu0 0.0
      %1344 = vmatpush1.msra.mxu0 0.0
      %1345 = vmatprep.subr.mxu0 0.0
      %1346 = vmatpush1.msra.mxu0 0.0
      %1347 = vmatprep.subr.mxu0 0.0
      %1348 = vmatpush1.msra.mxu0 0.0
      %1349 = vmatprep.subr.mxu0 0.0
      %1350 = vmatpush1.msra.mxu0 0.0
      %1351 = vmatprep.subr.mxu0 0.0
      %1352 = vmatpush1.msra.mxu0 0.0
      %1353 = vmatprep.subr.mxu0 0.0
      %1354 = vmatpush1.msra.mxu0 0.0
      %1355 = vmatprep.subr.mxu0 0.0
      %1356 = vmatpush1.msra.mxu0 0.0
      %1357 = vmatprep.subr.mxu0 0.0
      %1358 = vmatpush1.msra.mxu0 0.0
      %1359 = vmatprep.subr.mxu0 0.0
      %1360 = vmatpush1.msra.mxu0 0.0
      %1361 = vmatprep.subr.mxu0 0.0
      %1362 = vmatpush1.msra.mxu0 0.0
      %1363 = vmatprep.subr.mxu0 0.0
      %1364 = vmatpush1.msra.mxu0 0.0
      %1365 = vmatprep.subr.mxu0 0.0
      %1366 = vmatpush1.msra.mxu0 0.0
      %1367 = vmatprep.subr.mxu0 0.0
      %1368 = vmatpush1.msra.mxu0 0.0
      %1369 = vmatprep.mubr.f32.mxu0 0.0
      %v1370 = vand.u32 %v270, 4294901760
      %v1371 = vsub.f32 %v270, %v1370
      %v1372 = vand.u32 %v1371, 4294901760
      %1373 = vmatmul.mubr.f32.gmra.mrb[0].mxu0 %v1372
      %v1374 = vpop.f32.mrb[0].mxu0
      %v1375 = vadd.f32 %v1084, %v1374
      %v1376 = vpop.f32.mrb[0].mxu0
      %1377 = vmatprep.mubr.f32.mxu0 0.0
      %v1378 = vand.u32 %v273, 4294901760
      %v1379 = vsub.f32 %v273, %v1378
      %v1380 = vand.u32 %v1379, 4294901760
      %1381 = vmatmul.mubr.f32.gmra.mrb[0].mxu0 %v1380
      %v1382 = vpop.f32.mrb[0].mxu0
      %v1383 = vadd.f32 %v1091, %v1382
      %v1384 = vpop.f32.mrb[0].mxu0
      %1385 = vmatprep.mubr.f32.mxu0 0.0
      %v1386 = vand.u32 %v276, 4294901760
      %v1387 = vsub.f32 %v276, %v1386
      %v1388 = vand.u32 %v1387, 4294901760
      %1389 = vmatmul.mubr.f32.gmra.mrb[0].mxu0 %v1388
      %v1390 = vpop.f32.mrb[0].mxu0
      %v1391 = vadd.f32 %v1098, %v1390
      %v1392 = vpop.f32.mrb[0].mxu0
      %1393 = vmatprep.mubr.f32.mxu0 0.0
      %v1394 = vand.u32 %v279, 4294901760
      %v1395 = vsub.f32 %v279, %v1394
      %v1396 = vand.u32 %v1395, 4294901760
      %1397 = vmatmul.mubr.f32.gmra.mrb[0].mxu0 %v1396
      %v1398 = vpop.f32.mrb[0].mxu0
      %v1399 = vadd.f32 %v1105, %v1398
      %v1400 = vpop.f32.mrb[0].mxu0
      %1401 = vmatprep.mubr.f32.mxu0 0.0
      %v1402 = vand.u32 %v282, 4294901760
      %v1403 = vsub.f32 %v282, %v1402
      %v1404 = vand.u32 %v1403, 4294901760
      %1405 = vmatmul.mubr.f32.gmra.mrb[0].mxu0 %v1404
      %v1406 = vpop.f32.mrb[0].mxu0
      %v1407 = vadd.f32 %v1112, %v1406
      %v1408 = vpop.f32.mrb[0].mxu0
      %1409 = vmatprep.mubr.f32.mxu0 0.0
      %v1410 = vand.u32 %v285, 4294901760
      %v1411 = vsub.f32 %v285, %v1410
      %v1412 = vand.u32 %v1411, 4294901760
      %1413 = vmatmul.mubr.f32.gmra.mrb[0].mxu0 %v1412
      %v1414 = vpop.f32.mrb[0].mxu0
      %v1415 = vadd.f32 %v1119, %v1414
      %v1416 = vpop.f32.mrb[0].mxu0
      %1417 = vmatprep.mubr.f32.mxu0 0.0
      %v1418 = vand.u32 %v288, 4294901760
      %v1419 = vsub.f32 %v288, %v1418
      %v1420 = vand.u32 %v1419, 4294901760
      %1421 = vmatmul.mubr.f32.gmra.mrb[0].mxu0 %v1420
      %v1422 = vpop.f32.mrb[0].mxu0
      %v1423 = vadd.f32 %v1126, %v1422
      %v1424 = vpop.f32.mrb[0].mxu0
      %1425 = vmatprep.mubr.f32.mxu0 0.0
      %v1426 = vand.u32 %v291, 4294901760
      %v1427 = vsub.f32 %v291, %v1426
      %v1428 = vand.u32 %v1427, 4294901760
      %1429 = vmatmul.mubr.f32.gmra.mrb[0].mxu0 %v1428
      %v1430 = vpop.f32.mrb[0].mxu0
      %v1431 = vadd.f32 %v1133, %v1430
      %v1432 = vpop.f32.mrb[0].mxu0
      %1433 = vmatprep.mubr.f32.mxu0 0.0
      %v1434 = vand.u32 %v294, 4294901760
      %v1435 = vsub.f32 %v294, %v1434
      %v1436 = vand.u32 %v1435, 4294901760
      %1437 = vmatmul.mubr.f32.gmra.mrb[0].mxu0 %v1436
      %v1438 = vpop.f32.mrb[0].mxu0
      %v1439 = vadd.f32 %v1140, %v1438
      %v1440 = vpop.f32.mrb[0].mxu0
      %1441 = vmatprep.mubr.f32.mxu0 0.0
      %v1442 = vand.u32 %v297, 4294901760
      %v1443 = vsub.f32 %v297, %v1442
      %v1444 = vand.u32 %v1443, 4294901760
      %1445 = vmatmul.mubr.f32.gmra.mrb[0].mxu0 %v1444
      %v1446 = vpop.f32.mrb[0].mxu0
      %v1447 = vadd.f32 %v1147, %v1446
      %v1448 = vpop.f32.mrb[0].mxu0
      %1449 = vmatprep.mubr.f32.mxu0 0.0
      %v1450 = vand.u32 %v300, 4294901760
      %v1451 = vsub.f32 %v300, %v1450
      %v1452 = vand.u32 %v1451, 4294901760
      %1453 = vmatmul.mubr.f32.gmra.mrb[0].mxu0 %v1452
      %v1454 = vpop.f32.mrb[0].mxu0
      %v1455 = vadd.f32 %v1154, %v1454
      %v1456 = vpop.f32.mrb[0].mxu0
      %1457 = vmatprep.mubr.f32.mxu0 0.0
      %v1458 = vand.u32 %v303, 4294901760
      %v1459 = vsub.f32 %v303, %v1458
      %v1460 = vand.u32 %v1459, 4294901760
      %1461 = vmatmul.mubr.f32.gmra.mrb[0].mxu0 %v1460
      %v1462 = vpop.f32.mrb[0].mxu0
      %v1463 = vadd.f32 %v1161, %v1462
      %v1464 = vpop.f32.mrb[0].mxu0
      %1465 = vmatprep.mubr.f32.mxu0 0.0
      %v1466 = vand.u32 %v306, 4294901760
      %v1467 = vsub.f32 %v306, %v1466
      %v1468 = vand.u32 %v1467, 4294901760
      %1469 = vmatmul.mubr.f32.gmra.mrb[0].mxu0 %v1468
      %v1470 = vpop.f32.mrb[0].mxu0
      %v1471 = vadd.f32 %v1168, %v1470
      %v1472 = vpop.f32.mrb[0].mxu0
      %1473 = vmatprep.mubr.f32.mxu0 0.0
      %v1474 = vand.u32 %v309, 4294901760
      %v1475 = vsub.f32 %v309, %v1474
      %v1476 = vand.u32 %v1475, 4294901760
      %1477 = vmatmul.mubr.f32.gmra.mrb[0].mxu0 %v1476
      %v1478 = vpop.f32.mrb[0].mxu0
      %v1479 = vadd.f32 %v1175, %v1478
      %v1480 = vpop.f32.mrb[0].mxu0
      %1481 = vmatprep.mubr.f32.mxu0 0.0
      %v1482 = vand.u32 %v312, 4294901760
      %v1483 = vsub.f32 %v312, %v1482
      %v1484 = vand.u32 %v1483, 4294901760
      %1485 = vmatmul.mubr.f32.gmra.mrb[0].mxu0 %v1484
      %v1486 = vpop.f32.mrb[0].mxu0
      %v1487 = vadd.f32 %v1182, %v1486
      %v1488 = vpop.f32.mrb[0].mxu0
      %1489 = vmatprep.mubr.f32.mxu0 0.0
      %v1490 = vand.u32 %v315, 4294901760
      %v1491 = vsub.f32 %v315, %v1490
      %v1492 = vand.u32 %v1491, 4294901760
      %1493 = vmatmul.mubr.f32.gmra.mrb[0].mxu0 %v1492
      %v1494 = vpop.f32.mrb[0].mxu0
      %v1495 = vadd.f32 %v1189, %v1494
      %v1496 = vpop.f32.mrb[0].mxu0
      %1497 = vmatprep.mubr.f32.mxu0 0.0
      %v1498 = vand.u32 %v318, 4294901760
      %v1499 = vsub.f32 %v318, %v1498
      %v1500 = vand.u32 %v1499, 4294901760
      %1501 = vmatmul.mubr.f32.gmra.mrb[0].mxu0 %v1500
      %v1502 = vpop.f32.mrb[0].mxu0
      %v1503 = vadd.f32 %v1196, %v1502
      %v1504 = vpop.f32.mrb[0].mxu0
      %1505 = vmatprep.mubr.f32.mxu0 0.0
      %v1506 = vand.u32 %v321, 4294901760
      %v1507 = vsub.f32 %v321, %v1506
      %v1508 = vand.u32 %v1507, 4294901760
      %1509 = vmatmul.mubr.f32.gmra.mrb[0].mxu0 %v1508
      %v1510 = vpop.f32.mrb[0].mxu0
      %v1511 = vadd.f32 %v1203, %v1510
      %v1512 = vpop.f32.mrb[0].mxu0
      %1513 = vmatprep.mubr.f32.mxu0 0.0
      %v1514 = vand.u32 %v324, 4294901760
      %v1515 = vsub.f32 %v324, %v1514
      %v1516 = vand.u32 %v1515, 4294901760
      %1517 = vmatmul.mubr.f32.gmra.mrb[0].mxu0 %v1516
      %v1518 = vpop.f32.mrb[0].mxu0
      %v1519 = vadd.f32 %v1210, %v1518
      %v1520 = vpop.f32.mrb[0].mxu0
      %1521 = vmatprep.mubr.f32.mxu0 0.0
      %v1522 = vand.u32 %v327, 4294901760
      %v1523 = vsub.f32 %v327, %v1522
      %v1524 = vand.u32 %v1523, 4294901760
      %1525 = vmatmul.mubr.f32.gmra.mrb[0].mxu0 %v1524
      %v1526 = vpop.f32.mrb[0].mxu0
      %v1527 = vadd.f32 %v1217, %v1526
      %v1528 = vpop.f32.mrb[0].mxu0
      %1529 = vmatprep.mubr.f32.mxu0 0.0
      %v1530 = vand.u32 %v330, 4294901760
      %v1531 = vsub.f32 %v330, %v1530
      %v1532 = vand.u32 %v1531, 4294901760
      %1533 = vmatmul.mubr.f32.gmra.mrb[0].mxu0 %v1532
      %v1534 = vpop.f32.mrb[0].mxu0
      %v1535 = vadd.f32 %v1224, %v1534
      %v1536 = vpop.f32.mrb[0].mxu0
      %1537 = vmatprep.mubr.f32.mxu0 0.0
      %v1538 = vand.u32 %v333, 4294901760
      %v1539 = vsub.f32 %v333, %v1538
      %v1540 = vand.u32 %v1539, 4294901760
      %1541 = vmatmul.mubr.f32.gmra.mrb[0].mxu0 %v1540
      %v1542 = vpop.f32.mrb[0].mxu0
      %v1543 = vadd.f32 %v1231, %v1542
      %v1544 = vpop.f32.mrb[0].mxu0
      %1545 = vmatprep.mubr.f32.mxu0 0.0
      %v1546 = vand.u32 %v336, 4294901760
      %v1547 = vsub.f32 %v336, %v1546
      %v1548 = vand.u32 %v1547, 4294901760
      %1549 = vmatmul.mubr.f32.gmra.mrb[0].mxu0 %v1548
      %v1550 = vpop.f32.mrb[0].mxu0
      %v1551 = vadd.f32 %v1238, %v1550
      %v1552 = vpop.f32.mrb[0].mxu0
      %1553 = vmatprep.mubr.f32.mxu0 0.0
      %v1554 = vand.u32 %v339, 4294901760
      %v1555 = vsub.f32 %v339, %v1554
      %v1556 = vand.u32 %v1555, 4294901760
      %1557 = vmatmul.mubr.f32.gmra.mrb[0].mxu0 %v1556
      %v1558 = vpop.f32.mrb[0].mxu0
      %v1559 = vadd.f32 %v1245, %v1558
      %v1560 = vpop.f32.mrb[0].mxu0
      %1561 = vmatprep.mubr.f32.mxu0 0.0
      %v1562 = vand.u32 %v342, 4294901760
      %v1563 = vsub.f32 %v342, %v1562
      %v1564 = vand.u32 %v1563, 4294901760
      %1565 = vmatmul.mubr.f32.gmra.mrb[0].mxu0 %v1564
      %v1566 = vpop.f32.mrb[0].mxu0
      %v1567 = vadd.f32 %v1252, %v1566
      %v1568 = vpop.f32.mrb[0].mxu0
      %1569 = vmatprep.mubr.f32.mxu0 0.0
      %v1570 = vand.u32 %v345, 4294901760
      %v1571 = vsub.f32 %v345, %v1570
      %v1572 = vand.u32 %v1571, 4294901760
      %1573 = vmatmul.mubr.f32.gmra.mrb[0].mxu0 %v1572
      %v1574 = vpop.f32.mrb[0].mxu0
      %v1575 = vadd.f32 %v1259, %v1574
      %v1576 = vpop.f32.mrb[0].mxu0
      %1577 = vmatprep.mubr.f32.mxu0 0.0
      %v1578 = vand.u32 %v348, 4294901760
      %v1579 = vsub.f32 %v348, %v1578
      %v1580 = vand.u32 %v1579, 4294901760
      %1581 = vmatmul.mubr.f32.gmra.mrb[0].mxu0 %v1580
      %v1582 = vpop.f32.mrb[0].mxu0
      %v1583 = vadd.f32 %v1266, %v1582
      %v1584 = vpop.f32.mrb[0].mxu0
      %1585 = vmatprep.mubr.f32.mxu0 0.0
      %v1586 = vand.u32 %v351, 4294901760
      %v1587 = vsub.f32 %v351, %v1586
      %v1588 = vand.u32 %v1587, 4294901760
      %1589 = vmatmul.mubr.f32.gmra.mrb[0].mxu0 %v1588
      %v1590 = vpop.f32.mrb[0].mxu0
      %v1591 = vadd.f32 %v1273, %v1590
      %v1592 = vpop.f32.mrb[0].mxu0
      %1593 = vmatprep.mubr.f32.mxu0 0.0
      %v1594 = vand.u32 %v354, 4294901760
      %v1595 = vsub.f32 %v354, %v1594
      %v1596 = vand.u32 %v1595, 4294901760
      %1597 = vmatmul.mubr.f32.gmra.mrb[0].mxu0 %v1596
      %v1598 = vpop.f32.mrb[0].mxu0
      %v1599 = vadd.f32 %v1280, %v1598
      %v1600 = vpop.f32.mrb[0].mxu0
      %1601 = vmatprep.mubr.f32.mxu0 0.0
      %v1602 = vand.u32 %v357, 4294901760
      %v1603 = vsub.f32 %v357, %v1602
      %v1604 = vand.u32 %v1603, 4294901760
      %1605 = vmatmul.mubr.f32.gmra.mrb[0].mxu0 %v1604
      %v1606 = vpop.f32.mrb[0].mxu0
      %v1607 = vadd.f32 %v1287, %v1606
      %v1608 = vpop.f32.mrb[0].mxu0
      %1609 = vmatprep.mubr.f32.mxu0 0.0
      %v1610 = vand.u32 %v360, 4294901760
      %v1611 = vsub.f32 %v360, %v1610
      %v1612 = vand.u32 %v1611, 4294901760
      %1613 = vmatmul.mubr.f32.gmra.mrb[0].mxu0 %v1612
      %v1614 = vpop.f32.mrb[0].mxu0
      %v1615 = vadd.f32 %v1294, %v1614
      %v1616 = vpop.f32.mrb[0].mxu0
      %1617 = vmatprep.mubr.f32.mxu0 0.0
      %v1618 = vand.u32 %v363, 4294901760
      %v1619 = vsub.f32 %v363, %v1618
      %v1620 = vand.u32 %v1619, 4294901760
      %1621 = vmatmul.mubr.f32.gmra.mrb[0].mxu0 %v1620
      %v1622 = vpop.f32.mrb[0].mxu0
      %v1623 = vadd.f32 %v1301, %v1622
      %v1624 = vpop.f32.mrb[0].mxu0
      %1625 = vdwg.mxu0
      %1626 = vmatprep.subr.mxu0 0.0
      %v1627 = vand.u32 %v260, 4294901760
      %v1628 = vsub.f32 %v260, %v1627
      %v1629 = vand.u32 %v1628, 4294901760
      %1630 = vmatpush1.msra.mxu0 %v1629
      %1631 = vmatprep.subr.mxu0 0.0
      %1632 = vmatpush1.msra.mxu0 0.0
      %1633 = vmatprep.subr.mxu0 0.0
      %1634 = vmatpush1.msra.mxu0 0.0
      %1635 = vmatprep.subr.mxu0 0.0
      %1636 = vmatpush1.msra.mxu0 0.0
      %1637 = vmatprep.subr.mxu0 0.0
      %1638 = vmatpush1.msra.mxu0 0.0
      %1639 = vmatprep.subr.mxu0 0.0
      %1640 = vmatpush1.msra.mxu0 0.0
      %1641 = vmatprep.subr.mxu0 0.0
      %1642 = vmatpush1.msra.mxu0 0.0
      %1643 = vmatprep.subr.mxu0 0.0
      %1644 = vmatpush1.msra.mxu0 0.0
      %1645 = vmatprep.subr.mxu0 0.0
      %1646 = vmatpush1.msra.mxu0 0.0
      %1647 = vmatprep.subr.mxu0 0.0
      %1648 = vmatpush1.msra.mxu0 0.0
      %1649 = vmatprep.subr.mxu0 0.0
      %1650 = vmatpush1.msra.mxu0 0.0
      %1651 = vmatprep.subr.mxu0 0.0
      %1652 = vmatpush1.msra.mxu0 0.0
      %1653 = vmatprep.subr.mxu0 0.0
      %1654 = vmatpush1.msra.mxu0 0.0
      %1655 = vmatprep.subr.mxu0 0.0
      %1656 = vmatpush1.msra.mxu0 0.0
      %1657 = vmatprep.subr.mxu0 0.0
      %1658 = vmatpush1.msra.mxu0 0.0
      %1659 = vmatprep.subr.mxu0 0.0
      %1660 = vmatpush1.msra.mxu0 0.0
      %1661 = vmatprep.subr.mxu0 0.0
      %1662 = vmatpush1.msra.mxu0 0.0
      %1663 = vmatprep.subr.mxu0 0.0
      %1664 = vmatpush1.msra.mxu0 0.0
      %1665 = vmatprep.subr.mxu0 0.0
      %1666 = vmatpush1.msra.mxu0 0.0
      %1667 = vmatprep.subr.mxu0 0.0
      %1668 = vmatpush1.msra.mxu0 0.0
      %1669 = vmatprep.subr.mxu0 0.0
      %1670 = vmatpush1.msra.mxu0 0.0
      %1671 = vmatprep.subr.mxu0 0.0
      %1672 = vmatpush1.msra.mxu0 0.0
      %1673 = vmatprep.subr.mxu0 0.0
      %1674 = vmatpush1.msra.mxu0 0.0
      %1675 = vmatprep.subr.mxu0 0.0
      %1676 = vmatpush1.msra.mxu0 0.0
      %1677 = vmatprep.subr.mxu0 0.0
      %1678 = vmatpush1.msra.mxu0 0.0
      %1679 = vmatprep.subr.mxu0 0.0
      %1680 = vmatpush1.msra.mxu0 0.0
      %1681 = vmatprep.subr.mxu0 0.0
      %1682 = vmatpush1.msra.mxu0 0.0
      %1683 = vmatprep.subr.mxu0 0.0
      %1684 = vmatpush1.msra.mxu0 0.0
      %1685 = vmatprep.subr.mxu0 0.0
      %1686 = vmatpush1.msra.mxu0 0.0
      %1687 = vmatprep.subr.mxu0 0.0
      %1688 = vmatpush1.msra.mxu0 0.0
      %1689 = vmatprep.subr.mxu0 0.0
      %1690 = vmatpush1.msra.mxu0 0.0
      %1691 = vmatprep.subr.mxu0 0.0
      %1692 = vmatpush1.msra.mxu0 0.0
      %1693 = vmatprep.mubr.f32.mxu0 0.0
      %v1694 = vand.u32 %v270, 4294901760
      %1695 = vmatmul.mubr.f32.gmra.mrb[0].mxu0 %v1694
      %v1696 = vpop.f32.mrb[0].mxu0
      %v1697 = vadd.f32 %v1375, %v1696
      %v1698 = vpop.f32.mrb[0].mxu0
      %1699 = vmatprep.mubr.f32.mxu0 0.0
      %v1700 = vand.u32 %v273, 4294901760
      %1701 = vmatmul.mubr.f32.gmra.mrb[0].mxu0 %v1700
      %v1702 = vpop.f32.mrb[0].mxu0
      %v1703 = vadd.f32 %v1383, %v1702
      %v1704 = vpop.f32.mrb[0].mxu0
      %1705 = vmatprep.mubr.f32.mxu0 0.0
      %v1706 = vand.u32 %v276, 4294901760
      %1707 = vmatmul.mubr.f32.gmra.mrb[0].mxu0 %v1706
      %v1708 = vpop.f32.mrb[0].mxu0
      %v1709 = vadd.f32 %v1391, %v1708
      %v1710 = vpop.f32.mrb[0].mxu0
      %1711 = vmatprep.mubr.f32.mxu0 0.0
      %v1712 = vand.u32 %v279, 4294901760
      %1713 = vmatmul.mubr.f32.gmra.mrb[0].mxu0 %v1712
      %v1714 = vpop.f32.mrb[0].mxu0
      %v1715 = vadd.f32 %v1399, %v1714
      %v1716 = vpop.f32.mrb[0].mxu0
      %1717 = vmatprep.mubr.f32.mxu0 0.0
      %v1718 = vand.u32 %v282, 4294901760
      %1719 = vmatmul.mubr.f32.gmra.mrb[0].mxu0 %v1718
      %v1720 = vpop.f32.mrb[0].mxu0
      %v1721 = vadd.f32 %v1407, %v1720
      %v1722 = vpop.f32.mrb[0].mxu0
      %1723 = vmatprep.mubr.f32.mxu0 0.0
      %v1724 = vand.u32 %v285, 4294901760
      %1725 = vmatmul.mubr.f32.gmra.mrb[0].mxu0 %v1724
      %v1726 = vpop.f32.mrb[0].mxu0
      %v1727 = vadd.f32 %v1415, %v1726
      %v1728 = vpop.f32.mrb[0].mxu0
      %1729 = vmatprep.mubr.f32.mxu0 0.0
      %v1730 = vand.u32 %v288, 4294901760
      %1731 = vmatmul.mubr.f32.gmra.mrb[0].mxu0 %v1730
      %v1732 = vpop.f32.mrb[0].mxu0
      %v1733 = vadd.f32 %v1423, %v1732
      %v1734 = vpop.f32.mrb[0].mxu0
      %1735 = vmatprep.mubr.f32.mxu0 0.0
      %v1736 = vand.u32 %v291, 4294901760
      %1737 = vmatmul.mubr.f32.gmra.mrb[0].mxu0 %v1736
      %v1738 = vpop.f32.mrb[0].mxu0
      %v1739 = vadd.f32 %v1431, %v1738
      %v1740 = vpop.f32.mrb[0].mxu0
      %1741 = vmatprep.mubr.f32.mxu0 0.0
      %v1742 = vand.u32 %v294, 4294901760
      %1743 = vmatmul.mubr.f32.gmra.mrb[0].mxu0 %v1742
      %v1744 = vpop.f32.mrb[0].mxu0
      %v1745 = vadd.f32 %v1439, %v1744
      %v1746 = vpop.f32.mrb[0].mxu0
      %1747 = vmatprep.mubr.f32.mxu0 0.0
      %v1748 = vand.u32 %v297, 4294901760
      %1749 = vmatmul.mubr.f32.gmra.mrb[0].mxu0 %v1748
      %v1750 = vpop.f32.mrb[0].mxu0
      %v1751 = vadd.f32 %v1447, %v1750
      %v1752 = vpop.f32.mrb[0].mxu0
      %1753 = vmatprep.mubr.f32.mxu0 0.0
      %v1754 = vand.u32 %v300, 4294901760
      %1755 = vmatmul.mubr.f32.gmra.mrb[0].mxu0 %v1754
      %v1756 = vpop.f32.mrb[0].mxu0
      %v1757 = vadd.f32 %v1455, %v1756
      %v1758 = vpop.f32.mrb[0].mxu0
      %1759 = vmatprep.mubr.f32.mxu0 0.0
      %v1760 = vand.u32 %v303, 4294901760
      %1761 = vmatmul.mubr.f32.gmra.mrb[0].mxu0 %v1760
      %v1762 = vpop.f32.mrb[0].mxu0
      %v1763 = vadd.f32 %v1463, %v1762
      %v1764 = vpop.f32.mrb[0].mxu0
      %1765 = vmatprep.mubr.f32.mxu0 0.0
      %v1766 = vand.u32 %v306, 4294901760
      %1767 = vmatmul.mubr.f32.gmra.mrb[0].mxu0 %v1766
      %v1768 = vpop.f32.mrb[0].mxu0
      %v1769 = vadd.f32 %v1471, %v1768
      %v1770 = vpop.f32.mrb[0].mxu0
      %1771 = vmatprep.mubr.f32.mxu0 0.0
      %v1772 = vand.u32 %v309, 4294901760
      %1773 = vmatmul.mubr.f32.gmra.mrb[0].mxu0 %v1772
      %v1774 = vpop.f32.mrb[0].mxu0
      %v1775 = vadd.f32 %v1479, %v1774
      %v1776 = vpop.f32.mrb[0].mxu0
      %1777 = vmatprep.mubr.f32.mxu0 0.0
      %v1778 = vand.u32 %v312, 4294901760
      %1779 = vmatmul.mubr.f32.gmra.mrb[0].mxu0 %v1778
      %v1780 = vpop.f32.mrb[0].mxu0
      %v1781 = vadd.f32 %v1487, %v1780
      %v1782 = vpop.f32.mrb[0].mxu0
      %1783 = vmatprep.mubr.f32.mxu0 0.0
      %v1784 = vand.u32 %v315, 4294901760
      %1785 = vmatmul.mubr.f32.gmra.mrb[0].mxu0 %v1784
      %v1786 = vpop.f32.mrb[0].mxu0
      %v1787 = vadd.f32 %v1495, %v1786
      %v1788 = vpop.f32.mrb[0].mxu0
      %1789 = vmatprep.mubr.f32.mxu0 0.0
      %v1790 = vand.u32 %v318, 4294901760
      %1791 = vmatmul.mubr.f32.gmra.mrb[0].mxu0 %v1790
      %v1792 = vpop.f32.mrb[0].mxu0
      %v1793 = vadd.f32 %v1503, %v1792
      %v1794 = vpop.f32.mrb[0].mxu0
      %1795 = vmatprep.mubr.f32.mxu0 0.0
      %v1796 = vand.u32 %v321, 4294901760
      %1797 = vmatmul.mubr.f32.gmra.mrb[0].mxu0 %v1796
      %v1798 = vpop.f32.mrb[0].mxu0
      %v1799 = vadd.f32 %v1511, %v1798
      %v1800 = vpop.f32.mrb[0].mxu0
      %1801 = vmatprep.mubr.f32.mxu0 0.0
      %v1802 = vand.u32 %v324, 4294901760
      %1803 = vmatmul.mubr.f32.gmra.mrb[0].mxu0 %v1802
      %v1804 = vpop.f32.mrb[0].mxu0
      %v1805 = vadd.f32 %v1519, %v1804
      %v1806 = vpop.f32.mrb[0].mxu0
      %1807 = vmatprep.mubr.f32.mxu0 0.0
      %v1808 = vand.u32 %v327, 4294901760
      %1809 = vmatmul.mubr.f32.gmra.mrb[0].mxu0 %v1808
      %v1810 = vpop.f32.mrb[0].mxu0
      %v1811 = vadd.f32 %v1527, %v1810
      %v1812 = vpop.f32.mrb[0].mxu0
      %1813 = vmatprep.mubr.f32.mxu0 0.0
      %v1814 = vand.u32 %v330, 4294901760
      %1815 = vmatmul.mubr.f32.gmra.mrb[0].mxu0 %v1814
      %v1816 = vpop.f32.mrb[0].mxu0
      %v1817 = vadd.f32 %v1535, %v1816
      %v1818 = vpop.f32.mrb[0].mxu0
      %1819 = vmatprep.mubr.f32.mxu0 0.0
      %v1820 = vand.u32 %v333, 4294901760
      %1821 = vmatmul.mubr.f32.gmra.mrb[0].mxu0 %v1820
      %v1822 = vpop.f32.mrb[0].mxu0
      %v1823 = vadd.f32 %v1543, %v1822
      %v1824 = vpop.f32.mrb[0].mxu0
      %1825 = vmatprep.mubr.f32.mxu0 0.0
      %v1826 = vand.u32 %v336, 4294901760
      %1827 = vmatmul.mubr.f32.gmra.mrb[0].mxu0 %v1826
      %v1828 = vpop.f32.mrb[0].mxu0
      %v1829 = vadd.f32 %v1551, %v1828
      %v1830 = vpop.f32.mrb[0].mxu0
      %1831 = vmatprep.mubr.f32.mxu0 0.0
      %v1832 = vand.u32 %v339, 4294901760
      %1833 = vmatmul.mubr.f32.gmra.mrb[0].mxu0 %v1832
      %v1834 = vpop.f32.mrb[0].mxu0
      %v1835 = vadd.f32 %v1559, %v1834
      %v1836 = vpop.f32.mrb[0].mxu0
      %1837 = vmatprep.mubr.f32.mxu0 0.0
      %v1838 = vand.u32 %v342, 4294901760
      %1839 = vmatmul.mubr.f32.gmra.mrb[0].mxu0 %v1838
      %v1840 = vpop.f32.mrb[0].mxu0
      %v1841 = vadd.f32 %v1567, %v1840
      %v1842 = vpop.f32.mrb[0].mxu0
      %1843 = vmatprep.mubr.f32.mxu0 0.0
      %v1844 = vand.u32 %v345, 4294901760
      %1845 = vmatmul.mubr.f32.gmra.mrb[0].mxu0 %v1844
      %v1846 = vpop.f32.mrb[0].mxu0
      %v1847 = vadd.f32 %v1575, %v1846
      %v1848 = vpop.f32.mrb[0].mxu0
      %1849 = vmatprep.mubr.f32.mxu0 0.0
      %v1850 = vand.u32 %v348, 4294901760
      %1851 = vmatmul.mubr.f32.gmra.mrb[0].mxu0 %v1850
      %v1852 = vpop.f32.mrb[0].mxu0
      %v1853 = vadd.f32 %v1583, %v1852
      %v1854 = vpop.f32.mrb[0].mxu0
      %1855 = vmatprep.mubr.f32.mxu0 0.0
      %v1856 = vand.u32 %v351, 4294901760
      %1857 = vmatmul.mubr.f32.gmra.mrb[0].mxu0 %v1856
      %v1858 = vpop.f32.mrb[0].mxu0
      %v1859 = vadd.f32 %v1591, %v1858
      %v1860 = vpop.f32.mrb[0].mxu0
      %1861 = vmatprep.mubr.f32.mxu0 0.0
      %v1862 = vand.u32 %v354, 4294901760
      %1863 = vmatmul.mubr.f32.gmra.mrb[0].mxu0 %v1862
      %v1864 = vpop.f32.mrb[0].mxu0
      %v1865 = vadd.f32 %v1599, %v1864
      %v1866 = vpop.f32.mrb[0].mxu0
      %1867 = vmatprep.mubr.f32.mxu0 0.0
      %v1868 = vand.u32 %v357, 4294901760
      %1869 = vmatmul.mubr.f32.gmra.mrb[0].mxu0 %v1868
      %v1870 = vpop.f32.mrb[0].mxu0
      %v1871 = vadd.f32 %v1607, %v1870
      %v1872 = vpop.f32.mrb[0].mxu0
      %1873 = vmatprep.mubr.f32.mxu0 0.0
      %v1874 = vand.u32 %v360, 4294901760
      %1875 = vmatmul.mubr.f32.gmra.mrb[0].mxu0 %v1874
      %v1876 = vpop.f32.mrb[0].mxu0
      %v1877 = vadd.f32 %v1615, %v1876
      %v1878 = vpop.f32.mrb[0].mxu0
      %1879 = vmatprep.mubr.f32.mxu0 0.0
      %v1880 = vand.u32 %v363, 4294901760
      %1881 = vmatmul.mubr.f32.gmra.mrb[0].mxu0 %v1880
      %v1882 = vpop.f32.mrb[0].mxu0
      %v1883 = vadd.f32 %v1623, %v1882
      %v1884 = vpop.f32.mrb[0].mxu0
      %1885 = vdwg.mxu0
      %1886 = vmatprep.subr.mxu0 0.0
      %v1887 = vand.u32 %v260, 4294901760
      %1888 = vmatpush1.msra.mxu0 %v1887
      %1889 = vmatprep.subr.mxu0 0.0
      %1890 = vmatpush1.msra.mxu0 0.0
      %1891 = vmatprep.subr.mxu0 0.0
      %1892 = vmatpush1.msra.mxu0 0.0
      %1893 = vmatprep.subr.mxu0 0.0
      %1894 = vmatpush1.msra.mxu0 0.0
      %1895 = vmatprep.subr.mxu0 0.0
      %1896 = vmatpush1.msra.mxu0 0.0
      %1897 = vmatprep.subr.mxu0 0.0
      %1898 = vmatpush1.msra.mxu0 0.0
      %1899 = vmatprep.subr.mxu0 0.0
      %1900 = vmatpush1.msra.mxu0 0.0
      %1901 = vmatprep.subr.mxu0 0.0
      %1902 = vmatpush1.msra.mxu0 0.0
      %1903 = vmatprep.subr.mxu0 0.0
      %1904 = vmatpush1.msra.mxu0 0.0
      %1905 = vmatprep.subr.mxu0 0.0
      %1906 = vmatpush1.msra.mxu0 0.0
      %1907 = vmatprep.subr.mxu0 0.0
      %1908 = vmatpush1.msra.mxu0 0.0
      %1909 = vmatprep.subr.mxu0 0.0
      %1910 = vmatpush1.msra.mxu0 0.0
      %1911 = vmatprep.subr.mxu0 0.0
      %1912 = vmatpush1.msra.mxu0 0.0
      %1913 = vmatprep.subr.mxu0 0.0
      %1914 = vmatpush1.msra.mxu0 0.0
      %1915 = vmatprep.subr.mxu0 0.0
      %1916 = vmatpush1.msra.mxu0 0.0
      %1917 = vmatprep.subr.mxu0 0.0
      %1918 = vmatpush1.msra.mxu0 0.0
      %1919 = vmatprep.subr.mxu0 0.0
      %1920 = vmatpush1.msra.mxu0 0.0
      %1921 = vmatprep.subr.mxu0 0.0
      %1922 = vmatpush1.msra.mxu0 0.0
      %1923 = vmatprep.subr.mxu0 0.0
      %1924 = vmatpush1.msra.mxu0 0.0
      %1925 = vmatprep.subr.mxu0 0.0
      %1926 = vmatpush1.msra.mxu0 0.0
      %1927 = vmatprep.subr.mxu0 0.0
      %1928 = vmatpush1.msra.mxu0 0.0
      %1929 = vmatprep.subr.mxu0 0.0
      %1930 = vmatpush1.msra.mxu0 0.0
      %1931 = vmatprep.subr.mxu0 0.0
      %1932 = vmatpush1.msra.mxu0 0.0
      %1933 = vmatprep.subr.mxu0 0.0
      %1934 = vmatpush1.msra.mxu0 0.0
      %1935 = vmatprep.subr.mxu0 0.0
      %1936 = vmatpush1.msra.mxu0 0.0
      %1937 = vmatprep.subr.mxu0 0.0
      %1938 = vmatpush1.msra.mxu0 0.0
      %1939 = vmatprep.subr.mxu0 0.0
      %1940 = vmatpush1.msra.mxu0 0.0
      %1941 = vmatprep.subr.mxu0 0.0
      %1942 = vmatpush1.msra.mxu0 0.0
      %1943 = vmatprep.subr.mxu0 0.0
      %1944 = vmatpush1.msra.mxu0 0.0
      %1945 = vmatprep.subr.mxu0 0.0
      %1946 = vmatpush1.msra.mxu0 0.0
      %1947 = vmatprep.subr.mxu0 0.0
      %1948 = vmatpush1.msra.mxu0 0.0
      %1949 = vmatprep.subr.mxu0 0.0
      %1950 = vmatpush1.msra.mxu0 0.0
      %1951 = vmatprep.mubr.f32.mxu0 0.0
      %v1952 = vand.u32 %v270, 4294901760
      %1953 = vmatmul.mubr.f32.gmra.mrb[0].mxu0 %v1952
      %v1954 = vpop.f32.mrb[0].mxu0
      %v1955 = vadd.f32 %v1697, %v1954
      %v1956 = vpop.f32.mrb[0].mxu0
      %1957 = vmatprep.mubr.f32.mxu0 0.0
      %v1958 = vand.u32 %v273, 4294901760
      %1959 = vmatmul.mubr.f32.gmra.mrb[0].mxu0 %v1958
      %v1960 = vpop.f32.mrb[0].mxu0
      %v1961 = vadd.f32 %v1703, %v1960
      %v1962 = vpop.f32.mrb[0].mxu0
      %1963 = vmatprep.mubr.f32.mxu0 0.0
      %v1964 = vand.u32 %v276, 4294901760
      %1965 = vmatmul.mubr.f32.gmra.mrb[0].mxu0 %v1964
      %v1966 = vpop.f32.mrb[0].mxu0
      %v1967 = vadd.f32 %v1709, %v1966
      %v1968 = vpop.f32.mrb[0].mxu0
      %1969 = vmatprep.mubr.f32.mxu0 0.0
      %v1970 = vand.u32 %v279, 4294901760
      %1971 = vmatmul.mubr.f32.gmra.mrb[0].mxu0 %v1970
      %v1972 = vpop.f32.mrb[0].mxu0
      %v1973 = vadd.f32 %v1715, %v1972
      %v1974 = vpop.f32.mrb[0].mxu0
      %1975 = vmatprep.mubr.f32.mxu0 0.0
      %v1976 = vand.u32 %v282, 4294901760
      %1977 = vmatmul.mubr.f32.gmra.mrb[0].mxu0 %v1976
      %v1978 = vpop.f32.mrb[0].mxu0
      %v1979 = vadd.f32 %v1721, %v1978
      %v1980 = vpop.f32.mrb[0].mxu0
      %1981 = vmatprep.mubr.f32.mxu0 0.0
      %v1982 = vand.u32 %v285, 4294901760
      %1983 = vmatmul.mubr.f32.gmra.mrb[0].mxu0 %v1982
      %v1984 = vpop.f32.mrb[0].mxu0
      %v1985 = vadd.f32 %v1727, %v1984
      %v1986 = vpop.f32.mrb[0].mxu0
      %1987 = vmatprep.mubr.f32.mxu0 0.0
      %v1988 = vand.u32 %v288, 4294901760
      %1989 = vmatmul.mubr.f32.gmra.mrb[0].mxu0 %v1988
      %v1990 = vpop.f32.mrb[0].mxu0
      %v1991 = vadd.f32 %v1733, %v1990
      %v1992 = vpop.f32.mrb[0].mxu0
      %1993 = vmatprep.mubr.f32.mxu0 0.0
      %v1994 = vand.u32 %v291, 4294901760
      %1995 = vmatmul.mubr.f32.gmra.mrb[0].mxu0 %v1994
      %v1996 = vpop.f32.mrb[0].mxu0
      %v1997 = vadd.f32 %v1739, %v1996
      %v1998 = vpop.f32.mrb[0].mxu0
      %1999 = vmatprep.mubr.f32.mxu0 0.0
      %v2000 = vand.u32 %v294, 4294901760
      %2001 = vmatmul.mubr.f32.gmra.mrb[0].mxu0 %v2000
      %v2002 = vpop.f32.mrb[0].mxu0
      %v2003 = vadd.f32 %v1745, %v2002
      %v2004 = vpop.f32.mrb[0].mxu0
      %2005 = vmatprep.mubr.f32.mxu0 0.0
      %v2006 = vand.u32 %v297, 4294901760
      %2007 = vmatmul.mubr.f32.gmra.mrb[0].mxu0 %v2006
      %v2008 = vpop.f32.mrb[0].mxu0
      %v2009 = vadd.f32 %v1751, %v2008
      %v2010 = vpop.f32.mrb[0].mxu0
      %2011 = vmatprep.mubr.f32.mxu0 0.0
      %v2012 = vand.u32 %v300, 4294901760
      %2013 = vmatmul.mubr.f32.gmra.mrb[0].mxu0 %v2012
      %v2014 = vpop.f32.mrb[0].mxu0
      %v2015 = vadd.f32 %v1757, %v2014
      %v2016 = vpop.f32.mrb[0].mxu0
      %2017 = vmatprep.mubr.f32.mxu0 0.0
      %v2018 = vand.u32 %v303, 4294901760
      %2019 = vmatmul.mubr.f32.gmra.mrb[0].mxu0 %v2018
      %v2020 = vpop.f32.mrb[0].mxu0
      %v2021 = vadd.f32 %v1763, %v2020
      %v2022 = vpop.f32.mrb[0].mxu0
      %2023 = vmatprep.mubr.f32.mxu0 0.0
      %v2024 = vand.u32 %v306, 4294901760
      %2025 = vmatmul.mubr.f32.gmra.mrb[0].mxu0 %v2024
      %v2026 = vpop.f32.mrb[0].mxu0
      %v2027 = vadd.f32 %v1769, %v2026
      %v2028 = vpop.f32.mrb[0].mxu0
      %2029 = vmatprep.mubr.f32.mxu0 0.0
      %v2030 = vand.u32 %v309, 4294901760
      %2031 = vmatmul.mubr.f32.gmra.mrb[0].mxu0 %v2030
      %v2032 = vpop.f32.mrb[0].mxu0
      %v2033 = vadd.f32 %v1775, %v2032
      %v2034 = vpop.f32.mrb[0].mxu0
      %2035 = vmatprep.mubr.f32.mxu0 0.0
      %v2036 = vand.u32 %v312, 4294901760
      %2037 = vmatmul.mubr.f32.gmra.mrb[0].mxu0 %v2036
      %v2038 = vpop.f32.mrb[0].mxu0
      %v2039 = vadd.f32 %v1781, %v2038
      %v2040 = vpop.f32.mrb[0].mxu0
      %2041 = vmatprep.mubr.f32.mxu0 0.0
      %v2042 = vand.u32 %v315, 4294901760
      %2043 = vmatmul.mubr.f32.gmra.mrb[0].mxu0 %v2042
      %v2044 = vpop.f32.mrb[0].mxu0
      %v2045 = vadd.f32 %v1787, %v2044
      %v2046 = vpop.f32.mrb[0].mxu0
      %2047 = vmatprep.mubr.f32.mxu0 0.0
      %v2048 = vand.u32 %v318, 4294901760
      %2049 = vmatmul.mubr.f32.gmra.mrb[0].mxu0 %v2048
      %v2050 = vpop.f32.mrb[0].mxu0
      %v2051 = vadd.f32 %v1793, %v2050
      %v2052 = vpop.f32.mrb[0].mxu0
      %2053 = vmatprep.mubr.f32.mxu0 0.0
      %v2054 = vand.u32 %v321, 4294901760
      %2055 = vmatmul.mubr.f32.gmra.mrb[0].mxu0 %v2054
      %v2056 = vpop.f32.mrb[0].mxu0
      %v2057 = vadd.f32 %v1799, %v2056
      %v2058 = vpop.f32.mrb[0].mxu0
      %2059 = vmatprep.mubr.f32.mxu0 0.0
      %v2060 = vand.u32 %v324, 4294901760
      %2061 = vmatmul.mubr.f32.gmra.mrb[0].mxu0 %v2060
      %v2062 = vpop.f32.mrb[0].mxu0
      %v2063 = vadd.f32 %v1805, %v2062
      %v2064 = vpop.f32.mrb[0].mxu0
      %2065 = vmatprep.mubr.f32.mxu0 0.0
      %v2066 = vand.u32 %v327, 4294901760
      %2067 = vmatmul.mubr.f32.gmra.mrb[0].mxu0 %v2066
      %v2068 = vpop.f32.mrb[0].mxu0
      %v2069 = vadd.f32 %v1811, %v2068
      %v2070 = vpop.f32.mrb[0].mxu0
      %2071 = vmatprep.mubr.f32.mxu0 0.0
      %v2072 = vand.u32 %v330, 4294901760
      %2073 = vmatmul.mubr.f32.gmra.mrb[0].mxu0 %v2072
      %v2074 = vpop.f32.mrb[0].mxu0
      %v2075 = vadd.f32 %v1817, %v2074
      %v2076 = vpop.f32.mrb[0].mxu0
      %2077 = vmatprep.mubr.f32.mxu0 0.0
      %v2078 = vand.u32 %v333, 4294901760
      %2079 = vmatmul.mubr.f32.gmra.mrb[0].mxu0 %v2078
      %v2080 = vpop.f32.mrb[0].mxu0
      %v2081 = vadd.f32 %v1823, %v2080
      %v2082 = vpop.f32.mrb[0].mxu0
      %2083 = vmatprep.mubr.f32.mxu0 0.0
      %v2084 = vand.u32 %v336, 4294901760
      %2085 = vmatmul.mubr.f32.gmra.mrb[0].mxu0 %v2084
      %v2086 = vpop.f32.mrb[0].mxu0
      %v2087 = vadd.f32 %v1829, %v2086
      %v2088 = vpop.f32.mrb[0].mxu0
      %2089 = vmatprep.mubr.f32.mxu0 0.0
      %v2090 = vand.u32 %v339, 4294901760
      %2091 = vmatmul.mubr.f32.gmra.mrb[0].mxu0 %v2090
      %v2092 = vpop.f32.mrb[0].mxu0
      %v2093 = vadd.f32 %v1835, %v2092
      %v2094 = vpop.f32.mrb[0].mxu0
      %2095 = vmatprep.mubr.f32.mxu0 0.0
      %v2096 = vand.u32 %v342, 4294901760
      %2097 = vmatmul.mubr.f32.gmra.mrb[0].mxu0 %v2096
      %v2098 = vpop.f32.mrb[0].mxu0
      %v2099 = vadd.f32 %v1841, %v2098
      %v2100 = vpop.f32.mrb[0].mxu0
      %2101 = vmatprep.mubr.f32.mxu0 0.0
      %v2102 = vand.u32 %v345, 4294901760
      %2103 = vmatmul.mubr.f32.gmra.mrb[0].mxu0 %v2102
      %v2104 = vpop.f32.mrb[0].mxu0
      %v2105 = vadd.f32 %v1847, %v2104
      %v2106 = vpop.f32.mrb[0].mxu0
      %2107 = vmatprep.mubr.f32.mxu0 0.0
      %v2108 = vand.u32 %v348, 4294901760
      %2109 = vmatmul.mubr.f32.gmra.mrb[0].mxu0 %v2108
      %v2110 = vpop.f32.mrb[0].mxu0
      %v2111 = vadd.f32 %v1853, %v2110
      %v2112 = vpop.f32.mrb[0].mxu0
      %2113 = vmatprep.mubr.f32.mxu0 0.0
      %v2114 = vand.u32 %v351, 4294901760
      %2115 = vmatmul.mubr.f32.gmra.mrb[0].mxu0 %v2114
      %v2116 = vpop.f32.mrb[0].mxu0
      %v2117 = vadd.f32 %v1859, %v2116
      %v2118 = vpop.f32.mrb[0].mxu0
      %2119 = vmatprep.mubr.f32.mxu0 0.0
      %v2120 = vand.u32 %v354, 4294901760
      %2121 = vmatmul.mubr.f32.gmra.mrb[0].mxu0 %v2120
      %v2122 = vpop.f32.mrb[0].mxu0
      %v2123 = vadd.f32 %v1865, %v2122
      %v2124 = vpop.f32.mrb[0].mxu0
      %2125 = vmatprep.mubr.f32.mxu0 0.0
      %v2126 = vand.u32 %v357, 4294901760
      %2127 = vmatmul.mubr.f32.gmra.mrb[0].mxu0 %v2126
      %v2128 = vpop.f32.mrb[0].mxu0
      %v2129 = vadd.f32 %v1871, %v2128
      %v2130 = vpop.f32.mrb[0].mxu0
      %2131 = vmatprep.mubr.f32.mxu0 0.0
      %v2132 = vand.u32 %v360, 4294901760
      %2133 = vmatmul.mubr.f32.gmra.mrb[0].mxu0 %v2132
      %v2134 = vpop.f32.mrb[0].mxu0
      %v2135 = vadd.f32 %v1877, %v2134
      %v2136 = vpop.f32.mrb[0].mxu0
      %2137 = vmatprep.mubr.f32.mxu0 0.0
      %v2138 = vand.u32 %v363, 4294901760
      %2139 = vmatmul.mubr.f32.gmra.mrb[0].mxu0 %v2138
      %v2140 = vpop.f32.mrb[0].mxu0
      %v2141 = vadd.f32 %v1883, %v2140
      %v2142 = vpop.f32.mrb[0].mxu0
      %2143 = vdwg.mxu0
      %v2144 = vmax.f32 %v1955, 0.0
      %v2145 = vmax.f32 %v1961, 0.0
      %v2146 = vmax.f32 %v1967, 0.0
      %v2147 = vmax.f32 %v1973, 0.0
      %v2148 = vmax.f32 %v1979, 0.0
      %v2149 = vmax.f32 %v1985, 0.0
      %v2150 = vmax.f32 %v1991, 0.0
      %v2151 = vmax.f32 %v1997, 0.0
      %v2152 = vmax.f32 %v2003, 0.0
      %v2153 = vmax.f32 %v2009, 0.0
      %v2154 = vmax.f32 %v2015, 0.0
      %v2155 = vmax.f32 %v2021, 0.0
      %v2156 = vmax.f32 %v2027, 0.0
      %v2157 = vmax.f32 %v2033, 0.0
      %v2158 = vmax.f32 %v2039, 0.0
      %v2159 = vmax.f32 %v2045, 0.0
      %v2160 = vmax.f32 %v2051, 0.0
      %v2161 = vmax.f32 %v2057, 0.0
      %v2162 = vmax.f32 %v2063, 0.0
      %v2163 = vmax.f32 %v2069, 0.0
      %v2164 = vmax.f32 %v2075, 0.0
      %v2165 = vmax.f32 %v2081, 0.0
      %v2166 = vmax.f32 %v2087, 0.0
      %v2167 = vmax.f32 %v2093, 0.0
      %v2168 = vmax.f32 %v2099, 0.0
      %v2169 = vmax.f32 %v2105, 0.0
      %v2170 = vmax.f32 %v2111, 0.0
      %v2171 = vmax.f32 %v2117, 0.0
      %v2172 = vmax.f32 %v2123, 0.0
      %v2173 = vmax.f32 %v2129, 0.0
      %v2174 = vmax.f32 %v2135, 0.0
      %v2175 = vmax.f32 %v2141, 0.0
      %v2176 = vld [vmem:[%s3] sm:$0xff]
      %v2177 = vld [vmem:[%s3 + $0x8] sm:$0xff]
      %v2178 = vld [vmem:[%s4] sm:$0x1]
      %v2180 = vlaneseq
      %v2181 = vshrl.u32 %v2180, 7
      %v2182 = vsub.s32 0, %v2181
      %v2183 = vrot.slane %v2178, %v2182
      %vm2185 = vcmask 130048
      %v2187 = vsel %vm2185, %v2144, 0
      %v2190 = vsel %vm2185, %v2145, 0
      %v2193 = vsel %vm2185, %v2146, 0
      %v2196 = vsel %vm2185, %v2147, 0
      %v2199 = vsel %vm2185, %v2148, 0
      %v2202 = vsel %vm2185, %v2149, 0
      %v2205 = vsel %vm2185, %v2150, 0
      %v2208 = vsel %vm2185, %v2151, 0
      %v2211 = vsel %vm2185, %v2152, 0
      %v2214 = vsel %vm2185, %v2153, 0
      %v2217 = vsel %vm2185, %v2154, 0
      %v2220 = vsel %vm2185, %v2155, 0
      %v2223 = vsel %vm2185, %v2156, 0
      %v2226 = vsel %vm2185, %v2157, 0
      %v2229 = vsel %vm2185, %v2158, 0
      %v2232 = vsel %vm2185, %v2159, 0
      %v2235 = vsel %vm2185, %v2160, 0
      %v2238 = vsel %vm2185, %v2161, 0
      %v2241 = vsel %vm2185, %v2162, 0
      %v2244 = vsel %vm2185, %v2163, 0
      %v2247 = vsel %vm2185, %v2164, 0
      %v2250 = vsel %vm2185, %v2165, 0
      %v2253 = vsel %vm2185, %v2166, 0
      %v2256 = vsel %vm2185, %v2167, 0
      %v2259 = vsel %vm2185, %v2168, 0
      %v2262 = vsel %vm2185, %v2169, 0
      %v2265 = vsel %vm2185, %v2170, 0
      %v2268 = vsel %vm2185, %v2171, 0
      %v2271 = vsel %vm2185, %v2172, 0
      %v2274 = vsel %vm2185, %v2173, 0
      %v2277 = vsel %vm2185, %v2174, 0
      %v2280 = vsel %vm2185, %v2175, 0
      %2282 = vmatprep.subr.mxu0 0.0
      %v2283 = vand.u32 %v2176, 4294901760
      %2284 = vmatpush1.msra.mxu0 %v2283
      %2285 = vmatprep.subr.mxu0 0.0
      %v2286 = vand.u32 %v2177, 4294901760
      %2287 = vmatpush1.msra.mxu0 %v2286
      %2288 = vmatprep.subr.mxu0 0.0
      %2289 = vmatpush1.msra.mxu0 0.0
      %2290 = vmatprep.subr.mxu0 0.0
      %2291 = vmatpush1.msra.mxu0 0.0
      %2292 = vmatprep.subr.mxu0 0.0
      %2293 = vmatpush1.msra.mxu0 0.0
      %2294 = vmatprep.subr.mxu0 0.0
      %2295 = vmatpush1.msra.mxu0 0.0
      %2296 = vmatprep.subr.mxu0 0.0
      %2297 = vmatpush1.msra.mxu0 0.0
      %2298 = vmatprep.subr.mxu0 0.0
      %2299 = vmatpush1.msra.mxu0 0.0
      %2300 = vmatprep.subr.mxu0 0.0
      %2301 = vmatpush1.msra.mxu0 0.0
      %2302 = vmatprep.subr.mxu0 0.0
      %2303 = vmatpush1.msra.mxu0 0.0
      %2304 = vmatprep.subr.mxu0 0.0
      %2305 = vmatpush1.msra.mxu0 0.0
      %2306 = vmatprep.subr.mxu0 0.0
      %2307 = vmatpush1.msra.mxu0 0.0
      %2308 = vmatprep.subr.mxu0 0.0
      %2309 = vmatpush1.msra.mxu0 0.0
      %2310 = vmatprep.subr.mxu0 0.0
      %2311 = vmatpush1.msra.mxu0 0.0
      %2312 = vmatprep.subr.mxu0 0.0
      %2313 = vmatpush1.msra.mxu0 0.0
      %2314 = vmatprep.subr.mxu0 0.0
      %2315 = vmatpush1.msra.mxu0 0.0
      %2316 = vmatprep.subr.mxu0 0.0
      %2317 = vmatpush1.msra.mxu0 0.0
      %2318 = vmatprep.subr.mxu0 0.0
      %2319 = vmatpush1.msra.mxu0 0.0
      %2320 = vmatprep.subr.mxu0 0.0
      %2321 = vmatpush1.msra.mxu0 0.0
      %2322 = vmatprep.subr.mxu0 0.0
      %2323 = vmatpush1.msra.mxu0 0.0
      %2324 = vmatprep.subr.mxu0 0.0
      %2325 = vmatpush1.msra.mxu0 0.0
      %2326 = vmatprep.subr.mxu0 0.0
      %2327 = vmatpush1.msra.mxu0 0.0
      %2328 = vmatprep.subr.mxu0 0.0
      %2329 = vmatpush1.msra.mxu0 0.0
      %2330 = vmatprep.subr.mxu0 0.0
      %2331 = vmatpush1.msra.mxu0 0.0
      %2332 = vmatprep.subr.mxu0 0.0
      %2333 = vmatpush1.msra.mxu0 0.0
      %2334 = vmatprep.subr.mxu0 0.0
      %2335 = vmatpush1.msra.mxu0 0.0
      %2336 = vmatprep.subr.mxu0 0.0
      %2337 = vmatpush1.msra.mxu0 0.0
      %2338 = vmatprep.subr.mxu0 0.0
      %2339 = vmatpush1.msra.mxu0 0.0
      %2340 = vmatprep.subr.mxu0 0.0
      %2341 = vmatpush1.msra.mxu0 0.0
      %2342 = vmatprep.subr.mxu0 0.0
      %2343 = vmatpush1.msra.mxu0 0.0
      %2344 = vmatprep.subr.mxu0 0.0
      %2345 = vmatpush1.msra.mxu0 0.0
      %2346 = vmatprep.subr.mxu0 0.0
      %2347 = vmatpush1.msra.mxu0 0.0
      %2348 = vmatprep.mubr.f32.mxu0 0.0
      %v2349 = vand.u32 %v2187, 4294901760
      %v2350 = vsub.f32 %v2187, %v2349
      %v2351 = vand.u32 %v2350, 4294901760
      %v2352 = vsub.f32 %v2350, %v2351
      %v2353 = vand.u32 %v2352, 4294901760
      %2354 = vmatmul.mubr.f32.gmra.mrb[0].mxu0 %v2353
      %v2355 = vpop.f32.mrb[0].mxu0
      %v2356 = vadd.f32 %v2183, %v2355
      %v2357 = vpop.f32.mrb[0].mxu0
      %2358 = vmatprep.mubr.f32.mxu0 0.0
      %v2359 = vand.u32 %v2190, 4294901760
      %v2360 = vsub.f32 %v2190, %v2359
      %v2361 = vand.u32 %v2360, 4294901760
      %v2362 = vsub.f32 %v2360, %v2361
      %v2363 = vand.u32 %v2362, 4294901760
      %2364 = vmatmul.mubr.f32.gmra.mrb[0].mxu0 %v2363
      %v2365 = vpop.f32.mrb[0].mxu0
      %v2366 = vadd.f32 %v2183, %v2365
      %v2367 = vpop.f32.mrb[0].mxu0
      %2368 = vmatprep.mubr.f32.mxu0 0.0
      %v2369 = vand.u32 %v2193, 4294901760
      %v2370 = vsub.f32 %v2193, %v2369
      %v2371 = vand.u32 %v2370, 4294901760
      %v2372 = vsub.f32 %v2370, %v2371
      %v2373 = vand.u32 %v2372, 4294901760
      %2374 = vmatmul.mubr.f32.gmra.mrb[0].mxu0 %v2373
      %v2375 = vpop.f32.mrb[0].mxu0
      %v2376 = vadd.f32 %v2183, %v2375
      %v2377 = vpop.f32.mrb[0].mxu0
      %2378 = vmatprep.mubr.f32.mxu0 0.0
      %v2379 = vand.u32 %v2196, 4294901760
      %v2380 = vsub.f32 %v2196, %v2379
      %v2381 = vand.u32 %v2380, 4294901760
      %v2382 = vsub.f32 %v2380, %v2381
      %v2383 = vand.u32 %v2382, 4294901760
      %2384 = vmatmul.mubr.f32.gmra.mrb[0].mxu0 %v2383
      %v2385 = vpop.f32.mrb[0].mxu0
      %v2386 = vadd.f32 %v2183, %v2385
      %v2387 = vpop.f32.mrb[0].mxu0
      %2388 = vmatprep.mubr.f32.mxu0 0.0
      %v2389 = vand.u32 %v2199, 4294901760
      %v2390 = vsub.f32 %v2199, %v2389
      %v2391 = vand.u32 %v2390, 4294901760
      %v2392 = vsub.f32 %v2390, %v2391
      %v2393 = vand.u32 %v2392, 4294901760
      %2394 = vmatmul.mubr.f32.gmra.mrb[0].mxu0 %v2393
      %v2395 = vpop.f32.mrb[0].mxu0
      %v2396 = vadd.f32 %v2183, %v2395
      %v2397 = vpop.f32.mrb[0].mxu0
      %2398 = vmatprep.mubr.f32.mxu0 0.0
      %v2399 = vand.u32 %v2202, 4294901760
      %v2400 = vsub.f32 %v2202, %v2399
      %v2401 = vand.u32 %v2400, 4294901760
      %v2402 = vsub.f32 %v2400, %v2401
      %v2403 = vand.u32 %v2402, 4294901760
      %2404 = vmatmul.mubr.f32.gmra.mrb[0].mxu0 %v2403
      %v2405 = vpop.f32.mrb[0].mxu0
      %v2406 = vadd.f32 %v2183, %v2405
      %v2407 = vpop.f32.mrb[0].mxu0
      %2408 = vmatprep.mubr.f32.mxu0 0.0
      %v2409 = vand.u32 %v2205, 4294901760
      %v2410 = vsub.f32 %v2205, %v2409
      %v2411 = vand.u32 %v2410, 4294901760
      %v2412 = vsub.f32 %v2410, %v2411
      %v2413 = vand.u32 %v2412, 4294901760
      %2414 = vmatmul.mubr.f32.gmra.mrb[0].mxu0 %v2413
      %v2415 = vpop.f32.mrb[0].mxu0
      %v2416 = vadd.f32 %v2183, %v2415
      %v2417 = vpop.f32.mrb[0].mxu0
      %2418 = vmatprep.mubr.f32.mxu0 0.0
      %v2419 = vand.u32 %v2208, 4294901760
      %v2420 = vsub.f32 %v2208, %v2419
      %v2421 = vand.u32 %v2420, 4294901760
      %v2422 = vsub.f32 %v2420, %v2421
      %v2423 = vand.u32 %v2422, 4294901760
      %2424 = vmatmul.mubr.f32.gmra.mrb[0].mxu0 %v2423
      %v2425 = vpop.f32.mrb[0].mxu0
      %v2426 = vadd.f32 %v2183, %v2425
      %v2427 = vpop.f32.mrb[0].mxu0
      %2428 = vmatprep.mubr.f32.mxu0 0.0
      %v2429 = vand.u32 %v2211, 4294901760
      %v2430 = vsub.f32 %v2211, %v2429
      %v2431 = vand.u32 %v2430, 4294901760
      %v2432 = vsub.f32 %v2430, %v2431
      %v2433 = vand.u32 %v2432, 4294901760
      %2434 = vmatmul.mubr.f32.gmra.mrb[0].mxu0 %v2433
      %v2435 = vpop.f32.mrb[0].mxu0
      %v2436 = vadd.f32 %v2183, %v2435
      %v2437 = vpop.f32.mrb[0].mxu0
      %2438 = vmatprep.mubr.f32.mxu0 0.0
      %v2439 = vand.u32 %v2214, 4294901760
      %v2440 = vsub.f32 %v2214, %v2439
      %v2441 = vand.u32 %v2440, 4294901760
      %v2442 = vsub.f32 %v2440, %v2441
      %v2443 = vand.u32 %v2442, 4294901760
      %2444 = vmatmul.mubr.f32.gmra.mrb[0].mxu0 %v2443
      %v2445 = vpop.f32.mrb[0].mxu0
      %v2446 = vadd.f32 %v2183, %v2445
      %v2447 = vpop.f32.mrb[0].mxu0
      %2448 = vmatprep.mubr.f32.mxu0 0.0
      %v2449 = vand.u32 %v2217, 4294901760
      %v2450 = vsub.f32 %v2217, %v2449
      %v2451 = vand.u32 %v2450, 4294901760
      %v2452 = vsub.f32 %v2450, %v2451
      %v2453 = vand.u32 %v2452, 4294901760
      %2454 = vmatmul.mubr.f32.gmra.mrb[0].mxu0 %v2453
      %v2455 = vpop.f32.mrb[0].mxu0
      %v2456 = vadd.f32 %v2183, %v2455
      %v2457 = vpop.f32.mrb[0].mxu0
      %2458 = vmatprep.mubr.f32.mxu0 0.0
      %v2459 = vand.u32 %v2220, 4294901760
      %v2460 = vsub.f32 %v2220, %v2459
      %v2461 = vand.u32 %v2460, 4294901760
      %v2462 = vsub.f32 %v2460, %v2461
      %v2463 = vand.u32 %v2462, 4294901760
      %2464 = vmatmul.mubr.f32.gmra.mrb[0].mxu0 %v2463
      %v2465 = vpop.f32.mrb[0].mxu0
      %v2466 = vadd.f32 %v2183, %v2465
      %v2467 = vpop.f32.mrb[0].mxu0
      %2468 = vmatprep.mubr.f32.mxu0 0.0
      %v2469 = vand.u32 %v2223, 4294901760
      %v2470 = vsub.f32 %v2223, %v2469
      %v2471 = vand.u32 %v2470, 4294901760
      %v2472 = vsub.f32 %v2470, %v2471
      %v2473 = vand.u32 %v2472, 4294901760
      %2474 = vmatmul.mubr.f32.gmra.mrb[0].mxu0 %v2473
      %v2475 = vpop.f32.mrb[0].mxu0
      %v2476 = vadd.f32 %v2183, %v2475
      %v2477 = vpop.f32.mrb[0].mxu0
      %2478 = vmatprep.mubr.f32.mxu0 0.0
      %v2479 = vand.u32 %v2226, 4294901760
      %v2480 = vsub.f32 %v2226, %v2479
      %v2481 = vand.u32 %v2480, 4294901760
      %v2482 = vsub.f32 %v2480, %v2481
      %v2483 = vand.u32 %v2482, 4294901760
      %2484 = vmatmul.mubr.f32.gmra.mrb[0].mxu0 %v2483
      %v2485 = vpop.f32.mrb[0].mxu0
      %v2486 = vadd.f32 %v2183, %v2485
      %v2487 = vpop.f32.mrb[0].mxu0
      %2488 = vmatprep.mubr.f32.mxu0 0.0
      %v2489 = vand.u32 %v2229, 4294901760
      %v2490 = vsub.f32 %v2229, %v2489
      %v2491 = vand.u32 %v2490, 4294901760
      %v2492 = vsub.f32 %v2490, %v2491
      %v2493 = vand.u32 %v2492, 4294901760
      %2494 = vmatmul.mubr.f32.gmra.mrb[0].mxu0 %v2493
      %v2495 = vpop.f32.mrb[0].mxu0
      %v2496 = vadd.f32 %v2183, %v2495
      %v2497 = vpop.f32.mrb[0].mxu0
      %2498 = vmatprep.mubr.f32.mxu0 0.0
      %v2499 = vand.u32 %v2232, 4294901760
      %v2500 = vsub.f32 %v2232, %v2499
      %v2501 = vand.u32 %v2500, 4294901760
      %v2502 = vsub.f32 %v2500, %v2501
      %v2503 = vand.u32 %v2502, 4294901760
      %2504 = vmatmul.mubr.f32.gmra.mrb[0].mxu0 %v2503
      %v2505 = vpop.f32.mrb[0].mxu0
      %v2506 = vadd.f32 %v2183, %v2505
      %v2507 = vpop.f32.mrb[0].mxu0
      %2508 = vmatprep.mubr.f32.mxu0 0.0
      %v2509 = vand.u32 %v2235, 4294901760
      %v2510 = vsub.f32 %v2235, %v2509
      %v2511 = vand.u32 %v2510, 4294901760
      %v2512 = vsub.f32 %v2510, %v2511
      %v2513 = vand.u32 %v2512, 4294901760
      %2514 = vmatmul.mubr.f32.gmra.mrb[0].mxu0 %v2513
      %v2515 = vpop.f32.mrb[0].mxu0
      %v2516 = vadd.f32 %v2183, %v2515
      %v2517 = vpop.f32.mrb[0].mxu0
      %2518 = vmatprep.mubr.f32.mxu0 0.0
      %v2519 = vand.u32 %v2238, 4294901760
      %v2520 = vsub.f32 %v2238, %v2519
      %v2521 = vand.u32 %v2520, 4294901760
      %v2522 = vsub.f32 %v2520, %v2521
      %v2523 = vand.u32 %v2522, 4294901760
      %2524 = vmatmul.mubr.f32.gmra.mrb[0].mxu0 %v2523
      %v2525 = vpop.f32.mrb[0].mxu0
      %v2526 = vadd.f32 %v2183, %v2525
      %v2527 = vpop.f32.mrb[0].mxu0
      %2528 = vmatprep.mubr.f32.mxu0 0.0
      %v2529 = vand.u32 %v2241, 4294901760
      %v2530 = vsub.f32 %v2241, %v2529
      %v2531 = vand.u32 %v2530, 4294901760
      %v2532 = vsub.f32 %v2530, %v2531
      %v2533 = vand.u32 %v2532, 4294901760
      %2534 = vmatmul.mubr.f32.gmra.mrb[0].mxu0 %v2533
      %v2535 = vpop.f32.mrb[0].mxu0
      %v2536 = vadd.f32 %v2183, %v2535
      %v2537 = vpop.f32.mrb[0].mxu0
      %2538 = vmatprep.mubr.f32.mxu0 0.0
      %v2539 = vand.u32 %v2244, 4294901760
      %v2540 = vsub.f32 %v2244, %v2539
      %v2541 = vand.u32 %v2540, 4294901760
      %v2542 = vsub.f32 %v2540, %v2541
      %v2543 = vand.u32 %v2542, 4294901760
      %2544 = vmatmul.mubr.f32.gmra.mrb[0].mxu0 %v2543
      %v2545 = vpop.f32.mrb[0].mxu0
      %v2546 = vadd.f32 %v2183, %v2545
      %v2547 = vpop.f32.mrb[0].mxu0
      %2548 = vmatprep.mubr.f32.mxu0 0.0
      %v2549 = vand.u32 %v2247, 4294901760
      %v2550 = vsub.f32 %v2247, %v2549
      %v2551 = vand.u32 %v2550, 4294901760
      %v2552 = vsub.f32 %v2550, %v2551
      %v2553 = vand.u32 %v2552, 4294901760
      %2554 = vmatmul.mubr.f32.gmra.mrb[0].mxu0 %v2553
      %v2555 = vpop.f32.mrb[0].mxu0
      %v2556 = vadd.f32 %v2183, %v2555
      %v2557 = vpop.f32.mrb[0].mxu0
      %2558 = vmatprep.mubr.f32.mxu0 0.0
      %v2559 = vand.u32 %v2250, 4294901760
      %v2560 = vsub.f32 %v2250, %v2559
      %v2561 = vand.u32 %v2560, 4294901760
      %v2562 = vsub.f32 %v2560, %v2561
      %v2563 = vand.u32 %v2562, 4294901760
      %2564 = vmatmul.mubr.f32.gmra.mrb[0].mxu0 %v2563
      %v2565 = vpop.f32.mrb[0].mxu0
      %v2566 = vadd.f32 %v2183, %v2565
      %v2567 = vpop.f32.mrb[0].mxu0
      %2568 = vmatprep.mubr.f32.mxu0 0.0
      %v2569 = vand.u32 %v2253, 4294901760
      %v2570 = vsub.f32 %v2253, %v2569
      %v2571 = vand.u32 %v2570, 4294901760
      %v2572 = vsub.f32 %v2570, %v2571
      %v2573 = vand.u32 %v2572, 4294901760
      %2574 = vmatmul.mubr.f32.gmra.mrb[0].mxu0 %v2573
      %v2575 = vpop.f32.mrb[0].mxu0
      %v2576 = vadd.f32 %v2183, %v2575
      %v2577 = vpop.f32.mrb[0].mxu0
      %2578 = vmatprep.mubr.f32.mxu0 0.0
      %v2579 = vand.u32 %v2256, 4294901760
      %v2580 = vsub.f32 %v2256, %v2579
      %v2581 = vand.u32 %v2580, 4294901760
      %v2582 = vsub.f32 %v2580, %v2581
      %v2583 = vand.u32 %v2582, 4294901760
      %2584 = vmatmul.mubr.f32.gmra.mrb[0].mxu0 %v2583
      %v2585 = vpop.f32.mrb[0].mxu0
      %v2586 = vadd.f32 %v2183, %v2585
      %v2587 = vpop.f32.mrb[0].mxu0
      %2588 = vmatprep.mubr.f32.mxu0 0.0
      %v2589 = vand.u32 %v2259, 4294901760
      %v2590 = vsub.f32 %v2259, %v2589
      %v2591 = vand.u32 %v2590, 4294901760
      %v2592 = vsub.f32 %v2590, %v2591
      %v2593 = vand.u32 %v2592, 4294901760
      %2594 = vmatmul.mubr.f32.gmra.mrb[0].mxu0 %v2593
      %v2595 = vpop.f32.mrb[0].mxu0
      %v2596 = vadd.f32 %v2183, %v2595
      %v2597 = vpop.f32.mrb[0].mxu0
      %2598 = vmatprep.mubr.f32.mxu0 0.0
      %v2599 = vand.u32 %v2262, 4294901760
      %v2600 = vsub.f32 %v2262, %v2599
      %v2601 = vand.u32 %v2600, 4294901760
      %v2602 = vsub.f32 %v2600, %v2601
      %v2603 = vand.u32 %v2602, 4294901760
      %2604 = vmatmul.mubr.f32.gmra.mrb[0].mxu0 %v2603
      %v2605 = vpop.f32.mrb[0].mxu0
      %v2606 = vadd.f32 %v2183, %v2605
      %v2607 = vpop.f32.mrb[0].mxu0
      %2608 = vmatprep.mubr.f32.mxu0 0.0
      %v2609 = vand.u32 %v2265, 4294901760
      %v2610 = vsub.f32 %v2265, %v2609
      %v2611 = vand.u32 %v2610, 4294901760
      %v2612 = vsub.f32 %v2610, %v2611
      %v2613 = vand.u32 %v2612, 4294901760
      %2614 = vmatmul.mubr.f32.gmra.mrb[0].mxu0 %v2613
      %v2615 = vpop.f32.mrb[0].mxu0
      %v2616 = vadd.f32 %v2183, %v2615
      %v2617 = vpop.f32.mrb[0].mxu0
      %2618 = vmatprep.mubr.f32.mxu0 0.0
      %v2619 = vand.u32 %v2268, 4294901760
      %v2620 = vsub.f32 %v2268, %v2619
      %v2621 = vand.u32 %v2620, 4294901760
      %v2622 = vsub.f32 %v2620, %v2621
      %v2623 = vand.u32 %v2622, 4294901760
      %2624 = vmatmul.mubr.f32.gmra.mrb[0].mxu0 %v2623
      %v2625 = vpop.f32.mrb[0].mxu0
      %v2626 = vadd.f32 %v2183, %v2625
      %v2627 = vpop.f32.mrb[0].mxu0
      %2628 = vmatprep.mubr.f32.mxu0 0.0
      %v2629 = vand.u32 %v2271, 4294901760
      %v2630 = vsub.f32 %v2271, %v2629
      %v2631 = vand.u32 %v2630, 4294901760
      %v2632 = vsub.f32 %v2630, %v2631
      %v2633 = vand.u32 %v2632, 4294901760
      %2634 = vmatmul.mubr.f32.gmra.mrb[0].mxu0 %v2633
      %v2635 = vpop.f32.mrb[0].mxu0
      %v2636 = vadd.f32 %v2183, %v2635
      %v2637 = vpop.f32.mrb[0].mxu0
      %2638 = vmatprep.mubr.f32.mxu0 0.0
      %v2639 = vand.u32 %v2274, 4294901760
      %v2640 = vsub.f32 %v2274, %v2639
      %v2641 = vand.u32 %v2640, 4294901760
      %v2642 = vsub.f32 %v2640, %v2641
      %v2643 = vand.u32 %v2642, 4294901760
      %2644 = vmatmul.mubr.f32.gmra.mrb[0].mxu0 %v2643
      %v2645 = vpop.f32.mrb[0].mxu0
      %v2646 = vadd.f32 %v2183, %v2645
      %v2647 = vpop.f32.mrb[0].mxu0
      %2648 = vmatprep.mubr.f32.mxu0 0.0
      %v2649 = vand.u32 %v2277, 4294901760
      %v2650 = vsub.f32 %v2277, %v2649
      %v2651 = vand.u32 %v2650, 4294901760
      %v2652 = vsub.f32 %v2650, %v2651
      %v2653 = vand.u32 %v2652, 4294901760
      %2654 = vmatmul.mubr.f32.gmra.mrb[0].mxu0 %v2653
      %v2655 = vpop.f32.mrb[0].mxu0
      %v2656 = vadd.f32 %v2183, %v2655
      %v2657 = vpop.f32.mrb[0].mxu0
      %2658 = vmatprep.mubr.f32.mxu0 0.0
      %v2659 = vand.u32 %v2280, 4294901760
      %v2660 = vsub.f32 %v2280, %v2659
      %v2661 = vand.u32 %v2660, 4294901760
      %v2662 = vsub.f32 %v2660, %v2661
      %v2663 = vand.u32 %v2662, 4294901760
      %2664 = vmatmul.mubr.f32.gmra.mrb[0].mxu0 %v2663
      %v2665 = vpop.f32.mrb[0].mxu0
      %v2666 = vadd.f32 %v2183, %v2665
      %v2667 = vpop.f32.mrb[0].mxu0
      %2668 = vdwg.mxu0
      %2669 = vmatprep.subr.mxu0 0.0
      %v2670 = vand.u32 %v2176, 4294901760
      %v2671 = vsub.f32 %v2176, %v2670
      %v2672 = vand.u32 %v2671, 4294901760
      %v2673 = vsub.f32 %v2671, %v2672
      %v2674 = vand.u32 %v2673, 4294901760
      %2675 = vmatpush1.msra.mxu0 %v2674
      %2676 = vmatprep.subr.mxu0 0.0
      %v2677 = vand.u32 %v2177, 4294901760
      %v2678 = vsub.f32 %v2177, %v2677
      %v2679 = vand.u32 %v2678, 4294901760
      %v2680 = vsub.f32 %v2678, %v2679
      %v2681 = vand.u32 %v2680, 4294901760
      %2682 = vmatpush1.msra.mxu0 %v2681
      %2683 = vmatprep.subr.mxu0 0.0
      %2684 = vmatpush1.msra.mxu0 0.0
      %2685 = vmatprep.subr.mxu0 0.0
      %2686 = vmatpush1.msra.mxu0 0.0
      %2687 = vmatprep.subr.mxu0 0.0
      %2688 = vmatpush1.msra.mxu0 0.0
      %2689 = vmatprep.subr.mxu0 0.0
      %2690 = vmatpush1.msra.mxu0 0.0
      %2691 = vmatprep.subr.mxu0 0.0
      %2692 = vmatpush1.msra.mxu0 0.0
      %2693 = vmatprep.subr.mxu0 0.0
      %2694 = vmatpush1.msra.mxu0 0.0
      %2695 = vmatprep.subr.mxu0 0.0
      %2696 = vmatpush1.msra.mxu0 0.0
      %2697 = vmatprep.subr.mxu0 0.0
      %2698 = vmatpush1.msra.mxu0 0.0
      %2699 = vmatprep.subr.mxu0 0.0
      %2700 = vmatpush1.msra.mxu0 0.0
      %2701 = vmatprep.subr.mxu0 0.0
      %2702 = vmatpush1.msra.mxu0 0.0
      %2703 = vmatprep.subr.mxu0 0.0
      %2704 = vmatpush1.msra.mxu0 0.0
      %2705 = vmatprep.subr.mxu0 0.0
      %2706 = vmatpush1.msra.mxu0 0.0
      %2707 = vmatprep.subr.mxu0 0.0
      %2708 = vmatpush1.msra.mxu0 0.0
      %2709 = vmatprep.subr.mxu0 0.0
      %2710 = vmatpush1.msra.mxu0 0.0
      %2711 = vmatprep.subr.mxu0 0.0
      %2712 = vmatpush1.msra.mxu0 0.0
      %2713 = vmatprep.subr.mxu0 0.0
      %2714 = vmatpush1.msra.mxu0 0.0
      %2715 = vmatprep.subr.mxu0 0.0
      %2716 = vmatpush1.msra.mxu0 0.0
      %2717 = vmatprep.subr.mxu0 0.0
      %2718 = vmatpush1.msra.mxu0 0.0
      %2719 = vmatprep.subr.mxu0 0.0
      %2720 = vmatpush1.msra.mxu0 0.0
      %2721 = vmatprep.subr.mxu0 0.0
      %2722 = vmatpush1.msra.mxu0 0.0
      %2723 = vmatprep.subr.mxu0 0.0
      %2724 = vmatpush1.msra.mxu0 0.0
      %2725 = vmatprep.subr.mxu0 0.0
      %2726 = vmatpush1.msra.mxu0 0.0
      %2727 = vmatprep.subr.mxu0 0.0
      %2728 = vmatpush1.msra.mxu0 0.0
      %2729 = vmatprep.subr.mxu0 0.0
      %2730 = vmatpush1.msra.mxu0 0.0
      %2731 = vmatprep.subr.mxu0 0.0
      %2732 = vmatpush1.msra.mxu0 0.0
      %2733 = vmatprep.subr.mxu0 0.0
      %2734 = vmatpush1.msra.mxu0 0.0
      %2735 = vmatprep.subr.mxu0 0.0
      %2736 = vmatpush1.msra.mxu0 0.0
      %2737 = vmatprep.subr.mxu0 0.0
      %2738 = vmatpush1.msra.mxu0 0.0
      %2739 = vmatprep.subr.mxu0 0.0
      %2740 = vmatpush1.msra.mxu0 0.0
      %2741 = vmatprep.subr.mxu0 0.0
      %2742 = vmatpush1.msra.mxu0 0.0
      %2743 = vmatprep.mubr.f32.mxu0 0.0
      %v2744 = vand.u32 %v2187, 4294901760
      %2745 = vmatmul.mubr.f32.gmra.mrb[0].mxu0 %v2744
      %v2746 = vpop.f32.mrb[0].mxu0
      %v2747 = vadd.f32 %v2356, %v2746
      %v2748 = vpop.f32.mrb[0].mxu0
      %2749 = vmatprep.mubr.f32.mxu0 0.0
      %v2750 = vand.u32 %v2190, 4294901760
      %2751 = vmatmul.mubr.f32.gmra.mrb[0].mxu0 %v2750
      %v2752 = vpop.f32.mrb[0].mxu0
      %v2753 = vadd.f32 %v2366, %v2752
      %v2754 = vpop.f32.mrb[0].mxu0
      %2755 = vmatprep.mubr.f32.mxu0 0.0
      %v2756 = vand.u32 %v2193, 4294901760
      %2757 = vmatmul.mubr.f32.gmra.mrb[0].mxu0 %v2756
      %v2758 = vpop.f32.mrb[0].mxu0
      %v2759 = vadd.f32 %v2376, %v2758
      %v2760 = vpop.f32.mrb[0].mxu0
      %2761 = vmatprep.mubr.f32.mxu0 0.0
      %v2762 = vand.u32 %v2196, 4294901760
      %2763 = vmatmul.mubr.f32.gmra.mrb[0].mxu0 %v2762
      %v2764 = vpop.f32.mrb[0].mxu0
      %v2765 = vadd.f32 %v2386, %v2764
      %v2766 = vpop.f32.mrb[0].mxu0
      %2767 = vmatprep.mubr.f32.mxu0 0.0
      %v2768 = vand.u32 %v2199, 4294901760
      %2769 = vmatmul.mubr.f32.gmra.mrb[0].mxu0 %v2768
      %v2770 = vpop.f32.mrb[0].mxu0
      %v2771 = vadd.f32 %v2396, %v2770
      %v2772 = vpop.f32.mrb[0].mxu0
      %2773 = vmatprep.mubr.f32.mxu0 0.0
      %v2774 = vand.u32 %v2202, 4294901760
      %2775 = vmatmul.mubr.f32.gmra.mrb[0].mxu0 %v2774
      %v2776 = vpop.f32.mrb[0].mxu0
      %v2777 = vadd.f32 %v2406, %v2776
      %v2778 = vpop.f32.mrb[0].mxu0
      %2779 = vmatprep.mubr.f32.mxu0 0.0
      %v2780 = vand.u32 %v2205, 4294901760
      %2781 = vmatmul.mubr.f32.gmra.mrb[0].mxu0 %v2780
      %v2782 = vpop.f32.mrb[0].mxu0
      %v2783 = vadd.f32 %v2416, %v2782
      %v2784 = vpop.f32.mrb[0].mxu0
      %2785 = vmatprep.mubr.f32.mxu0 0.0
      %v2786 = vand.u32 %v2208, 4294901760
      %2787 = vmatmul.mubr.f32.gmra.mrb[0].mxu0 %v2786
      %v2788 = vpop.f32.mrb[0].mxu0
      %v2789 = vadd.f32 %v2426, %v2788
      %v2790 = vpop.f32.mrb[0].mxu0
      %2791 = vmatprep.mubr.f32.mxu0 0.0
      %v2792 = vand.u32 %v2211, 4294901760
      %2793 = vmatmul.mubr.f32.gmra.mrb[0].mxu0 %v2792
      %v2794 = vpop.f32.mrb[0].mxu0
      %v2795 = vadd.f32 %v2436, %v2794
      %v2796 = vpop.f32.mrb[0].mxu0
      %2797 = vmatprep.mubr.f32.mxu0 0.0
      %v2798 = vand.u32 %v2214, 4294901760
      %2799 = vmatmul.mubr.f32.gmra.mrb[0].mxu0 %v2798
      %v2800 = vpop.f32.mrb[0].mxu0
      %v2801 = vadd.f32 %v2446, %v2800
      %v2802 = vpop.f32.mrb[0].mxu0
      %2803 = vmatprep.mubr.f32.mxu0 0.0
      %v2804 = vand.u32 %v2217, 4294901760
      %2805 = vmatmul.mubr.f32.gmra.mrb[0].mxu0 %v2804
      %v2806 = vpop.f32.mrb[0].mxu0
      %v2807 = vadd.f32 %v2456, %v2806
      %v2808 = vpop.f32.mrb[0].mxu0
      %2809 = vmatprep.mubr.f32.mxu0 0.0
      %v2810 = vand.u32 %v2220, 4294901760
      %2811 = vmatmul.mubr.f32.gmra.mrb[0].mxu0 %v2810
      %v2812 = vpop.f32.mrb[0].mxu0
      %v2813 = vadd.f32 %v2466, %v2812
      %v2814 = vpop.f32.mrb[0].mxu0
      %2815 = vmatprep.mubr.f32.mxu0 0.0
      %v2816 = vand.u32 %v2223, 4294901760
      %2817 = vmatmul.mubr.f32.gmra.mrb[0].mxu0 %v2816
      %v2818 = vpop.f32.mrb[0].mxu0
      %v2819 = vadd.f32 %v2476, %v2818
      %v2820 = vpop.f32.mrb[0].mxu0
      %2821 = vmatprep.mubr.f32.mxu0 0.0
      %v2822 = vand.u32 %v2226, 4294901760
      %2823 = vmatmul.mubr.f32.gmra.mrb[0].mxu0 %v2822
      %v2824 = vpop.f32.mrb[0].mxu0
      %v2825 = vadd.f32 %v2486, %v2824
      %v2826 = vpop.f32.mrb[0].mxu0
      %2827 = vmatprep.mubr.f32.mxu0 0.0
      %v2828 = vand.u32 %v2229, 4294901760
      %2829 = vmatmul.mubr.f32.gmra.mrb[0].mxu0 %v2828
      %v2830 = vpop.f32.mrb[0].mxu0
      %v2831 = vadd.f32 %v2496, %v2830
      %v2832 = vpop.f32.mrb[0].mxu0
      %2833 = vmatprep.mubr.f32.mxu0 0.0
      %v2834 = vand.u32 %v2232, 4294901760
      %2835 = vmatmul.mubr.f32.gmra.mrb[0].mxu0 %v2834
      %v2836 = vpop.f32.mrb[0].mxu0
      %v2837 = vadd.f32 %v2506, %v2836
      %v2838 = vpop.f32.mrb[0].mxu0
      %2839 = vmatprep.mubr.f32.mxu0 0.0
      %v2840 = vand.u32 %v2235, 4294901760
      %2841 = vmatmul.mubr.f32.gmra.mrb[0].mxu0 %v2840
      %v2842 = vpop.f32.mrb[0].mxu0
      %v2843 = vadd.f32 %v2516, %v2842
      %v2844 = vpop.f32.mrb[0].mxu0
      %2845 = vmatprep.mubr.f32.mxu0 0.0
      %v2846 = vand.u32 %v2238, 4294901760
      %2847 = vmatmul.mubr.f32.gmra.mrb[0].mxu0 %v2846
      %v2848 = vpop.f32.mrb[0].mxu0
      %v2849 = vadd.f32 %v2526, %v2848
      %v2850 = vpop.f32.mrb[0].mxu0
      %2851 = vmatprep.mubr.f32.mxu0 0.0
      %v2852 = vand.u32 %v2241, 4294901760
      %2853 = vmatmul.mubr.f32.gmra.mrb[0].mxu0 %v2852
      %v2854 = vpop.f32.mrb[0].mxu0
      %v2855 = vadd.f32 %v2536, %v2854
      %v2856 = vpop.f32.mrb[0].mxu0
      %2857 = vmatprep.mubr.f32.mxu0 0.0
      %v2858 = vand.u32 %v2244, 4294901760
      %2859 = vmatmul.mubr.f32.gmra.mrb[0].mxu0 %v2858
      %v2860 = vpop.f32.mrb[0].mxu0
      %v2861 = vadd.f32 %v2546, %v2860
      %v2862 = vpop.f32.mrb[0].mxu0
      %2863 = vmatprep.mubr.f32.mxu0 0.0
      %v2864 = vand.u32 %v2247, 4294901760
      %2865 = vmatmul.mubr.f32.gmra.mrb[0].mxu0 %v2864
      %v2866 = vpop.f32.mrb[0].mxu0
      %v2867 = vadd.f32 %v2556, %v2866
      %v2868 = vpop.f32.mrb[0].mxu0
      %2869 = vmatprep.mubr.f32.mxu0 0.0
      %v2870 = vand.u32 %v2250, 4294901760
      %2871 = vmatmul.mubr.f32.gmra.mrb[0].mxu0 %v2870
      %v2872 = vpop.f32.mrb[0].mxu0
      %v2873 = vadd.f32 %v2566, %v2872
      %v2874 = vpop.f32.mrb[0].mxu0
      %2875 = vmatprep.mubr.f32.mxu0 0.0
      %v2876 = vand.u32 %v2253, 4294901760
      %2877 = vmatmul.mubr.f32.gmra.mrb[0].mxu0 %v2876
      %v2878 = vpop.f32.mrb[0].mxu0
      %v2879 = vadd.f32 %v2576, %v2878
      %v2880 = vpop.f32.mrb[0].mxu0
      %2881 = vmatprep.mubr.f32.mxu0 0.0
      %v2882 = vand.u32 %v2256, 4294901760
      %2883 = vmatmul.mubr.f32.gmra.mrb[0].mxu0 %v2882
      %v2884 = vpop.f32.mrb[0].mxu0
      %v2885 = vadd.f32 %v2586, %v2884
      %v2886 = vpop.f32.mrb[0].mxu0
      %2887 = vmatprep.mubr.f32.mxu0 0.0
      %v2888 = vand.u32 %v2259, 4294901760
      %2889 = vmatmul.mubr.f32.gmra.mrb[0].mxu0 %v2888
      %v2890 = vpop.f32.mrb[0].mxu0
      %v2891 = vadd.f32 %v2596, %v2890
      %v2892 = vpop.f32.mrb[0].mxu0
      %2893 = vmatprep.mubr.f32.mxu0 0.0
      %v2894 = vand.u32 %v2262, 4294901760
      %2895 = vmatmul.mubr.f32.gmra.mrb[0].mxu0 %v2894
      %v2896 = vpop.f32.mrb[0].mxu0
      %v2897 = vadd.f32 %v2606, %v2896
      %v2898 = vpop.f32.mrb[0].mxu0
      %2899 = vmatprep.mubr.f32.mxu0 0.0
      %v2900 = vand.u32 %v2265, 4294901760
      %2901 = vmatmul.mubr.f32.gmra.mrb[0].mxu0 %v2900
      %v2902 = vpop.f32.mrb[0].mxu0
      %v2903 = vadd.f32 %v2616, %v2902
      %v2904 = vpop.f32.mrb[0].mxu0
      %2905 = vmatprep.mubr.f32.mxu0 0.0
      %v2906 = vand.u32 %v2268, 4294901760
      %2907 = vmatmul.mubr.f32.gmra.mrb[0].mxu0 %v2906
      %v2908 = vpop.f32.mrb[0].mxu0
      %v2909 = vadd.f32 %v2626, %v2908
      %v2910 = vpop.f32.mrb[0].mxu0
      %2911 = vmatprep.mubr.f32.mxu0 0.0
      %v2912 = vand.u32 %v2271, 4294901760
      %2913 = vmatmul.mubr.f32.gmra.mrb[0].mxu0 %v2912
      %v2914 = vpop.f32.mrb[0].mxu0
      %v2915 = vadd.f32 %v2636, %v2914
      %v2916 = vpop.f32.mrb[0].mxu0
      %2917 = vmatprep.mubr.f32.mxu0 0.0
      %v2918 = vand.u32 %v2274, 4294901760
      %2919 = vmatmul.mubr.f32.gmra.mrb[0].mxu0 %v2918
      %v2920 = vpop.f32.mrb[0].mxu0
      %v2921 = vadd.f32 %v2646, %v2920
      %v2922 = vpop.f32.mrb[0].mxu0
      %2923 = vmatprep.mubr.f32.mxu0 0.0
      %v2924 = vand.u32 %v2277, 4294901760
      %2925 = vmatmul.mubr.f32.gmra.mrb[0].mxu0 %v2924
      %v2926 = vpop.f32.mrb[0].mxu0
      %v2927 = vadd.f32 %v2656, %v2926
      %v2928 = vpop.f32.mrb[0].mxu0
      %2929 = vmatprep.mubr.f32.mxu0 0.0
      %v2930 = vand.u32 %v2280, 4294901760
      %2931 = vmatmul.mubr.f32.gmra.mrb[0].mxu0 %v2930
      %v2932 = vpop.f32.mrb[0].mxu0
      %v2933 = vadd.f32 %v2666, %v2932
      %v2934 = vpop.f32.mrb[0].mxu0
      %2935 = vdwg.mxu0
      %2936 = vmatprep.subr.mxu0 0.0
      %v2937 = vand.u32 %v2176, 4294901760
      %v2938 = vsub.f32 %v2176, %v2937
      %2939 = vmatpush1.msra.mxu0 %v2938
      %2940 = vmatprep.subr.mxu0 0.0
      %v2941 = vand.u32 %v2177, 4294901760
      %v2942 = vsub.f32 %v2177, %v2941
      %2943 = vmatpush1.msra.mxu0 %v2942
      %2944 = vmatprep.subr.mxu0 0.0
      %2945 = vmatpush1.msra.mxu0 0.0
      %2946 = vmatprep.subr.mxu0 0.0
      %2947 = vmatpush1.msra.mxu0 0.0
      %2948 = vmatprep.subr.mxu0 0.0
      %2949 = vmatpush1.msra.mxu0 0.0
      %2950 = vmatprep.subr.mxu0 0.0
      %2951 = vmatpush1.msra.mxu0 0.0
      %2952 = vmatprep.subr.mxu0 0.0
      %2953 = vmatpush1.msra.mxu0 0.0
      %2954 = vmatprep.subr.mxu0 0.0
      %2955 = vmatpush1.msra.mxu0 0.0
      %2956 = vmatprep.subr.mxu0 0.0
      %2957 = vmatpush1.msra.mxu0 0.0
      %2958 = vmatprep.subr.mxu0 0.0
      %2959 = vmatpush1.msra.mxu0 0.0
      %2960 = vmatprep.subr.mxu0 0.0
      %2961 = vmatpush1.msra.mxu0 0.0
      %2962 = vmatprep.subr.mxu0 0.0
      %2963 = vmatpush1.msra.mxu0 0.0
      %2964 = vmatprep.subr.mxu0 0.0
      %2965 = vmatpush1.msra.mxu0 0.0
      %2966 = vmatprep.subr.mxu0 0.0
      %2967 = vmatpush1.msra.mxu0 0.0
      %2968 = vmatprep.subr.mxu0 0.0
      %2969 = vmatpush1.msra.mxu0 0.0
      %2970 = vmatprep.subr.mxu0 0.0
      %2971 = vmatpush1.msra.mxu0 0.0
      %2972 = vmatprep.subr.mxu0 0.0
      %2973 = vmatpush1.msra.mxu0 0.0
      %2974 = vmatprep.subr.mxu0 0.0
      %2975 = vmatpush1.msra.mxu0 0.0
      %2976 = vmatprep.subr.mxu0 0.0
      %2977 = vmatpush1.msra.mxu0 0.0
      %2978 = vmatprep.subr.mxu0 0.0
      %2979 = vmatpush1.msra.mxu0 0.0
      %2980 = vmatprep.subr.mxu0 0.0
      %2981 = vmatpush1.msra.mxu0 0.0
      %2982 = vmatprep.subr.mxu0 0.0
      %2983 = vmatpush1.msra.mxu0 0.0
      %2984 = vmatprep.subr.mxu0 0.0
      %2985 = vmatpush1.msra.mxu0 0.0
      %2986 = vmatprep.subr.mxu0 0.0
      %2987 = vmatpush1.msra.mxu0 0.0
      %2988 = vmatprep.subr.mxu0 0.0
      %2989 = vmatpush1.msra.mxu0 0.0
      %2990 = vmatprep.subr.mxu0 0.0
      %2991 = vmatpush1.msra.mxu0 0.0
      %2992 = vmatprep.subr.mxu0 0.0
      %2993 = vmatpush1.msra.mxu0 0.0
      %2994 = vmatprep.subr.mxu0 0.0
      %2995 = vmatpush1.msra.mxu0 0.0
      %2996 = vmatprep.subr.mxu0 0.0
      %2997 = vmatpush1.msra.mxu0 0.0
      %2998 = vmatprep.subr.mxu0 0.0
      %2999 = vmatpush1.msra.mxu0 0.0
      %3000 = vmatprep.subr.mxu0 0.0
      %3001 = vmatpush1.msra.mxu0 0.0
      %3002 = vmatprep.subr.mxu0 0.0
      %3003 = vmatpush1.msra.mxu0 0.0
      %3004 = vmatprep.mubr.f32.mxu0 0.0
      %v3005 = vand.u32 %v2187, 4294901760
      %v3006 = vsub.f32 %v2187, %v3005
      %3007 = vmatmul.mubr.f32.gmra.mrb[0].mxu0 %v3006
      %v3008 = vpop.f32.mrb[0].mxu0
      %v3009 = vadd.f32 %v2747, %v3008
      %v3010 = vpop.f32.mrb[0].mxu0
      %3011 = vmatprep.mubr.f32.mxu0 0.0
      %v3012 = vand.u32 %v2190, 4294901760
      %v3013 = vsub.f32 %v2190, %v3012
      %3014 = vmatmul.mubr.f32.gmra.mrb[0].mxu0 %v3013
      %v3015 = vpop.f32.mrb[0].mxu0
      %v3016 = vadd.f32 %v2753, %v3015
      %v3017 = vpop.f32.mrb[0].mxu0
      %3018 = vmatprep.mubr.f32.mxu0 0.0
      %v3019 = vand.u32 %v2193, 4294901760
      %v3020 = vsub.f32 %v2193, %v3019
      %3021 = vmatmul.mubr.f32.gmra.mrb[0].mxu0 %v3020
      %v3022 = vpop.f32.mrb[0].mxu0
      %v3023 = vadd.f32 %v2759, %v3022
      %v3024 = vpop.f32.mrb[0].mxu0
      %3025 = vmatprep.mubr.f32.mxu0 0.0
      %v3026 = vand.u32 %v2196, 4294901760
      %v3027 = vsub.f32 %v2196, %v3026
      %3028 = vmatmul.mubr.f32.gmra.mrb[0].mxu0 %v3027
      %v3029 = vpop.f32.mrb[0].mxu0
      %v3030 = vadd.f32 %v2765, %v3029
      %v3031 = vpop.f32.mrb[0].mxu0
      %3032 = vmatprep.mubr.f32.mxu0 0.0
      %v3033 = vand.u32 %v2199, 4294901760
      %v3034 = vsub.f32 %v2199, %v3033
      %3035 = vmatmul.mubr.f32.gmra.mrb[0].mxu0 %v3034
      %v3036 = vpop.f32.mrb[0].mxu0
      %v3037 = vadd.f32 %v2771, %v3036
      %v3038 = vpop.f32.mrb[0].mxu0
      %3039 = vmatprep.mubr.f32.mxu0 0.0
      %v3040 = vand.u32 %v2202, 4294901760
      %v3041 = vsub.f32 %v2202, %v3040
      %3042 = vmatmul.mubr.f32.gmra.mrb[0].mxu0 %v3041
      %v3043 = vpop.f32.mrb[0].mxu0
      %v3044 = vadd.f32 %v2777, %v3043
      %v3045 = vpop.f32.mrb[0].mxu0
      %3046 = vmatprep.mubr.f32.mxu0 0.0
      %v3047 = vand.u32 %v2205, 4294901760
      %v3048 = vsub.f32 %v2205, %v3047
      %3049 = vmatmul.mubr.f32.gmra.mrb[0].mxu0 %v3048
      %v3050 = vpop.f32.mrb[0].mxu0
      %v3051 = vadd.f32 %v2783, %v3050
      %v3052 = vpop.f32.mrb[0].mxu0
      %3053 = vmatprep.mubr.f32.mxu0 0.0
      %v3054 = vand.u32 %v2208, 4294901760
      %v3055 = vsub.f32 %v2208, %v3054
      %3056 = vmatmul.mubr.f32.gmra.mrb[0].mxu0 %v3055
      %v3057 = vpop.f32.mrb[0].mxu0
      %v3058 = vadd.f32 %v2789, %v3057
      %v3059 = vpop.f32.mrb[0].mxu0
      %3060 = vmatprep.mubr.f32.mxu0 0.0
      %v3061 = vand.u32 %v2211, 4294901760
      %v3062 = vsub.f32 %v2211, %v3061
      %3063 = vmatmul.mubr.f32.gmra.mrb[0].mxu0 %v3062
      %v3064 = vpop.f32.mrb[0].mxu0
      %v3065 = vadd.f32 %v2795, %v3064
      %v3066 = vpop.f32.mrb[0].mxu0
      %3067 = vmatprep.mubr.f32.mxu0 0.0
      %v3068 = vand.u32 %v2214, 4294901760
      %v3069 = vsub.f32 %v2214, %v3068
      %3070 = vmatmul.mubr.f32.gmra.mrb[0].mxu0 %v3069
      %v3071 = vpop.f32.mrb[0].mxu0
      %v3072 = vadd.f32 %v2801, %v3071
      %v3073 = vpop.f32.mrb[0].mxu0
      %3074 = vmatprep.mubr.f32.mxu0 0.0
      %v3075 = vand.u32 %v2217, 4294901760
      %v3076 = vsub.f32 %v2217, %v3075
      %3077 = vmatmul.mubr.f32.gmra.mrb[0].mxu0 %v3076
      %v3078 = vpop.f32.mrb[0].mxu0
      %v3079 = vadd.f32 %v2807, %v3078
      %v3080 = vpop.f32.mrb[0].mxu0
      %3081 = vmatprep.mubr.f32.mxu0 0.0
      %v3082 = vand.u32 %v2220, 4294901760
      %v3083 = vsub.f32 %v2220, %v3082
      %3084 = vmatmul.mubr.f32.gmra.mrb[0].mxu0 %v3083
      %v3085 = vpop.f32.mrb[0].mxu0
      %v3086 = vadd.f32 %v2813, %v3085
      %v3087 = vpop.f32.mrb[0].mxu0
      %3088 = vmatprep.mubr.f32.mxu0 0.0
      %v3089 = vand.u32 %v2223, 4294901760
      %v3090 = vsub.f32 %v2223, %v3089
      %3091 = vmatmul.mubr.f32.gmra.mrb[0].mxu0 %v3090
      %v3092 = vpop.f32.mrb[0].mxu0
      %v3093 = vadd.f32 %v2819, %v3092
      %v3094 = vpop.f32.mrb[0].mxu0
      %3095 = vmatprep.mubr.f32.mxu0 0.0
      %v3096 = vand.u32 %v2226, 4294901760
      %v3097 = vsub.f32 %v2226, %v3096
      %3098 = vmatmul.mubr.f32.gmra.mrb[0].mxu0 %v3097
      %v3099 = vpop.f32.mrb[0].mxu0
      %v3100 = vadd.f32 %v2825, %v3099
      %v3101 = vpop.f32.mrb[0].mxu0
      %3102 = vmatprep.mubr.f32.mxu0 0.0
      %v3103 = vand.u32 %v2229, 4294901760
      %v3104 = vsub.f32 %v2229, %v3103
      %3105 = vmatmul.mubr.f32.gmra.mrb[0].mxu0 %v3104
      %v3106 = vpop.f32.mrb[0].mxu0
      %v3107 = vadd.f32 %v2831, %v3106
      %v3108 = vpop.f32.mrb[0].mxu0
      %3109 = vmatprep.mubr.f32.mxu0 0.0
      %v3110 = vand.u32 %v2232, 4294901760
      %v3111 = vsub.f32 %v2232, %v3110
      %3112 = vmatmul.mubr.f32.gmra.mrb[0].mxu0 %v3111
      %v3113 = vpop.f32.mrb[0].mxu0
      %v3114 = vadd.f32 %v2837, %v3113
      %v3115 = vpop.f32.mrb[0].mxu0
      %3116 = vmatprep.mubr.f32.mxu0 0.0
      %v3117 = vand.u32 %v2235, 4294901760
      %v3118 = vsub.f32 %v2235, %v3117
      %3119 = vmatmul.mubr.f32.gmra.mrb[0].mxu0 %v3118
      %v3120 = vpop.f32.mrb[0].mxu0
      %v3121 = vadd.f32 %v2843, %v3120
      %v3122 = vpop.f32.mrb[0].mxu0
      %3123 = vmatprep.mubr.f32.mxu0 0.0
      %v3124 = vand.u32 %v2238, 4294901760
      %v3125 = vsub.f32 %v2238, %v3124
      %3126 = vmatmul.mubr.f32.gmra.mrb[0].mxu0 %v3125
      %v3127 = vpop.f32.mrb[0].mxu0
      %v3128 = vadd.f32 %v2849, %v3127
      %v3129 = vpop.f32.mrb[0].mxu0
      %3130 = vmatprep.mubr.f32.mxu0 0.0
      %v3131 = vand.u32 %v2241, 4294901760
      %v3132 = vsub.f32 %v2241, %v3131
      %3133 = vmatmul.mubr.f32.gmra.mrb[0].mxu0 %v3132
      %v3134 = vpop.f32.mrb[0].mxu0
      %v3135 = vadd.f32 %v2855, %v3134
      %v3136 = vpop.f32.mrb[0].mxu0
      %3137 = vmatprep.mubr.f32.mxu0 0.0
      %v3138 = vand.u32 %v2244, 4294901760
      %v3139 = vsub.f32 %v2244, %v3138
      %3140 = vmatmul.mubr.f32.gmra.mrb[0].mxu0 %v3139
      %v3141 = vpop.f32.mrb[0].mxu0
      %v3142 = vadd.f32 %v2861, %v3141
      %v3143 = vpop.f32.mrb[0].mxu0
      %3144 = vmatprep.mubr.f32.mxu0 0.0
      %v3145 = vand.u32 %v2247, 4294901760
      %v3146 = vsub.f32 %v2247, %v3145
      %3147 = vmatmul.mubr.f32.gmra.mrb[0].mxu0 %v3146
      %v3148 = vpop.f32.mrb[0].mxu0
      %v3149 = vadd.f32 %v2867, %v3148
      %v3150 = vpop.f32.mrb[0].mxu0
      %3151 = vmatprep.mubr.f32.mxu0 0.0
      %v3152 = vand.u32 %v2250, 4294901760
      %v3153 = vsub.f32 %v2250, %v3152
      %3154 = vmatmul.mubr.f32.gmra.mrb[0].mxu0 %v3153
      %v3155 = vpop.f32.mrb[0].mxu0
      %v3156 = vadd.f32 %v2873, %v3155
      %v3157 = vpop.f32.mrb[0].mxu0
      %3158 = vmatprep.mubr.f32.mxu0 0.0
      %v3159 = vand.u32 %v2253, 4294901760
      %v3160 = vsub.f32 %v2253, %v3159
      %3161 = vmatmul.mubr.f32.gmra.mrb[0].mxu0 %v3160
      %v3162 = vpop.f32.mrb[0].mxu0
      %v3163 = vadd.f32 %v2879, %v3162
      %v3164 = vpop.f32.mrb[0].mxu0
      %3165 = vmatprep.mubr.f32.mxu0 0.0
      %v3166 = vand.u32 %v2256, 4294901760
      %v3167 = vsub.f32 %v2256, %v3166
      %3168 = vmatmul.mubr.f32.gmra.mrb[0].mxu0 %v3167
      %v3169 = vpop.f32.mrb[0].mxu0
      %v3170 = vadd.f32 %v2885, %v3169
      %v3171 = vpop.f32.mrb[0].mxu0
      %3172 = vmatprep.mubr.f32.mxu0 0.0
      %v3173 = vand.u32 %v2259, 4294901760
      %v3174 = vsub.f32 %v2259, %v3173
      %3175 = vmatmul.mubr.f32.gmra.mrb[0].mxu0 %v3174
      %v3176 = vpop.f32.mrb[0].mxu0
      %v3177 = vadd.f32 %v2891, %v3176
      %v3178 = vpop.f32.mrb[0].mxu0
      %3179 = vmatprep.mubr.f32.mxu0 0.0
      %v3180 = vand.u32 %v2262, 4294901760
      %v3181 = vsub.f32 %v2262, %v3180
      %3182 = vmatmul.mubr.f32.gmra.mrb[0].mxu0 %v3181
      %v3183 = vpop.f32.mrb[0].mxu0
      %v3184 = vadd.f32 %v2897, %v3183
      %v3185 = vpop.f32.mrb[0].mxu0
      %3186 = vmatprep.mubr.f32.mxu0 0.0
      %v3187 = vand.u32 %v2265, 4294901760
      %v3188 = vsub.f32 %v2265, %v3187
      %3189 = vmatmul.mubr.f32.gmra.mrb[0].mxu0 %v3188
      %v3190 = vpop.f32.mrb[0].mxu0
      %v3191 = vadd.f32 %v2903, %v3190
      %v3192 = vpop.f32.mrb[0].mxu0
      %3193 = vmatprep.mubr.f32.mxu0 0.0
      %v3194 = vand.u32 %v2268, 4294901760
      %v3195 = vsub.f32 %v2268, %v3194
      %3196 = vmatmul.mubr.f32.gmra.mrb[0].mxu0 %v3195
      %v3197 = vpop.f32.mrb[0].mxu0
      %v3198 = vadd.f32 %v2909, %v3197
      %v3199 = vpop.f32.mrb[0].mxu0
      %3200 = vmatprep.mubr.f32.mxu0 0.0
      %v3201 = vand.u32 %v2271, 4294901760
      %v3202 = vsub.f32 %v2271, %v3201
      %3203 = vmatmul.mubr.f32.gmra.mrb[0].mxu0 %v3202
      %v3204 = vpop.f32.mrb[0].mxu0
      %v3205 = vadd.f32 %v2915, %v3204
      %v3206 = vpop.f32.mrb[0].mxu0
      %3207 = vmatprep.mubr.f32.mxu0 0.0
      %v3208 = vand.u32 %v2274, 4294901760
      %v3209 = vsub.f32 %v2274, %v3208
      %3210 = vmatmul.mubr.f32.gmra.mrb[0].mxu0 %v3209
      %v3211 = vpop.f32.mrb[0].mxu0
      %v3212 = vadd.f32 %v2921, %v3211
      %v3213 = vpop.f32.mrb[0].mxu0
      %3214 = vmatprep.mubr.f32.mxu0 0.0
      %v3215 = vand.u32 %v2277, 4294901760
      %v3216 = vsub.f32 %v2277, %v3215
      %3217 = vmatmul.mubr.f32.gmra.mrb[0].mxu0 %v3216
      %v3218 = vpop.f32.mrb[0].mxu0
      %v3219 = vadd.f32 %v2927, %v3218
      %v3220 = vpop.f32.mrb[0].mxu0
      %3221 = vmatprep.mubr.f32.mxu0 0.0
      %v3222 = vand.u32 %v2280, 4294901760
      %v3223 = vsub.f32 %v2280, %v3222
      %3224 = vmatmul.mubr.f32.gmra.mrb[0].mxu0 %v3223
      %v3225 = vpop.f32.mrb[0].mxu0
      %v3226 = vadd.f32 %v2933, %v3225
      %v3227 = vpop.f32.mrb[0].mxu0
      %3228 = vdwg.mxu0
      %3229 = vmatprep.subr.mxu0 0.0
      %v3230 = vand.u32 %v2176, 4294901760
      %3231 = vmatpush1.msra.mxu0 %v3230
      %3232 = vmatprep.subr.mxu0 0.0
      %v3233 = vand.u32 %v2177, 4294901760
      %3234 = vmatpush1.msra.mxu0 %v3233
      %3235 = vmatprep.subr.mxu0 0.0
      %3236 = vmatpush1.msra.mxu0 0.0
      %3237 = vmatprep.subr.mxu0 0.0
      %3238 = vmatpush1.msra.mxu0 0.0
      %3239 = vmatprep.subr.mxu0 0.0
      %3240 = vmatpush1.msra.mxu0 0.0
      %3241 = vmatprep.subr.mxu0 0.0
      %3242 = vmatpush1.msra.mxu0 0.0
      %3243 = vmatprep.subr.mxu0 0.0
      %3244 = vmatpush1.msra.mxu0 0.0
      %3245 = vmatprep.subr.mxu0 0.0
      %3246 = vmatpush1.msra.mxu0 0.0
      %3247 = vmatprep.subr.mxu0 0.0
      %3248 = vmatpush1.msra.mxu0 0.0
      %3249 = vmatprep.subr.mxu0 0.0
      %3250 = vmatpush1.msra.mxu0 0.0
      %3251 = vmatprep.subr.mxu0 0.0
      %3252 = vmatpush1.msra.mxu0 0.0
      %3253 = vmatprep.subr.mxu0 0.0
      %3254 = vmatpush1.msra.mxu0 0.0
      %3255 = vmatprep.subr.mxu0 0.0
      %3256 = vmatpush1.msra.mxu0 0.0
      %3257 = vmatprep.subr.mxu0 0.0
      %3258 = vmatpush1.msra.mxu0 0.0
      %3259 = vmatprep.subr.mxu0 0.0
      %3260 = vmatpush1.msra.mxu0 0.0
      %3261 = vmatprep.subr.mxu0 0.0
      %3262 = vmatpush1.msra.mxu0 0.0
      %3263 = vmatprep.subr.mxu0 0.0
      %3264 = vmatpush1.msra.mxu0 0.0
      %3265 = vmatprep.subr.mxu0 0.0
      %3266 = vmatpush1.msra.mxu0 0.0
      %3267 = vmatprep.subr.mxu0 0.0
      %3268 = vmatpush1.msra.mxu0 0.0
      %3269 = vmatprep.subr.mxu0 0.0
      %3270 = vmatpush1.msra.mxu0 0.0
      %3271 = vmatprep.subr.mxu0 0.0
      %3272 = vmatpush1.msra.mxu0 0.0
      %3273 = vmatprep.subr.mxu0 0.0
      %3274 = vmatpush1.msra.mxu0 0.0
      %3275 = vmatprep.subr.mxu0 0.0
      %3276 = vmatpush1.msra.mxu0 0.0
      %3277 = vmatprep.subr.mxu0 0.0
      %3278 = vmatpush1.msra.mxu0 0.0
      %3279 = vmatprep.subr.mxu0 0.0
      %3280 = vmatpush1.msra.mxu0 0.0
      %3281 = vmatprep.subr.mxu0 0.0
      %3282 = vmatpush1.msra.mxu0 0.0
      %3283 = vmatprep.subr.mxu0 0.0
      %3284 = vmatpush1.msra.mxu0 0.0
      %3285 = vmatprep.subr.mxu0 0.0
      %3286 = vmatpush1.msra.mxu0 0.0
      %3287 = vmatprep.subr.mxu0 0.0
      %3288 = vmatpush1.msra.mxu0 0.0
      %3289 = vmatprep.subr.mxu0 0.0
      %3290 = vmatpush1.msra.mxu0 0.0
      %3291 = vmatprep.subr.mxu0 0.0
      %3292 = vmatpush1.msra.mxu0 0.0
      %3293 = vmatprep.subr.mxu0 0.0
      %3294 = vmatpush1.msra.mxu0 0.0
      %3295 = vmatprep.mubr.f32.mxu0 0.0
      %v3296 = vand.u32 %v2187, 4294901760
      %v3297 = vsub.f32 %v2187, %v3296
      %v3298 = vand.u32 %v3297, 4294901760
      %3299 = vmatmul.mubr.f32.gmra.mrb[0].mxu0 %v3298
      %v3300 = vpop.f32.mrb[0].mxu0
      %v3301 = vadd.f32 %v3009, %v3300
      %v3302 = vpop.f32.mrb[0].mxu0
      %3303 = vmatprep.mubr.f32.mxu0 0.0
      %v3304 = vand.u32 %v2190, 4294901760
      %v3305 = vsub.f32 %v2190, %v3304
      %v3306 = vand.u32 %v3305, 4294901760
      %3307 = vmatmul.mubr.f32.gmra.mrb[0].mxu0 %v3306
      %v3308 = vpop.f32.mrb[0].mxu0
      %v3309 = vadd.f32 %v3016, %v3308
      %v3310 = vpop.f32.mrb[0].mxu0
      %3311 = vmatprep.mubr.f32.mxu0 0.0
      %v3312 = vand.u32 %v2193, 4294901760
      %v3313 = vsub.f32 %v2193, %v3312
      %v3314 = vand.u32 %v3313, 4294901760
      %3315 = vmatmul.mubr.f32.gmra.mrb[0].mxu0 %v3314
      %v3316 = vpop.f32.mrb[0].mxu0
      %v3317 = vadd.f32 %v3023, %v3316
      %v3318 = vpop.f32.mrb[0].mxu0
      %3319 = vmatprep.mubr.f32.mxu0 0.0
      %v3320 = vand.u32 %v2196, 4294901760
      %v3321 = vsub.f32 %v2196, %v3320
      %v3322 = vand.u32 %v3321, 4294901760
      %3323 = vmatmul.mubr.f32.gmra.mrb[0].mxu0 %v3322
      %v3324 = vpop.f32.mrb[0].mxu0
      %v3325 = vadd.f32 %v3030, %v3324
      %v3326 = vpop.f32.mrb[0].mxu0
      %3327 = vmatprep.mubr.f32.mxu0 0.0
      %v3328 = vand.u32 %v2199, 4294901760
      %v3329 = vsub.f32 %v2199, %v3328
      %v3330 = vand.u32 %v3329, 4294901760
      %3331 = vmatmul.mubr.f32.gmra.mrb[0].mxu0 %v3330
      %v3332 = vpop.f32.mrb[0].mxu0
      %v3333 = vadd.f32 %v3037, %v3332
      %v3334 = vpop.f32.mrb[0].mxu0
      %3335 = vmatprep.mubr.f32.mxu0 0.0
      %v3336 = vand.u32 %v2202, 4294901760
      %v3337 = vsub.f32 %v2202, %v3336
      %v3338 = vand.u32 %v3337, 4294901760
      %3339 = vmatmul.mubr.f32.gmra.mrb[0].mxu0 %v3338
      %v3340 = vpop.f32.mrb[0].mxu0
      %v3341 = vadd.f32 %v3044, %v3340
      %v3342 = vpop.f32.mrb[0].mxu0
      %3343 = vmatprep.mubr.f32.mxu0 0.0
      %v3344 = vand.u32 %v2205, 4294901760
      %v3345 = vsub.f32 %v2205, %v3344
      %v3346 = vand.u32 %v3345, 4294901760
      %3347 = vmatmul.mubr.f32.gmra.mrb[0].mxu0 %v3346
      %v3348 = vpop.f32.mrb[0].mxu0
      %v3349 = vadd.f32 %v3051, %v3348
      %v3350 = vpop.f32.mrb[0].mxu0
      %3351 = vmatprep.mubr.f32.mxu0 0.0
      %v3352 = vand.u32 %v2208, 4294901760
      %v3353 = vsub.f32 %v2208, %v3352
      %v3354 = vand.u32 %v3353, 4294901760
      %3355 = vmatmul.mubr.f32.gmra.mrb[0].mxu0 %v3354
      %v3356 = vpop.f32.mrb[0].mxu0
      %v3357 = vadd.f32 %v3058, %v3356
      %v3358 = vpop.f32.mrb[0].mxu0
      %3359 = vmatprep.mubr.f32.mxu0 0.0
      %v3360 = vand.u32 %v2211, 4294901760
      %v3361 = vsub.f32 %v2211, %v3360
      %v3362 = vand.u32 %v3361, 4294901760
      %3363 = vmatmul.mubr.f32.gmra.mrb[0].mxu0 %v3362
      %v3364 = vpop.f32.mrb[0].mxu0
      %v3365 = vadd.f32 %v3065, %v3364
      %v3366 = vpop.f32.mrb[0].mxu0
      %3367 = vmatprep.mubr.f32.mxu0 0.0
      %v3368 = vand.u32 %v2214, 4294901760
      %v3369 = vsub.f32 %v2214, %v3368
      %v3370 = vand.u32 %v3369, 4294901760
      %3371 = vmatmul.mubr.f32.gmra.mrb[0].mxu0 %v3370
      %v3372 = vpop.f32.mrb[0].mxu0
      %v3373 = vadd.f32 %v3072, %v3372
      %v3374 = vpop.f32.mrb[0].mxu0
      %3375 = vmatprep.mubr.f32.mxu0 0.0
      %v3376 = vand.u32 %v2217, 4294901760
      %v3377 = vsub.f32 %v2217, %v3376
      %v3378 = vand.u32 %v3377, 4294901760
      %3379 = vmatmul.mubr.f32.gmra.mrb[0].mxu0 %v3378
      %v3380 = vpop.f32.mrb[0].mxu0
      %v3381 = vadd.f32 %v3079, %v3380
      %v3382 = vpop.f32.mrb[0].mxu0
      %3383 = vmatprep.mubr.f32.mxu0 0.0
      %v3384 = vand.u32 %v2220, 4294901760
      %v3385 = vsub.f32 %v2220, %v3384
      %v3386 = vand.u32 %v3385, 4294901760
      %3387 = vmatmul.mubr.f32.gmra.mrb[0].mxu0 %v3386
      %v3388 = vpop.f32.mrb[0].mxu0
      %v3389 = vadd.f32 %v3086, %v3388
      %v3390 = vpop.f32.mrb[0].mxu0
      %3391 = vmatprep.mubr.f32.mxu0 0.0
      %v3392 = vand.u32 %v2223, 4294901760
      %v3393 = vsub.f32 %v2223, %v3392
      %v3394 = vand.u32 %v3393, 4294901760
      %3395 = vmatmul.mubr.f32.gmra.mrb[0].mxu0 %v3394
      %v3396 = vpop.f32.mrb[0].mxu0
      %v3397 = vadd.f32 %v3093, %v3396
      %v3398 = vpop.f32.mrb[0].mxu0
      %3399 = vmatprep.mubr.f32.mxu0 0.0
      %v3400 = vand.u32 %v2226, 4294901760
      %v3401 = vsub.f32 %v2226, %v3400
      %v3402 = vand.u32 %v3401, 4294901760
      %3403 = vmatmul.mubr.f32.gmra.mrb[0].mxu0 %v3402
      %v3404 = vpop.f32.mrb[0].mxu0
      %v3405 = vadd.f32 %v3100, %v3404
      %v3406 = vpop.f32.mrb[0].mxu0
      %3407 = vmatprep.mubr.f32.mxu0 0.0
      %v3408 = vand.u32 %v2229, 4294901760
      %v3409 = vsub.f32 %v2229, %v3408
      %v3410 = vand.u32 %v3409, 4294901760
      %3411 = vmatmul.mubr.f32.gmra.mrb[0].mxu0 %v3410
      %v3412 = vpop.f32.mrb[0].mxu0
      %v3413 = vadd.f32 %v3107, %v3412
      %v3414 = vpop.f32.mrb[0].mxu0
      %3415 = vmatprep.mubr.f32.mxu0 0.0
      %v3416 = vand.u32 %v2232, 4294901760
      %v3417 = vsub.f32 %v2232, %v3416
      %v3418 = vand.u32 %v3417, 4294901760
      %3419 = vmatmul.mubr.f32.gmra.mrb[0].mxu0 %v3418
      %v3420 = vpop.f32.mrb[0].mxu0
      %v3421 = vadd.f32 %v3114, %v3420
      %v3422 = vpop.f32.mrb[0].mxu0
      %3423 = vmatprep.mubr.f32.mxu0 0.0
      %v3424 = vand.u32 %v2235, 4294901760
      %v3425 = vsub.f32 %v2235, %v3424
      %v3426 = vand.u32 %v3425, 4294901760
      %3427 = vmatmul.mubr.f32.gmra.mrb[0].mxu0 %v3426
      %v3428 = vpop.f32.mrb[0].mxu0
      %v3429 = vadd.f32 %v3121, %v3428
      %v3430 = vpop.f32.mrb[0].mxu0
      %3431 = vmatprep.mubr.f32.mxu0 0.0
      %v3432 = vand.u32 %v2238, 4294901760
      %v3433 = vsub.f32 %v2238, %v3432
      %v3434 = vand.u32 %v3433, 4294901760
      %3435 = vmatmul.mubr.f32.gmra.mrb[0].mxu0 %v3434
      %v3436 = vpop.f32.mrb[0].mxu0
      %v3437 = vadd.f32 %v3128, %v3436
      %v3438 = vpop.f32.mrb[0].mxu0
      %3439 = vmatprep.mubr.f32.mxu0 0.0
      %v3440 = vand.u32 %v2241, 4294901760
      %v3441 = vsub.f32 %v2241, %v3440
      %v3442 = vand.u32 %v3441, 4294901760
      %3443 = vmatmul.mubr.f32.gmra.mrb[0].mxu0 %v3442
      %v3444 = vpop.f32.mrb[0].mxu0
      %v3445 = vadd.f32 %v3135, %v3444
      %v3446 = vpop.f32.mrb[0].mxu0
      %3447 = vmatprep.mubr.f32.mxu0 0.0
      %v3448 = vand.u32 %v2244, 4294901760
      %v3449 = vsub.f32 %v2244, %v3448
      %v3450 = vand.u32 %v3449, 4294901760
      %3451 = vmatmul.mubr.f32.gmra.mrb[0].mxu0 %v3450
      %v3452 = vpop.f32.mrb[0].mxu0
      %v3453 = vadd.f32 %v3142, %v3452
      %v3454 = vpop.f32.mrb[0].mxu0
      %3455 = vmatprep.mubr.f32.mxu0 0.0
      %v3456 = vand.u32 %v2247, 4294901760
      %v3457 = vsub.f32 %v2247, %v3456
      %v3458 = vand.u32 %v3457, 4294901760
      %3459 = vmatmul.mubr.f32.gmra.mrb[0].mxu0 %v3458
      %v3460 = vpop.f32.mrb[0].mxu0
      %v3461 = vadd.f32 %v3149, %v3460
      %v3462 = vpop.f32.mrb[0].mxu0
      %3463 = vmatprep.mubr.f32.mxu0 0.0
      %v3464 = vand.u32 %v2250, 4294901760
      %v3465 = vsub.f32 %v2250, %v3464
      %v3466 = vand.u32 %v3465, 4294901760
      %3467 = vmatmul.mubr.f32.gmra.mrb[0].mxu0 %v3466
      %v3468 = vpop.f32.mrb[0].mxu0
      %v3469 = vadd.f32 %v3156, %v3468
      %v3470 = vpop.f32.mrb[0].mxu0
      %3471 = vmatprep.mubr.f32.mxu0 0.0
      %v3472 = vand.u32 %v2253, 4294901760
      %v3473 = vsub.f32 %v2253, %v3472
      %v3474 = vand.u32 %v3473, 4294901760
      %3475 = vmatmul.mubr.f32.gmra.mrb[0].mxu0 %v3474
      %v3476 = vpop.f32.mrb[0].mxu0
      %v3477 = vadd.f32 %v3163, %v3476
      %v3478 = vpop.f32.mrb[0].mxu0
      %3479 = vmatprep.mubr.f32.mxu0 0.0
      %v3480 = vand.u32 %v2256, 4294901760
      %v3481 = vsub.f32 %v2256, %v3480
      %v3482 = vand.u32 %v3481, 4294901760
      %3483 = vmatmul.mubr.f32.gmra.mrb[0].mxu0 %v3482
      %v3484 = vpop.f32.mrb[0].mxu0
      %v3485 = vadd.f32 %v3170, %v3484
      %v3486 = vpop.f32.mrb[0].mxu0
      %3487 = vmatprep.mubr.f32.mxu0 0.0
      %v3488 = vand.u32 %v2259, 4294901760
      %v3489 = vsub.f32 %v2259, %v3488
      %v3490 = vand.u32 %v3489, 4294901760
      %3491 = vmatmul.mubr.f32.gmra.mrb[0].mxu0 %v3490
      %v3492 = vpop.f32.mrb[0].mxu0
      %v3493 = vadd.f32 %v3177, %v3492
      %v3494 = vpop.f32.mrb[0].mxu0
      %3495 = vmatprep.mubr.f32.mxu0 0.0
      %v3496 = vand.u32 %v2262, 4294901760
      %v3497 = vsub.f32 %v2262, %v3496
      %v3498 = vand.u32 %v3497, 4294901760
      %3499 = vmatmul.mubr.f32.gmra.mrb[0].mxu0 %v3498
      %v3500 = vpop.f32.mrb[0].mxu0
      %v3501 = vadd.f32 %v3184, %v3500
      %v3502 = vpop.f32.mrb[0].mxu0
      %3503 = vmatprep.mubr.f32.mxu0 0.0
      %v3504 = vand.u32 %v2265, 4294901760
      %v3505 = vsub.f32 %v2265, %v3504
      %v3506 = vand.u32 %v3505, 4294901760
      %3507 = vmatmul.mubr.f32.gmra.mrb[0].mxu0 %v3506
      %v3508 = vpop.f32.mrb[0].mxu0
      %v3509 = vadd.f32 %v3191, %v3508
      %v3510 = vpop.f32.mrb[0].mxu0
      %3511 = vmatprep.mubr.f32.mxu0 0.0
      %v3512 = vand.u32 %v2268, 4294901760
      %v3513 = vsub.f32 %v2268, %v3512
      %v3514 = vand.u32 %v3513, 4294901760
      %3515 = vmatmul.mubr.f32.gmra.mrb[0].mxu0 %v3514
      %v3516 = vpop.f32.mrb[0].mxu0
      %v3517 = vadd.f32 %v3198, %v3516
      %v3518 = vpop.f32.mrb[0].mxu0
      %3519 = vmatprep.mubr.f32.mxu0 0.0
      %v3520 = vand.u32 %v2271, 4294901760
      %v3521 = vsub.f32 %v2271, %v3520
      %v3522 = vand.u32 %v3521, 4294901760
      %3523 = vmatmul.mubr.f32.gmra.mrb[0].mxu0 %v3522
      %v3524 = vpop.f32.mrb[0].mxu0
      %v3525 = vadd.f32 %v3205, %v3524
      %v3526 = vpop.f32.mrb[0].mxu0
      %3527 = vmatprep.mubr.f32.mxu0 0.0
      %v3528 = vand.u32 %v2274, 4294901760
      %v3529 = vsub.f32 %v2274, %v3528
      %v3530 = vand.u32 %v3529, 4294901760
      %3531 = vmatmul.mubr.f32.gmra.mrb[0].mxu0 %v3530
      %v3532 = vpop.f32.mrb[0].mxu0
      %v3533 = vadd.f32 %v3212, %v3532
      %v3534 = vpop.f32.mrb[0].mxu0
      %3535 = vmatprep.mubr.f32.mxu0 0.0
      %v3536 = vand.u32 %v2277, 4294901760
      %v3537 = vsub.f32 %v2277, %v3536
      %v3538 = vand.u32 %v3537, 4294901760
      %3539 = vmatmul.mubr.f32.gmra.mrb[0].mxu0 %v3538
      %v3540 = vpop.f32.mrb[0].mxu0
      %v3541 = vadd.f32 %v3219, %v3540
      %v3542 = vpop.f32.mrb[0].mxu0
      %3543 = vmatprep.mubr.f32.mxu0 0.0
      %v3544 = vand.u32 %v2280, 4294901760
      %v3545 = vsub.f32 %v2280, %v3544
      %v3546 = vand.u32 %v3545, 4294901760
      %3547 = vmatmul.mubr.f32.gmra.mrb[0].mxu0 %v3546
      %v3548 = vpop.f32.mrb[0].mxu0
      %v3549 = vadd.f32 %v3226, %v3548
      %v3550 = vpop.f32.mrb[0].mxu0
      %3551 = vdwg.mxu0
      %3552 = vmatprep.subr.mxu0 0.0
      %v3553 = vand.u32 %v2176, 4294901760
      %v3554 = vsub.f32 %v2176, %v3553
      %v3555 = vand.u32 %v3554, 4294901760
      %3556 = vmatpush1.msra.mxu0 %v3555
      %3557 = vmatprep.subr.mxu0 0.0
      %v3558 = vand.u32 %v2177, 4294901760
      %v3559 = vsub.f32 %v2177, %v3558
      %v3560 = vand.u32 %v3559, 4294901760
      %3561 = vmatpush1.msra.mxu0 %v3560
      %3562 = vmatprep.subr.mxu0 0.0
      %3563 = vmatpush1.msra.mxu0 0.0
      %3564 = vmatprep.subr.mxu0 0.0
      %3565 = vmatpush1.msra.mxu0 0.0
      %3566 = vmatprep.subr.mxu0 0.0
      %3567 = vmatpush1.msra.mxu0 0.0
      %3568 = vmatprep.subr.mxu0 0.0
      %3569 = vmatpush1.msra.mxu0 0.0
      %3570 = vmatprep.subr.mxu0 0.0
      %3571 = vmatpush1.msra.mxu0 0.0
      %3572 = vmatprep.subr.mxu0 0.0
      %3573 = vmatpush1.msra.mxu0 0.0
      %3574 = vmatprep.subr.mxu0 0.0
      %3575 = vmatpush1.msra.mxu0 0.0
      %3576 = vmatprep.subr.mxu0 0.0
      %3577 = vmatpush1.msra.mxu0 0.0
      %3578 = vmatprep.subr.mxu0 0.0
      %3579 = vmatpush1.msra.mxu0 0.0
      %3580 = vmatprep.subr.mxu0 0.0
      %3581 = vmatpush1.msra.mxu0 0.0
      %3582 = vmatprep.subr.mxu0 0.0
      %3583 = vmatpush1.msra.mxu0 0.0
      %3584 = vmatprep.subr.mxu0 0.0
      %3585 = vmatpush1.msra.mxu0 0.0
      %3586 = vmatprep.subr.mxu0 0.0
      %3587 = vmatpush1.msra.mxu0 0.0
      %3588 = vmatprep.subr.mxu0 0.0
      %3589 = vmatpush1.msra.mxu0 0.0
      %3590 = vmatprep.subr.mxu0 0.0
      %3591 = vmatpush1.msra.mxu0 0.0
      %3592 = vmatprep.subr.mxu0 0.0
      %3593 = vmatpush1.msra.mxu0 0.0
      %3594 = vmatprep.subr.mxu0 0.0
      %3595 = vmatpush1.msra.mxu0 0.0
      %3596 = vmatprep.subr.mxu0 0.0
      %3597 = vmatpush1.msra.mxu0 0.0
      %3598 = vmatprep.subr.mxu0 0.0
      %3599 = vmatpush1.msra.mxu0 0.0
      %3600 = vmatprep.subr.mxu0 0.0
      %3601 = vmatpush1.msra.mxu0 0.0
      %3602 = vmatprep.subr.mxu0 0.0
      %3603 = vmatpush1.msra.mxu0 0.0
      %3604 = vmatprep.subr.mxu0 0.0
      %3605 = vmatpush1.msra.mxu0 0.0
      %3606 = vmatprep.subr.mxu0 0.0
      %3607 = vmatpush1.msra.mxu0 0.0
      %3608 = vmatprep.subr.mxu0 0.0
      %3609 = vmatpush1.msra.mxu0 0.0
      %3610 = vmatprep.subr.mxu0 0.0
      %3611 = vmatpush1.msra.mxu0 0.0
      %3612 = vmatprep.subr.mxu0 0.0
      %3613 = vmatpush1.msra.mxu0 0.0
      %3614 = vmatprep.subr.mxu0 0.0
      %3615 = vmatpush1.msra.mxu0 0.0
      %3616 = vmatprep.subr.mxu0 0.0
      %3617 = vmatpush1.msra.mxu0 0.0
      %3618 = vmatprep.subr.mxu0 0.0
      %3619 = vmatpush1.msra.mxu0 0.0
      %3620 = vmatprep.subr.mxu0 0.0
      %3621 = vmatpush1.msra.mxu0 0.0
      %3622 = vmatprep.mubr.f32.mxu0 0.0
      %v3623 = vand.u32 %v2187, 4294901760
      %3624 = vmatmul.mubr.f32.gmra.mrb[0].mxu0 %v3623
      %v3625 = vpop.f32.mrb[0].mxu0
      %v3626 = vadd.f32 %v3301, %v3625
      %v3627 = vpop.f32.mrb[0].mxu0
      %3628 = vmatprep.mubr.f32.mxu0 0.0
      %v3629 = vand.u32 %v2190, 4294901760
      %3630 = vmatmul.mubr.f32.gmra.mrb[0].mxu0 %v3629
      %v3631 = vpop.f32.mrb[0].mxu0
      %v3632 = vadd.f32 %v3309, %v3631
      %v3633 = vpop.f32.mrb[0].mxu0
      %3634 = vmatprep.mubr.f32.mxu0 0.0
      %v3635 = vand.u32 %v2193, 4294901760
      %3636 = vmatmul.mubr.f32.gmra.mrb[0].mxu0 %v3635
      %v3637 = vpop.f32.mrb[0].mxu0
      %v3638 = vadd.f32 %v3317, %v3637
      %v3639 = vpop.f32.mrb[0].mxu0
      %3640 = vmatprep.mubr.f32.mxu0 0.0
      %v3641 = vand.u32 %v2196, 4294901760
      %3642 = vmatmul.mubr.f32.gmra.mrb[0].mxu0 %v3641
      %v3643 = vpop.f32.mrb[0].mxu0
      %v3644 = vadd.f32 %v3325, %v3643
      %v3645 = vpop.f32.mrb[0].mxu0
      %3646 = vmatprep.mubr.f32.mxu0 0.0
      %v3647 = vand.u32 %v2199, 4294901760
      %3648 = vmatmul.mubr.f32.gmra.mrb[0].mxu0 %v3647
      %v3649 = vpop.f32.mrb[0].mxu0
      %v3650 = vadd.f32 %v3333, %v3649
      %v3651 = vpop.f32.mrb[0].mxu0
      %3652 = vmatprep.mubr.f32.mxu0 0.0
      %v3653 = vand.u32 %v2202, 4294901760
      %3654 = vmatmul.mubr.f32.gmra.mrb[0].mxu0 %v3653
      %v3655 = vpop.f32.mrb[0].mxu0
      %v3656 = vadd.f32 %v3341, %v3655
      %v3657 = vpop.f32.mrb[0].mxu0
      %3658 = vmatprep.mubr.f32.mxu0 0.0
      %v3659 = vand.u32 %v2205, 4294901760
      %3660 = vmatmul.mubr.f32.gmra.mrb[0].mxu0 %v3659
      %v3661 = vpop.f32.mrb[0].mxu0
      %v3662 = vadd.f32 %v3349, %v3661
      %v3663 = vpop.f32.mrb[0].mxu0
      %3664 = vmatprep.mubr.f32.mxu0 0.0
      %v3665 = vand.u32 %v2208, 4294901760
      %3666 = vmatmul.mubr.f32.gmra.mrb[0].mxu0 %v3665
      %v3667 = vpop.f32.mrb[0].mxu0
      %v3668 = vadd.f32 %v3357, %v3667
      %v3669 = vpop.f32.mrb[0].mxu0
      %3670 = vmatprep.mubr.f32.mxu0 0.0
      %v3671 = vand.u32 %v2211, 4294901760
      %3672 = vmatmul.mubr.f32.gmra.mrb[0].mxu0 %v3671
      %v3673 = vpop.f32.mrb[0].mxu0
      %v3674 = vadd.f32 %v3365, %v3673
      %v3675 = vpop.f32.mrb[0].mxu0
      %3676 = vmatprep.mubr.f32.mxu0 0.0
      %v3677 = vand.u32 %v2214, 4294901760
      %3678 = vmatmul.mubr.f32.gmra.mrb[0].mxu0 %v3677
      %v3679 = vpop.f32.mrb[0].mxu0
      %v3680 = vadd.f32 %v3373, %v3679
      %v3681 = vpop.f32.mrb[0].mxu0
      %3682 = vmatprep.mubr.f32.mxu0 0.0
      %v3683 = vand.u32 %v2217, 4294901760
      %3684 = vmatmul.mubr.f32.gmra.mrb[0].mxu0 %v3683
      %v3685 = vpop.f32.mrb[0].mxu0
      %v3686 = vadd.f32 %v3381, %v3685
      %v3687 = vpop.f32.mrb[0].mxu0
      %3688 = vmatprep.mubr.f32.mxu0 0.0
      %v3689 = vand.u32 %v2220, 4294901760
      %3690 = vmatmul.mubr.f32.gmra.mrb[0].mxu0 %v3689
      %v3691 = vpop.f32.mrb[0].mxu0
      %v3692 = vadd.f32 %v3389, %v3691
      %v3693 = vpop.f32.mrb[0].mxu0
      %3694 = vmatprep.mubr.f32.mxu0 0.0
      %v3695 = vand.u32 %v2223, 4294901760
      %3696 = vmatmul.mubr.f32.gmra.mrb[0].mxu0 %v3695
      %v3697 = vpop.f32.mrb[0].mxu0
      %v3698 = vadd.f32 %v3397, %v3697
      %v3699 = vpop.f32.mrb[0].mxu0
      %3700 = vmatprep.mubr.f32.mxu0 0.0
      %v3701 = vand.u32 %v2226, 4294901760
      %3702 = vmatmul.mubr.f32.gmra.mrb[0].mxu0 %v3701
      %v3703 = vpop.f32.mrb[0].mxu0
      %v3704 = vadd.f32 %v3405, %v3703
      %v3705 = vpop.f32.mrb[0].mxu0
      %3706 = vmatprep.mubr.f32.mxu0 0.0
      %v3707 = vand.u32 %v2229, 4294901760
      %3708 = vmatmul.mubr.f32.gmra.mrb[0].mxu0 %v3707
      %v3709 = vpop.f32.mrb[0].mxu0
      %v3710 = vadd.f32 %v3413, %v3709
      %v3711 = vpop.f32.mrb[0].mxu0
      %3712 = vmatprep.mubr.f32.mxu0 0.0
      %v3713 = vand.u32 %v2232, 4294901760
      %3714 = vmatmul.mubr.f32.gmra.mrb[0].mxu0 %v3713
      %v3715 = vpop.f32.mrb[0].mxu0
      %v3716 = vadd.f32 %v3421, %v3715
      %v3717 = vpop.f32.mrb[0].mxu0
      %3718 = vmatprep.mubr.f32.mxu0 0.0
      %v3719 = vand.u32 %v2235, 4294901760
      %3720 = vmatmul.mubr.f32.gmra.mrb[0].mxu0 %v3719
      %v3721 = vpop.f32.mrb[0].mxu0
      %v3722 = vadd.f32 %v3429, %v3721
      %v3723 = vpop.f32.mrb[0].mxu0
      %3724 = vmatprep.mubr.f32.mxu0 0.0
      %v3725 = vand.u32 %v2238, 4294901760
      %3726 = vmatmul.mubr.f32.gmra.mrb[0].mxu0 %v3725
      %v3727 = vpop.f32.mrb[0].mxu0
      %v3728 = vadd.f32 %v3437, %v3727
      %v3729 = vpop.f32.mrb[0].mxu0
      %3730 = vmatprep.mubr.f32.mxu0 0.0
      %v3731 = vand.u32 %v2241, 4294901760
      %3732 = vmatmul.mubr.f32.gmra.mrb[0].mxu0 %v3731
      %v3733 = vpop.f32.mrb[0].mxu0
      %v3734 = vadd.f32 %v3445, %v3733
      %v3735 = vpop.f32.mrb[0].mxu0
      %3736 = vmatprep.mubr.f32.mxu0 0.0
      %v3737 = vand.u32 %v2244, 4294901760
      %3738 = vmatmul.mubr.f32.gmra.mrb[0].mxu0 %v3737
      %v3739 = vpop.f32.mrb[0].mxu0
      %v3740 = vadd.f32 %v3453, %v3739
      %v3741 = vpop.f32.mrb[0].mxu0
      %3742 = vmatprep.mubr.f32.mxu0 0.0
      %v3743 = vand.u32 %v2247, 4294901760
      %3744 = vmatmul.mubr.f32.gmra.mrb[0].mxu0 %v3743
      %v3745 = vpop.f32.mrb[0].mxu0
      %v3746 = vadd.f32 %v3461, %v3745
      %v3747 = vpop.f32.mrb[0].mxu0
      %3748 = vmatprep.mubr.f32.mxu0 0.0
      %v3749 = vand.u32 %v2250, 4294901760
      %3750 = vmatmul.mubr.f32.gmra.mrb[0].mxu0 %v3749
      %v3751 = vpop.f32.mrb[0].mxu0
      %v3752 = vadd.f32 %v3469, %v3751
      %v3753 = vpop.f32.mrb[0].mxu0
      %3754 = vmatprep.mubr.f32.mxu0 0.0
      %v3755 = vand.u32 %v2253, 4294901760
      %3756 = vmatmul.mubr.f32.gmra.mrb[0].mxu0 %v3755
      %v3757 = vpop.f32.mrb[0].mxu0
      %v3758 = vadd.f32 %v3477, %v3757
      %v3759 = vpop.f32.mrb[0].mxu0
      %3760 = vmatprep.mubr.f32.mxu0 0.0
      %v3761 = vand.u32 %v2256, 4294901760
      %3762 = vmatmul.mubr.f32.gmra.mrb[0].mxu0 %v3761
      %v3763 = vpop.f32.mrb[0].mxu0
      %v3764 = vadd.f32 %v3485, %v3763
      %v3765 = vpop.f32.mrb[0].mxu0
      %3766 = vmatprep.mubr.f32.mxu0 0.0
      %v3767 = vand.u32 %v2259, 4294901760
      %3768 = vmatmul.mubr.f32.gmra.mrb[0].mxu0 %v3767
      %v3769 = vpop.f32.mrb[0].mxu0
      %v3770 = vadd.f32 %v3493, %v3769
      %v3771 = vpop.f32.mrb[0].mxu0
      %3772 = vmatprep.mubr.f32.mxu0 0.0
      %v3773 = vand.u32 %v2262, 4294901760
      %3774 = vmatmul.mubr.f32.gmra.mrb[0].mxu0 %v3773
      %v3775 = vpop.f32.mrb[0].mxu0
      %v3776 = vadd.f32 %v3501, %v3775
      %v3777 = vpop.f32.mrb[0].mxu0
      %3778 = vmatprep.mubr.f32.mxu0 0.0
      %v3779 = vand.u32 %v2265, 4294901760
      %3780 = vmatmul.mubr.f32.gmra.mrb[0].mxu0 %v3779
      %v3781 = vpop.f32.mrb[0].mxu0
      %v3782 = vadd.f32 %v3509, %v3781
      %v3783 = vpop.f32.mrb[0].mxu0
      %3784 = vmatprep.mubr.f32.mxu0 0.0
      %v3785 = vand.u32 %v2268, 4294901760
      %3786 = vmatmul.mubr.f32.gmra.mrb[0].mxu0 %v3785
      %v3787 = vpop.f32.mrb[0].mxu0
      %v3788 = vadd.f32 %v3517, %v3787
      %v3789 = vpop.f32.mrb[0].mxu0
      %3790 = vmatprep.mubr.f32.mxu0 0.0
      %v3791 = vand.u32 %v2271, 4294901760
      %3792 = vmatmul.mubr.f32.gmra.mrb[0].mxu0 %v3791
      %v3793 = vpop.f32.mrb[0].mxu0
      %v3794 = vadd.f32 %v3525, %v3793
      %v3795 = vpop.f32.mrb[0].mxu0
      %3796 = vmatprep.mubr.f32.mxu0 0.0
      %v3797 = vand.u32 %v2274, 4294901760
      %3798 = vmatmul.mubr.f32.gmra.mrb[0].mxu0 %v3797
      %v3799 = vpop.f32.mrb[0].mxu0
      %v3800 = vadd.f32 %v3533, %v3799
      %v3801 = vpop.f32.mrb[0].mxu0
      %3802 = vmatprep.mubr.f32.mxu0 0.0
      %v3803 = vand.u32 %v2277, 4294901760
      %3804 = vmatmul.mubr.f32.gmra.mrb[0].mxu0 %v3803
      %v3805 = vpop.f32.mrb[0].mxu0
      %v3806 = vadd.f32 %v3541, %v3805
      %v3807 = vpop.f32.mrb[0].mxu0
      %3808 = vmatprep.mubr.f32.mxu0 0.0
      %v3809 = vand.u32 %v2280, 4294901760
      %3810 = vmatmul.mubr.f32.gmra.mrb[0].mxu0 %v3809
      %v3811 = vpop.f32.mrb[0].mxu0
      %v3812 = vadd.f32 %v3549, %v3811
      %v3813 = vpop.f32.mrb[0].mxu0
      %3814 = vdwg.mxu0
      %3815 = vmatprep.subr.mxu0 0.0
      %v3816 = vand.u32 %v2176, 4294901760
      %3817 = vmatpush1.msra.mxu0 %v3816
      %3818 = vmatprep.subr.mxu0 0.0
      %v3819 = vand.u32 %v2177, 4294901760
      %3820 = vmatpush1.msra.mxu0 %v3819
      %3821 = vmatprep.subr.mxu0 0.0
      %3822 = vmatpush1.msra.mxu0 0.0
      %3823 = vmatprep.subr.mxu0 0.0
      %3824 = vmatpush1.msra.mxu0 0.0
      %3825 = vmatprep.subr.mxu0 0.0
      %3826 = vmatpush1.msra.mxu0 0.0
      %3827 = vmatprep.subr.mxu0 0.0
      %3828 = vmatpush1.msra.mxu0 0.0
      %3829 = vmatprep.subr.mxu0 0.0
      %3830 = vmatpush1.msra.mxu0 0.0
      %3831 = vmatprep.subr.mxu0 0.0
      %3832 = vmatpush1.msra.mxu0 0.0
      %3833 = vmatprep.subr.mxu0 0.0
      %3834 = vmatpush1.msra.mxu0 0.0
      %3835 = vmatprep.subr.mxu0 0.0
      %3836 = vmatpush1.msra.mxu0 0.0
      %3837 = vmatprep.subr.mxu0 0.0
      %3838 = vmatpush1.msra.mxu0 0.0
      %3839 = vmatprep.subr.mxu0 0.0
      %3840 = vmatpush1.msra.mxu0 0.0
      %3841 = vmatprep.subr.mxu0 0.0
      %3842 = vmatpush1.msra.mxu0 0.0
      %3843 = vmatprep.subr.mxu0 0.0
      %3844 = vmatpush1.msra.mxu0 0.0
      %3845 = vmatprep.subr.mxu0 0.0
      %3846 = vmatpush1.msra.mxu0 0.0
      %3847 = vmatprep.subr.mxu0 0.0
      %3848 = vmatpush1.msra.mxu0 0.0
      %3849 = vmatprep.subr.mxu0 0.0
      %3850 = vmatpush1.msra.mxu0 0.0
      %3851 = vmatprep.subr.mxu0 0.0
      %3852 = vmatpush1.msra.mxu0 0.0
      %3853 = vmatprep.subr.mxu0 0.0
      %3854 = vmatpush1.msra.mxu0 0.0
      %3855 = vmatprep.subr.mxu0 0.0
      %3856 = vmatpush1.msra.mxu0 0.0
      %3857 = vmatprep.subr.mxu0 0.0
      %3858 = vmatpush1.msra.mxu0 0.0
      %3859 = vmatprep.subr.mxu0 0.0
      %3860 = vmatpush1.msra.mxu0 0.0
      %3861 = vmatprep.subr.mxu0 0.0
      %3862 = vmatpush1.msra.mxu0 0.0
      %3863 = vmatprep.subr.mxu0 0.0
      %3864 = vmatpush1.msra.mxu0 0.0
      %3865 = vmatprep.subr.mxu0 0.0
      %3866 = vmatpush1.msra.mxu0 0.0
      %3867 = vmatprep.subr.mxu0 0.0
      %3868 = vmatpush1.msra.mxu0 0.0
      %3869 = vmatprep.subr.mxu0 0.0
      %3870 = vmatpush1.msra.mxu0 0.0
      %3871 = vmatprep.subr.mxu0 0.0
      %3872 = vmatpush1.msra.mxu0 0.0
      %3873 = vmatprep.subr.mxu0 0.0
      %3874 = vmatpush1.msra.mxu0 0.0
      %3875 = vmatprep.subr.mxu0 0.0
      %3876 = vmatpush1.msra.mxu0 0.0
      %3877 = vmatprep.subr.mxu0 0.0
      %3878 = vmatpush1.msra.mxu0 0.0
      %3879 = vmatprep.subr.mxu0 0.0
      %3880 = vmatpush1.msra.mxu0 0.0
      %3881 = vmatprep.mubr.f32.mxu0 0.0
      %v3882 = vand.u32 %v2187, 4294901760
      %3883 = vmatmul.mubr.f32.gmra.mrb[0].mxu0 %v3882
      %v3884 = vpop.f32.mrb[0].mxu0
      %v3885 = vadd.f32 %v3626, %v3884
      %v3886 = vpop.f32.mrb[0].mxu0
      %3887 = vmatprep.mubr.f32.mxu0 0.0
      %v3888 = vand.u32 %v2190, 4294901760
      %3889 = vmatmul.mubr.f32.gmra.mrb[0].mxu0 %v3888
      %v3890 = vpop.f32.mrb[0].mxu0
      %v3891 = vadd.f32 %v3632, %v3890
      %v3892 = vpop.f32.mrb[0].mxu0
      %3893 = vmatprep.mubr.f32.mxu0 0.0
      %v3894 = vand.u32 %v2193, 4294901760
      %3895 = vmatmul.mubr.f32.gmra.mrb[0].mxu0 %v3894
      %v3896 = vpop.f32.mrb[0].mxu0
      %v3897 = vadd.f32 %v3638, %v3896
      %v3898 = vpop.f32.mrb[0].mxu0
      %3899 = vmatprep.mubr.f32.mxu0 0.0
      %v3900 = vand.u32 %v2196, 4294901760
      %3901 = vmatmul.mubr.f32.gmra.mrb[0].mxu0 %v3900
      %v3902 = vpop.f32.mrb[0].mxu0
      %v3903 = vadd.f32 %v3644, %v3902
      %v3904 = vpop.f32.mrb[0].mxu0
      %3905 = vmatprep.mubr.f32.mxu0 0.0
      %v3906 = vand.u32 %v2199, 4294901760
      %3907 = vmatmul.mubr.f32.gmra.mrb[0].mxu0 %v3906
      %v3908 = vpop.f32.mrb[0].mxu0
      %v3909 = vadd.f32 %v3650, %v3908
      %v3910 = vpop.f32.mrb[0].mxu0
      %3911 = vmatprep.mubr.f32.mxu0 0.0
      %v3912 = vand.u32 %v2202, 4294901760
      %3913 = vmatmul.mubr.f32.gmra.mrb[0].mxu0 %v3912
      %v3914 = vpop.f32.mrb[0].mxu0
      %v3915 = vadd.f32 %v3656, %v3914
      %v3916 = vpop.f32.mrb[0].mxu0
      %3917 = vmatprep.mubr.f32.mxu0 0.0
      %v3918 = vand.u32 %v2205, 4294901760
      %3919 = vmatmul.mubr.f32.gmra.mrb[0].mxu0 %v3918
      %v3920 = vpop.f32.mrb[0].mxu0
      %v3921 = vadd.f32 %v3662, %v3920
      %v3922 = vpop.f32.mrb[0].mxu0
      %3923 = vmatprep.mubr.f32.mxu0 0.0
      %v3924 = vand.u32 %v2208, 4294901760
      %3925 = vmatmul.mubr.f32.gmra.mrb[0].mxu0 %v3924
      %v3926 = vpop.f32.mrb[0].mxu0
      %v3927 = vadd.f32 %v3668, %v3926
      %v3928 = vpop.f32.mrb[0].mxu0
      %3929 = vmatprep.mubr.f32.mxu0 0.0
      %v3930 = vand.u32 %v2211, 4294901760
      %3931 = vmatmul.mubr.f32.gmra.mrb[0].mxu0 %v3930
      %v3932 = vpop.f32.mrb[0].mxu0
      %v3933 = vadd.f32 %v3674, %v3932
      %v3934 = vpop.f32.mrb[0].mxu0
      %3935 = vmatprep.mubr.f32.mxu0 0.0
      %v3936 = vand.u32 %v2214, 4294901760
      %3937 = vmatmul.mubr.f32.gmra.mrb[0].mxu0 %v3936
      %v3938 = vpop.f32.mrb[0].mxu0
      %v3939 = vadd.f32 %v3680, %v3938
      %v3940 = vpop.f32.mrb[0].mxu0
      %3941 = vmatprep.mubr.f32.mxu0 0.0
      %v3942 = vand.u32 %v2217, 4294901760
      %3943 = vmatmul.mubr.f32.gmra.mrb[0].mxu0 %v3942
      %v3944 = vpop.f32.mrb[0].mxu0
      %v3945 = vadd.f32 %v3686, %v3944
      %v3946 = vpop.f32.mrb[0].mxu0
      %3947 = vmatprep.mubr.f32.mxu0 0.0
      %v3948 = vand.u32 %v2220, 4294901760
      %3949 = vmatmul.mubr.f32.gmra.mrb[0].mxu0 %v3948
      %v3950 = vpop.f32.mrb[0].mxu0
      %v3951 = vadd.f32 %v3692, %v3950
      %v3952 = vpop.f32.mrb[0].mxu0
      %3953 = vmatprep.mubr.f32.mxu0 0.0
      %v3954 = vand.u32 %v2223, 4294901760
      %3955 = vmatmul.mubr.f32.gmra.mrb[0].mxu0 %v3954
      %v3956 = vpop.f32.mrb[0].mxu0
      %v3957 = vadd.f32 %v3698, %v3956
      %v3958 = vpop.f32.mrb[0].mxu0
      %3959 = vmatprep.mubr.f32.mxu0 0.0
      %v3960 = vand.u32 %v2226, 4294901760
      %3961 = vmatmul.mubr.f32.gmra.mrb[0].mxu0 %v3960
      %v3962 = vpop.f32.mrb[0].mxu0
      %v3963 = vadd.f32 %v3704, %v3962
      %v3964 = vpop.f32.mrb[0].mxu0
      %3965 = vmatprep.mubr.f32.mxu0 0.0
      %v3966 = vand.u32 %v2229, 4294901760
      %3967 = vmatmul.mubr.f32.gmra.mrb[0].mxu0 %v3966
      %v3968 = vpop.f32.mrb[0].mxu0
      %v3969 = vadd.f32 %v3710, %v3968
      %v3970 = vpop.f32.mrb[0].mxu0
      %3971 = vmatprep.mubr.f32.mxu0 0.0
      %v3972 = vand.u32 %v2232, 4294901760
      %3973 = vmatmul.mubr.f32.gmra.mrb[0].mxu0 %v3972
      %v3974 = vpop.f32.mrb[0].mxu0
      %v3975 = vadd.f32 %v3716, %v3974
      %v3976 = vpop.f32.mrb[0].mxu0
      %3977 = vmatprep.mubr.f32.mxu0 0.0
      %v3978 = vand.u32 %v2235, 4294901760
      %3979 = vmatmul.mubr.f32.gmra.mrb[0].mxu0 %v3978
      %v3980 = vpop.f32.mrb[0].mxu0
      %v3981 = vadd.f32 %v3722, %v3980
      %v3982 = vpop.f32.mrb[0].mxu0
      %3983 = vmatprep.mubr.f32.mxu0 0.0
      %v3984 = vand.u32 %v2238, 4294901760
      %3985 = vmatmul.mubr.f32.gmra.mrb[0].mxu0 %v3984
      %v3986 = vpop.f32.mrb[0].mxu0
      %v3987 = vadd.f32 %v3728, %v3986
      %v3988 = vpop.f32.mrb[0].mxu0
      %3989 = vmatprep.mubr.f32.mxu0 0.0
      %v3990 = vand.u32 %v2241, 4294901760
      %3991 = vmatmul.mubr.f32.gmra.mrb[0].mxu0 %v3990
      %v3992 = vpop.f32.mrb[0].mxu0
      %v3993 = vadd.f32 %v3734, %v3992
      %v3994 = vpop.f32.mrb[0].mxu0
      %3995 = vmatprep.mubr.f32.mxu0 0.0
      %v3996 = vand.u32 %v2244, 4294901760
      %3997 = vmatmul.mubr.f32.gmra.mrb[0].mxu0 %v3996
      %v3998 = vpop.f32.mrb[0].mxu0
      %v3999 = vadd.f32 %v3740, %v3998
      %v4000 = vpop.f32.mrb[0].mxu0
      %4001 = vmatprep.mubr.f32.mxu0 0.0
      %v4002 = vand.u32 %v2247, 4294901760
      %4003 = vmatmul.mubr.f32.gmra.mrb[0].mxu0 %v4002
      %v4004 = vpop.f32.mrb[0].mxu0
      %v4005 = vadd.f32 %v3746, %v4004
      %v4006 = vpop.f32.mrb[0].mxu0
      %4007 = vmatprep.mubr.f32.mxu0 0.0
      %v4008 = vand.u32 %v2250, 4294901760
      %4009 = vmatmul.mubr.f32.gmra.mrb[0].mxu0 %v4008
      %v4010 = vpop.f32.mrb[0].mxu0
      %v4011 = vadd.f32 %v3752, %v4010
      %v4012 = vpop.f32.mrb[0].mxu0
      %4013 = vmatprep.mubr.f32.mxu0 0.0
      %v4014 = vand.u32 %v2253, 4294901760
      %4015 = vmatmul.mubr.f32.gmra.mrb[0].mxu0 %v4014
      %v4016 = vpop.f32.mrb[0].mxu0
      %v4017 = vadd.f32 %v3758, %v4016
      %v4018 = vpop.f32.mrb[0].mxu0
      %4019 = vmatprep.mubr.f32.mxu0 0.0
      %v4020 = vand.u32 %v2256, 4294901760
      %4021 = vmatmul.mubr.f32.gmra.mrb[0].mxu0 %v4020
      %v4022 = vpop.f32.mrb[0].mxu0
      %v4023 = vadd.f32 %v3764, %v4022
      %v4024 = vpop.f32.mrb[0].mxu0
      %4025 = vmatprep.mubr.f32.mxu0 0.0
      %v4026 = vand.u32 %v2259, 4294901760
      %4027 = vmatmul.mubr.f32.gmra.mrb[0].mxu0 %v4026
      %v4028 = vpop.f32.mrb[0].mxu0
      %v4029 = vadd.f32 %v3770, %v4028
      %v4030 = vpop.f32.mrb[0].mxu0
      %4031 = vmatprep.mubr.f32.mxu0 0.0
      %v4032 = vand.u32 %v2262, 4294901760
      %4033 = vmatmul.mubr.f32.gmra.mrb[0].mxu0 %v4032
      %v4034 = vpop.f32.mrb[0].mxu0
      %v4035 = vadd.f32 %v3776, %v4034
      %v4036 = vpop.f32.mrb[0].mxu0
      %4037 = vmatprep.mubr.f32.mxu0 0.0
      %v4038 = vand.u32 %v2265, 4294901760
      %4039 = vmatmul.mubr.f32.gmra.mrb[0].mxu0 %v4038
      %v4040 = vpop.f32.mrb[0].mxu0
      %v4041 = vadd.f32 %v3782, %v4040
      %v4042 = vpop.f32.mrb[0].mxu0
      %4043 = vmatprep.mubr.f32.mxu0 0.0
      %v4044 = vand.u32 %v2268, 4294901760
      %4045 = vmatmul.mubr.f32.gmra.mrb[0].mxu0 %v4044
      %v4046 = vpop.f32.mrb[0].mxu0
      %v4047 = vadd.f32 %v3788, %v4046
      %v4048 = vpop.f32.mrb[0].mxu0
      %4049 = vmatprep.mubr.f32.mxu0 0.0
      %v4050 = vand.u32 %v2271, 4294901760
      %4051 = vmatmul.mubr.f32.gmra.mrb[0].mxu0 %v4050
      %v4052 = vpop.f32.mrb[0].mxu0
      %v4053 = vadd.f32 %v3794, %v4052
      %v4054 = vpop.f32.mrb[0].mxu0
      %4055 = vmatprep.mubr.f32.mxu0 0.0
      %v4056 = vand.u32 %v2274, 4294901760
      %4057 = vmatmul.mubr.f32.gmra.mrb[0].mxu0 %v4056
      %v4058 = vpop.f32.mrb[0].mxu0
      %v4059 = vadd.f32 %v3800, %v4058
      %v4060 = vpop.f32.mrb[0].mxu0
      %4061 = vmatprep.mubr.f32.mxu0 0.0
      %v4062 = vand.u32 %v2277, 4294901760
      %4063 = vmatmul.mubr.f32.gmra.mrb[0].mxu0 %v4062
      %v4064 = vpop.f32.mrb[0].mxu0
      %v4065 = vadd.f32 %v3806, %v4064
      %v4066 = vpop.f32.mrb[0].mxu0
      %4067 = vmatprep.mubr.f32.mxu0 0.0
      %v4068 = vand.u32 %v2280, 4294901760
      %4069 = vmatmul.mubr.f32.gmra.mrb[0].mxu0 %v4068
      %v4070 = vpop.f32.mrb[0].mxu0
      %v4071 = vadd.f32 %v3812, %v4070
      %v4072 = vpop.f32.mrb[0].mxu0
      %4073 = vdwg.mxu0
      %v4074 = vxor.u32 %v3885, 2147483648
      %v4075 = vxor.u32 %v3891, 2147483648
      %v4076 = vxor.u32 %v3897, 2147483648
      %v4077 = vxor.u32 %v3903, 2147483648
      %v4078 = vxor.u32 %v3909, 2147483648
      %v4079 = vxor.u32 %v3915, 2147483648
      %v4080 = vxor.u32 %v3921, 2147483648
      %v4081 = vxor.u32 %v3927, 2147483648
      %v4082 = vxor.u32 %v3933, 2147483648
      %v4083 = vxor.u32 %v3939, 2147483648
      %v4084 = vxor.u32 %v3945, 2147483648
      %v4085 = vxor.u32 %v3951, 2147483648
      %v4086 = vxor.u32 %v3957, 2147483648
      %v4087 = vxor.u32 %v3963, 2147483648
      %v4088 = vxor.u32 %v3969, 2147483648
      %v4089 = vxor.u32 %v3975, 2147483648
      %v4090 = vxor.u32 %v3981, 2147483648
      %v4091 = vxor.u32 %v3987, 2147483648
      %v4092 = vxor.u32 %v3993, 2147483648
      %v4093 = vxor.u32 %v3999, 2147483648
      %v4094 = vxor.u32 %v4005, 2147483648
      %v4095 = vxor.u32 %v4011, 2147483648
      %v4096 = vxor.u32 %v4017, 2147483648
      %v4097 = vxor.u32 %v4023, 2147483648
      %v4098 = vxor.u32 %v4029, 2147483648
      %v4099 = vxor.u32 %v4035, 2147483648
      %v4100 = vxor.u32 %v4041, 2147483648
      %v4101 = vxor.u32 %v4047, 2147483648
      %v4102 = vxor.u32 %v4053, 2147483648
      %v4103 = vxor.u32 %v4059, 2147483648
      %v4104 = vxor.u32 %v4065, 2147483648
      %v4105 = vxor.u32 %v4071, 2147483648
      %v4106 = vmul.f32 %v4074, 1.442695
      %v4107 = vpow.pop %v4106
      %v4108 = vmul.f32 %v4075, 1.442695
      %v4109 = vpow.pop %v4108
      %v4110 = vmul.f32 %v4076, 1.442695
      %v4111 = vpow.pop %v4110
      %v4112 = vmul.f32 %v4077, 1.442695
      %v4113 = vpow.pop %v4112
      %v4114 = vmul.f32 %v4078, 1.442695
      %v4115 = vpow.pop %v4114
      %v4116 = vmul.f32 %v4079, 1.442695
      %v4117 = vpow.pop %v4116
      %v4118 = vmul.f32 %v4080, 1.442695
      %v4119 = vpow.pop %v4118
      %v4120 = vmul.f32 %v4081, 1.442695
      %v4121 = vpow.pop %v4120
      %v4122 = vmul.f32 %v4082, 1.442695
      %v4123 = vpow.pop %v4122
      %v4124 = vmul.f32 %v4083, 1.442695
      %v4125 = vpow.pop %v4124
      %v4126 = vmul.f32 %v4084, 1.442695
      %v4127 = vpow.pop %v4126
      %v4128 = vmul.f32 %v4085, 1.442695
      %v4129 = vpow.pop %v4128
      %v4130 = vmul.f32 %v4086, 1.442695
      %v4131 = vpow.pop %v4130
      %v4132 = vmul.f32 %v4087, 1.442695
      %v4133 = vpow.pop %v4132
      %v4134 = vmul.f32 %v4088, 1.442695
      %v4135 = vpow.pop %v4134
      %v4136 = vmul.f32 %v4089, 1.442695
      %v4137 = vpow.pop %v4136
      %v4138 = vmul.f32 %v4090, 1.442695
      %v4139 = vpow.pop %v4138
      %v4140 = vmul.f32 %v4091, 1.442695
      %v4141 = vpow.pop %v4140
      %v4142 = vmul.f32 %v4092, 1.442695
      %v4143 = vpow.pop %v4142
      %v4144 = vmul.f32 %v4093, 1.442695
      %v4145 = vpow.pop %v4144
      %v4146 = vmul.f32 %v4094, 1.442695
      %v4147 = vpow.pop %v4146
      %v4148 = vmul.f32 %v4095, 1.442695
      %v4149 = vpow.pop %v4148
      %v4150 = vmul.f32 %v4096, 1.442695
      %v4151 = vpow.pop %v4150
      %v4152 = vmul.f32 %v4097, 1.442695
      %v4153 = vpow.pop %v4152
      %v4154 = vmul.f32 %v4098, 1.442695
      %v4155 = vpow.pop %v4154
      %v4156 = vmul.f32 %v4099, 1.442695
      %v4157 = vpow.pop %v4156
      %v4158 = vmul.f32 %v4100, 1.442695
      %v4159 = vpow.pop %v4158
      %v4160 = vmul.f32 %v4101, 1.442695
      %v4161 = vpow.pop %v4160
      %v4162 = vmul.f32 %v4102, 1.442695
      %v4163 = vpow.pop %v4162
      %v4164 = vmul.f32 %v4103, 1.442695
      %v4165 = vpow.pop %v4164
      %v4166 = vmul.f32 %v4104, 1.442695
      %v4167 = vpow.pop %v4166
      %v4168 = vmul.f32 %v4105, 1.442695
      %v4169 = vpow.pop %v4168
      %v4170 = vadd.f32 %v4107, 1.0
      %v4171 = vadd.f32 %v4109, 1.0
      %v4172 = vadd.f32 %v4111, 1.0
      %v4173 = vadd.f32 %v4113, 1.0
      %v4174 = vadd.f32 %v4115, 1.0
      %v4175 = vadd.f32 %v4117, 1.0
      %v4176 = vadd.f32 %v4119, 1.0
      %v4177 = vadd.f32 %v4121, 1.0
      %v4178 = vadd.f32 %v4123, 1.0
      %v4179 = vadd.f32 %v4125, 1.0
      %v4180 = vadd.f32 %v4127, 1.0
      %v4181 = vadd.f32 %v4129, 1.0
      %v4182 = vadd.f32 %v4131, 1.0
      %v4183 = vadd.f32 %v4133, 1.0
      %v4184 = vadd.f32 %v4135, 1.0
      %v4185 = vadd.f32 %v4137, 1.0
      %v4186 = vadd.f32 %v4139, 1.0
      %v4187 = vadd.f32 %v4141, 1.0
      %v4188 = vadd.f32 %v4143, 1.0
      %v4189 = vadd.f32 %v4145, 1.0
      %v4190 = vadd.f32 %v4147, 1.0
      %v4191 = vadd.f32 %v4149, 1.0
      %v4192 = vadd.f32 %v4151, 1.0
      %v4193 = vadd.f32 %v4153, 1.0
      %v4194 = vadd.f32 %v4155, 1.0
      %v4195 = vadd.f32 %v4157, 1.0
      %v4196 = vadd.f32 %v4159, 1.0
      %v4197 = vadd.f32 %v4161, 1.0
      %v4198 = vadd.f32 %v4163, 1.0
      %v4199 = vadd.f32 %v4165, 1.0
      %v4200 = vadd.f32 %v4167, 1.0
      %v4201 = vadd.f32 %v4169, 1.0
      %v4202 = vrcp.pop %v4170
      %v4203 = vmul.f32 1.0, %v4202
      %v4204 = vrcp.pop %v4171
      %v4205 = vmul.f32 1.0, %v4204
      %v4206 = vrcp.pop %v4172
      %v4207 = vmul.f32 1.0, %v4206
      %v4208 = vrcp.pop %v4173
      %v4209 = vmul.f32 1.0, %v4208
      %v4210 = vrcp.pop %v4174
      %v4211 = vmul.f32 1.0, %v4210
      %v4212 = vrcp.pop %v4175
      %v4213 = vmul.f32 1.0, %v4212
      %v4214 = vrcp.pop %v4176
      %v4215 = vmul.f32 1.0, %v4214
      %v4216 = vrcp.pop %v4177
      %v4217 = vmul.f32 1.0, %v4216
      %v4218 = vrcp.pop %v4178
      %v4219 = vmul.f32 1.0, %v4218
      %v4220 = vrcp.pop %v4179
      %v4221 = vmul.f32 1.0, %v4220
      %v4222 = vrcp.pop %v4180
      %v4223 = vmul.f32 1.0, %v4222
      %v4224 = vrcp.pop %v4181
      %v4225 = vmul.f32 1.0, %v4224
      %v4226 = vrcp.pop %v4182
      %v4227 = vmul.f32 1.0, %v4226
      %v4228 = vrcp.pop %v4183
      %v4229 = vmul.f32 1.0, %v4228
      %v4230 = vrcp.pop %v4184
      %v4231 = vmul.f32 1.0, %v4230
      %v4232 = vrcp.pop %v4185
      %v4233 = vmul.f32 1.0, %v4232
      %v4234 = vrcp.pop %v4186
      %v4235 = vmul.f32 1.0, %v4234
      %v4236 = vrcp.pop %v4187
      %v4237 = vmul.f32 1.0, %v4236
      %v4238 = vrcp.pop %v4188
      %v4239 = vmul.f32 1.0, %v4238
      %v4240 = vrcp.pop %v4189
      %v4241 = vmul.f32 1.0, %v4240
      %v4242 = vrcp.pop %v4190
      %v4243 = vmul.f32 1.0, %v4242
      %v4244 = vrcp.pop %v4191
      %v4245 = vmul.f32 1.0, %v4244
      %v4246 = vrcp.pop %v4192
      %v4247 = vmul.f32 1.0, %v4246
      %v4248 = vrcp.pop %v4193
      %v4249 = vmul.f32 1.0, %v4248
      %v4250 = vrcp.pop %v4194
      %v4251 = vmul.f32 1.0, %v4250
      %v4252 = vrcp.pop %v4195
      %v4253 = vmul.f32 1.0, %v4252
      %v4254 = vrcp.pop %v4196
      %v4255 = vmul.f32 1.0, %v4254
      %v4256 = vrcp.pop %v4197
      %v4257 = vmul.f32 1.0, %v4256
      %v4258 = vrcp.pop %v4198
      %v4259 = vmul.f32 1.0, %v4258
      %v4260 = vrcp.pop %v4199
      %v4261 = vmul.f32 1.0, %v4260
      %v4262 = vrcp.pop %v4200
      %v4263 = vmul.f32 1.0, %v4262
      %v4264 = vrcp.pop %v4201
      %v4265 = vmul.f32 1.0, %v4264
      %v4266 = vmul.f32 %v4203, 1.1
      %v4267 = vmul.f32 %v4205, 1.1
      %v4268 = vmul.f32 %v4207, 1.1
      %v4269 = vmul.f32 %v4209, 1.1
      %v4270 = vmul.f32 %v4211, 1.1
      %v4271 = vmul.f32 %v4213, 1.1
      %v4272 = vmul.f32 %v4215, 1.1
      %v4273 = vmul.f32 %v4217, 1.1
      %v4274 = vmul.f32 %v4219, 1.1
      %v4275 = vmul.f32 %v4221, 1.1
      %v4276 = vmul.f32 %v4223, 1.1
      %v4277 = vmul.f32 %v4225, 1.1
      %v4278 = vmul.f32 %v4227, 1.1
      %v4279 = vmul.f32 %v4229, 1.1
      %v4280 = vmul.f32 %v4231, 1.1
      %v4281 = vmul.f32 %v4233, 1.1
      %v4282 = vmul.f32 %v4235, 1.1
      %v4283 = vmul.f32 %v4237, 1.1
      %v4284 = vmul.f32 %v4239, 1.1
      %v4285 = vmul.f32 %v4241, 1.1
      %v4286 = vmul.f32 %v4243, 1.1
      %v4287 = vmul.f32 %v4245, 1.1
      %v4288 = vmul.f32 %v4247, 1.1
      %v4289 = vmul.f32 %v4249, 1.1
      %v4290 = vmul.f32 %v4251, 1.1
      %v4291 = vmul.f32 %v4253, 1.1
      %v4292 = vmul.f32 %v4255, 1.1
      %v4293 = vmul.f32 %v4257, 1.1
      %v4294 = vmul.f32 %v4259, 1.1
      %v4295 = vmul.f32 %v4261, 1.1
      %v4296 = vmul.f32 %v4263, 1.1
      %v4297 = vmul.f32 %v4265, 1.1
      %v4298 = vsub.f32 %v4266, 0.05
      %v4299 = vsub.f32 %v4267, 0.05
      %v4300 = vsub.f32 %v4268, 0.05
      %v4301 = vsub.f32 %v4269, 0.05
      %v4302 = vsub.f32 %v4270, 0.05
      %v4303 = vsub.f32 %v4271, 0.05
      %v4304 = vsub.f32 %v4272, 0.05
      %v4305 = vsub.f32 %v4273, 0.05
      %v4306 = vsub.f32 %v4274, 0.05
      %v4307 = vsub.f32 %v4275, 0.05
      %v4308 = vsub.f32 %v4276, 0.05
      %v4309 = vsub.f32 %v4277, 0.05
      %v4310 = vsub.f32 %v4278, 0.05
      %v4311 = vsub.f32 %v4279, 0.05
      %v4312 = vsub.f32 %v4280, 0.05
      %v4313 = vsub.f32 %v4281, 0.05
      %v4314 = vsub.f32 %v4282, 0.05
      %v4315 = vsub.f32 %v4283, 0.05
      %v4316 = vsub.f32 %v4284, 0.05
      %v4317 = vsub.f32 %v4285, 0.05
      %v4318 = vsub.f32 %v4286, 0.05
      %v4319 = vsub.f32 %v4287, 0.05
      %v4320 = vsub.f32 %v4288, 0.05
      %v4321 = vsub.f32 %v4289, 0.05
      %v4322 = vsub.f32 %v4290, 0.05
      %v4323 = vsub.f32 %v4291, 0.05
      %v4324 = vsub.f32 %v4292, 0.05
      %v4325 = vsub.f32 %v4293, 0.05
      %v4326 = vsub.f32 %v4294, 0.05
      %v4327 = vsub.f32 %v4295, 0.05
      %v4328 = vsub.f32 %v4296, 0.05
      %v4329 = vsub.f32 %v4297, 0.05
      %v4330 = vmax.f32 %v4298, 0.0
      %v4331 = vmax.f32 %v4299, 0.0
      %v4332 = vmax.f32 %v4300, 0.0
      %v4333 = vmax.f32 %v4301, 0.0
      %v4334 = vmax.f32 %v4302, 0.0
      %v4335 = vmax.f32 %v4303, 0.0
      %v4336 = vmax.f32 %v4304, 0.0
      %v4337 = vmax.f32 %v4305, 0.0
      %v4338 = vmax.f32 %v4306, 0.0
      %v4339 = vmax.f32 %v4307, 0.0
      %v4340 = vmax.f32 %v4308, 0.0
      %v4341 = vmax.f32 %v4309, 0.0
      %v4342 = vmax.f32 %v4310, 0.0
      %v4343 = vmax.f32 %v4311, 0.0
      %v4344 = vmax.f32 %v4312, 0.0
      %v4345 = vmax.f32 %v4313, 0.0
      %v4346 = vmax.f32 %v4314, 0.0
      %v4347 = vmax.f32 %v4315, 0.0
      %v4348 = vmax.f32 %v4316, 0.0
      %v4349 = vmax.f32 %v4317, 0.0
      %v4350 = vmax.f32 %v4318, 0.0
      %v4351 = vmax.f32 %v4319, 0.0
      %v4352 = vmax.f32 %v4320, 0.0
      %v4353 = vmax.f32 %v4321, 0.0
      %v4354 = vmax.f32 %v4322, 0.0
      %v4355 = vmax.f32 %v4323, 0.0
      %v4356 = vmax.f32 %v4324, 0.0
      %v4357 = vmax.f32 %v4325, 0.0
      %v4358 = vmax.f32 %v4326, 0.0
      %v4359 = vmax.f32 %v4327, 0.0
      %v4360 = vmax.f32 %v4328, 0.0
      %v4361 = vmax.f32 %v4329, 0.0
      %v4362 = vmin.f32 %v4330, 1.0
      %v4363 = vmin.f32 %v4331, 1.0
      %v4364 = vmin.f32 %v4332, 1.0
      %v4365 = vmin.f32 %v4333, 1.0
      %v4366 = vmin.f32 %v4334, 1.0
      %v4367 = vmin.f32 %v4335, 1.0
      %v4368 = vmin.f32 %v4336, 1.0
      %v4369 = vmin.f32 %v4337, 1.0
      %v4370 = vmin.f32 %v4338, 1.0
      %v4371 = vmin.f32 %v4339, 1.0
      %v4372 = vmin.f32 %v4340, 1.0
      %v4373 = vmin.f32 %v4341, 1.0
      %v4374 = vmin.f32 %v4342, 1.0
      %v4375 = vmin.f32 %v4343, 1.0
      %v4376 = vmin.f32 %v4344, 1.0
      %v4377 = vmin.f32 %v4345, 1.0
      %v4378 = vmin.f32 %v4346, 1.0
      %v4379 = vmin.f32 %v4347, 1.0
      %v4380 = vmin.f32 %v4348, 1.0
      %v4381 = vmin.f32 %v4349, 1.0
      %v4382 = vmin.f32 %v4350, 1.0
      %v4383 = vmin.f32 %v4351, 1.0
      %v4384 = vmin.f32 %v4352, 1.0
      %v4385 = vmin.f32 %v4353, 1.0
      %v4386 = vmin.f32 %v4354, 1.0
      %v4387 = vmin.f32 %v4355, 1.0
      %v4388 = vmin.f32 %v4356, 1.0
      %v4389 = vmin.f32 %v4357, 1.0
      %v4390 = vmin.f32 %v4358, 1.0
      %v4391 = vmin.f32 %v4359, 1.0
      %v4392 = vmin.f32 %v4360, 1.0
      %v4393 = vmin.f32 %v4361, 1.0
      %4394 = vst [vmem:[%s226] sm:$0xff] %v4362
      %4395 = vst [vmem:[%s226 + $0x8] sm:$0xff] %v4363
      %4396 = vst [vmem:[%s226 + $0x10] sm:$0xff] %v4364
      %4397 = vst [vmem:[%s226 + $0x18] sm:$0xff] %v4365
      %4398 = vst [vmem:[%s226 + $0x20] sm:$0xff] %v4366
      %4399 = vst [vmem:[%s226 + $0x28] sm:$0xff] %v4367
      %4400 = vst [vmem:[%s226 + $0x30] sm:$0xff] %v4368
      %4401 = vst [vmem:[%s226 + $0x38] sm:$0xff] %v4369
      %4402 = vst [vmem:[%s226 + $0x40] sm:$0xff] %v4370
      %4403 = vst [vmem:[%s226 + $0x48] sm:$0xff] %v4371
      %4404 = vst [vmem:[%s226 + $0x50] sm:$0xff] %v4372
      %4405 = vst [vmem:[%s226 + $0x58] sm:$0xff] %v4373
      %4406 = vst [vmem:[%s226 + $0x60] sm:$0xff] %v4374
      %4407 = vst [vmem:[%s226 + $0x68] sm:$0xff] %v4375
      %4408 = vst [vmem:[%s226 + $0x70] sm:$0xff] %v4376
      %4409 = vst [vmem:[%s226 + $0x78] sm:$0xff] %v4377
      %4410 = vst [vmem:[%s226 + $0x80] sm:$0xff] %v4378
      %4411 = vst [vmem:[%s226 + $0x88] sm:$0xff] %v4379
      %4412 = vst [vmem:[%s226 + $0x90] sm:$0xff] %v4380
      %4413 = vst [vmem:[%s226 + $0x98] sm:$0xff] %v4381
      %4414 = vst [vmem:[%s226 + $0xa0] sm:$0xff] %v4382
      %4415 = vst [vmem:[%s226 + $0xa8] sm:$0xff] %v4383
      %4416 = vst [vmem:[%s226 + $0xb0] sm:$0xff] %v4384
      %4417 = vst [vmem:[%s226 + $0xb8] sm:$0xff] %v4385
      %4418 = vst [vmem:[%s226 + $0xc0] sm:$0xff] %v4386
      %4419 = vst [vmem:[%s226 + $0xc8] sm:$0xff] %v4387
      %4420 = vst [vmem:[%s226 + $0xd0] sm:$0xff] %v4388
      %4421 = vst [vmem:[%s226 + $0xd8] sm:$0xff] %v4389
      %4422 = vst [vmem:[%s226 + $0xe0] sm:$0xff] %v4390
      %4423 = vst [vmem:[%s226 + $0xe8] sm:$0xff] %v4391
      %4424 = vst [vmem:[%s226 + $0xf0] sm:$0xff] %v4392
      %4425 = vst [vmem:[%s226 + $0xf8] sm:$0xff] %v4393
      %s4426 = smul.u32 32, %s16
      %p4427 = scmp.lt.s32.totalorder %s4426, 63
      %s4428 = scalar_select %p4427, %s4426, 63
      %s4429 = smul.addr %s4428, 8
      %s4430 = scalar_lea.vmem %s5, %s4429
      // Predicated region
      $region41: #{_generator_pallas.1} parent=39 // pred_check
        %p4431 = pneg %p144
      $region42: #{_generator_pallas.1} parent=39 // pred_check_branch
        %4433 = sbr.rel (%p4431) target = $region44
      $region43: #{_generator_pallas.1} parent=39 // pred_region
        %s4434 = smul.u32 32, %s16
      $region44: #{_generator_pallas.1} parent=39 // pred_fallthru
        _
    $region40: #{_generator_pallas.1} parent=5 // pred_fallthru
      _
    %p4435 = scmp.le.s32.totalorder 2, %s11
    // Predicated region
    $region45: #{_generator_pallas.1} parent=5 // pred_check
      %p4436 = pneg %p4435
    $region46: #{_generator_pallas.1} parent=5 // pred_check_branch
      %4438 = sbr.rel (%p4436) target = $region48
    $region47: #{_generator_pallas.1} parent=5 // pred_region
      %s4439 = ssub.s32 %s11, 2
      // Predicated region
      $region49: #{_generator_pallas.1} parent=47 // pred_check
        %p4440 = pneg %p150
      $region50: #{_generator_pallas.1} parent=47 // pred_check_branch
        %4442 = sbr.rel (%p4440) target = $region52
      $region51: #{_generator_pallas.1} parent=47 // pred_region
        %s4443 = smul.u32 32, %s17
        %p4444 = scmp.lt.s32.totalorder %s4443, 63
        %s4445 = scalar_select %p4444, %s4443, 63
        %s4446 = smul.addr %s4445, 8
        %s4447 = scalar_lea.vmem %s5, %s4446
      $region52: #{_generator_pallas.1} parent=47 // pred_fallthru
        _
    $region48: #{_generator_pallas.1} parent=5 // pred_fallthru
      _
  $region6: #{_generator_pallas.1} parent=0 // loop_footer
    %s15 = sadd.s32 1, %s11
  $region7: #{_generator_pallas.1} parent=0 // loop_footer_branch
    %10 = sbr.rel target = $region3
  $region8: #{_generator_pallas.1} parent=0 // loop_exit
    _

</llo_original>
